<compile_context>
chip_gen: v6e
topology: v6e:2x2x1
jax: 0.10.0
libtpu: 0.0.40
codegen_flags: <defaults>
</compile_context>

<pallas_src>
import math
from functools import partial

import jax
import jax.numpy as jnp
from jax import lax
from jax.experimental import pallas as pl
from jax.experimental.pallas import tpu as pltpu

EPS = 1e-5
LANES = 128


def _round_up(x, m):
    return (x + m - 1) // m * m


def _nbytes(a):
    return int(math.prod(a.shape)) * jnp.dtype(a.dtype).itemsize


_VMEM_CAP_CACHE = []


def _vmem_cap_bytes():
    """Per-generation VMEM budget: ~3/4 of physical (v7x ~48 MiB, v5e/v6e ~96 MiB)."""
    if not _VMEM_CAP_CACHE:
        try:
            phys = int(pltpu.get_tpu_info().vmem_capacity_bytes)
        except Exception:
            phys = 64 << 20                      # conservative (v7x) fallback
        _VMEM_CAP_CACHE.append(int(min((phys * 3) // 4, 100 << 20)))
    return _VMEM_CAP_CACHE[0]


def _mosaic_params(dim_sem, block_bytes, scratch_bytes=0, temp_bytes=0):
    # double-buffered blocks + scratch + in-kernel temporaries + headroom,
    # clamped to the generation-specific budget.
    limit = 2 * block_bytes + scratch_bytes + temp_bytes + (4 << 20)
    limit = int(min(max(limit, 16 << 20), _vmem_cap_bytes()))
    return pltpu.CompilerParams(dimension_semantics=dim_sem,
                                vmem_limit_bytes=limit)


def _cost(flops, operands, results):
    b = sum(_nbytes(a) for a in list(operands) + list(results))
    return pl.CostEstimate(flops=int(flops), transcendentals=0,
                           bytes_accessed=int(b))


def _pick_batch_tile(N, M_img, Hp2, Wp2, GG, Cpin, Cpout):
    """Largest divisor of N whose per-step working set fits the VMEM budget and
    whose matmul-M stays <= ~2048 rows (packs small images per grid step)."""
    cap = _vmem_cap_bytes()
    w_bytes = (9 * Cpin * Cpout + 9 * Cpout * Cpout + Cpin * Cpout) * 2
    best = 1
    for d in range(1, N + 1):
        if N % d:
            continue
        if d > 1 and d * M_img > 2048:
            continue
        # kernel 1: subs block (f32) + bf16 outputs + f32 accumulator + tap temp
        k1 = (d * GG * Hp2 * Wp2 * Cpin * 4
              + 2 * d * M_img * Cpout * 2
              + d * M_img * Cpout * 4
              + d * M_img * Cpin * 4)
        # kernel 2: y1 in + y2 out (bf16) + f32 pad scratch + acc + tap temp
        k2 = (2 * d * M_img * Cpout * 2
              + d * Hp2 * Wp2 * Cpout * 4
              + 2 * d * M_img * Cpout * 4)
        need = 2 * max(k1, k2) + 2 * w_bytes + (8 << 20)
        if need <= cap:
            best = d
    return best


# ----------------------------- kernels ---------------------------------------
def _conv1_kernel(has_proj, stride, G, Bt, Ho, Wo, Cpin, Cpout):
    M = Bt * Ho * Wo
    Hp2 = Ho + 2

    def kernel(*refs):
        if has_proj:
            subs_ref, w1_ref, ws_ref, y1_ref, st1_ref, ysc_ref, sts_ref = refs
        else:
            subs_ref, w1_ref, y1_ref, st1_ref = refs

        # conv1: 3x3 (stride folded into the space-to-depth layout of `subs`)
        # as 9 accumulating K=Cpin MXU dots -- no im2col concatenation.
        acc = jnp.zeros((M, Cpout), jnp.float32)
        for kh in range(3):
            for kw in range(3):
                g = (kh % stride) * G + (kw % stride)
                qh, qw = kh // stride, kw // stride
                r0 = g * Hp2 + qh
                tap = subs_ref[:, r0:r0 + Ho, qw:qw + Wo, :]
                tap = tap.reshape(M, Cpin).astype(jnp.bfloat16)
                t = kh * 3 + kw
                acc = acc + jnp.dot(tap, w1_ref[t * Cpin:(t + 1) * Cpin, :],
                                    preferred_element_type=jnp.float32)
        y1_ref[...] = acc.reshape(Bt, Ho * Wo, Cpout).astype(jnp.bfloat16)
        # Per-step PARTIAL BN stats (taken from the f32 acc, before the cast).
        st1_ref[0] = jnp.concatenate(
            [jnp.sum(acc, axis=0, keepdims=True),
             jnp.sum(acc * acc, axis=0, keepdims=True)], axis=0)

        if has_proj:
            # 1x1 strided shortcut conv, reusing the resident input tile.
            a0, q0 = 1 % stride, 1 // stride
            r0 = (a0 * G + a0) * Hp2 + q0
            xc = subs_ref[:, r0:r0 + Ho, q0:q0 + Wo, :]
            xc = xc.reshape(M, Cpin).astype(jnp.bfloat16)
            sc = jnp.dot(xc, ws_ref[...], preferred_element_type=jnp.float32)
            ysc_ref[...] = sc.reshape(Bt, Ho * Wo, Cpout).astype(jnp.bfloat16)
            sts_ref[0] = jnp.concatenate(
                [jnp.sum(sc, axis=0, keepdims=True),
                 jnp.sum(sc * sc, axis=0, keepdims=True)], axis=0)

    return kernel


def _conv2_kernel(Bt, Ho, Wo, Cp):
    M = Bt * Ho * Wo

    def kernel(y1_ref, sc1_ref, sh1_ref, w2_ref, y2_ref, st2_ref, pad_ref):
        # Zero the 1-pixel halo EVERY step (cheap strips): the scratch persists
        # across steps and the grid axis is "parallel" (megacore-safe).
        zr = jnp.zeros((Bt, 1, Wo + 2, Cp), jnp.float32)
        zc = jnp.zeros((Bt, Ho + 2, 1, Cp), jnp.float32)
        pad_ref[:, 0:1, :, :] = zr
        pad_ref[:, Ho + 1:Ho + 2, :, :] = zr
        pad_ref[:, :, 0:1, :] = zc
        pad_ref[:, :, Wo + 1:Wo + 2, :] = zc

        # bn1 (training-mode stats folded into scale/shift) + relu, in f32.
        o1 = jnp.maximum(
            y1_ref[...].astype(jnp.float32) * sc1_ref[...] + sh1_ref[...], 0.0)
        pad_ref[:, 1:Ho + 1, 1:Wo + 1, :] = o1.reshape(Bt, Ho, Wo, Cp)

        # conv2: 3x3 / stride 1 as 9 accumulating MXU dots over shifted windows.
        acc = jnp.zeros((M, Cp), jnp.float32)
        for kh in range(3):
            for kw in range(3):
                tap = pad_ref[:, kh:kh + Ho, kw:kw + Wo, :]
                tap = tap.reshape(M, Cp).astype(jnp.bfloat16)
                t = kh * 3 + kw
                acc = acc + jnp.dot(tap, w2_ref[t * Cp:(t + 1) * Cp, :],
                                    preferred_element_type=jnp.float32)
        y2_ref[...] = acc.reshape(Bt, Ho * Wo, Cp).astype(jnp.bfloat16)
        st2_ref[0] = jnp.concatenate(
            [jnp.sum(acc, axis=0, keepdims=True),
             jnp.sum(acc * acc, axis=0, keepdims=True)], axis=0)

    return kernel


def _epilogue_kernel(has_proj):
    def kernel(*refs):
        if has_proj:
            y2_ref, sc2_ref, sh2_ref, ysc_ref, scs_ref, shs_ref, out_ref = refs
            short = (ysc_ref[...].astype(jnp.float32) * scs_ref[...]
                     + shs_ref[...])                         # bn(1x1 conv)
        else:
            y2_ref, sc2_ref, sh2_ref, xid_ref, out_ref = refs
            short = xid_ref[...]                             # identity (f32)
        out_ref[...] = jnp.maximum(
            y2_ref[...].astype(jnp.float32) * sc2_ref[...] + sh2_ref[...]
            + short, 0.0)
    return kernel


# ----------------------------- wrapper ----------------------------------------
@partial(jax.jit, static_argnames=("stride",))
def basic_block(x_nhwc, params, stride):
    N, H, W, Cin = x_nhwc.shape
    Cout = params["w1"].shape[-1]
    has_proj = (stride != 1) or (Cin != Cout)
    Ho = (H + 2 - 3) // stride + 1
    Wo = (W + 2 - 3) // stride + 1
    M_img = Ho * Wo
    Cpin = _round_up(Cin, LANES)
    Cpout = _round_up(Cout, LANES)
    G = min(stride, 3)
    f32, bf16 = jnp.float32, jnp.bfloat16

    # -------- glue: channel pad, spatial zero-pad, space-to-depth (~1x size) --
    x_c = jnp.pad(x_nhwc, ((0, 0), (0, 0), (0, 0), (0, Cpin - Cin)))
    xpad = jnp.pad(x_c, ((0, 0), (1, 1), (1, 1), (0, 0)))
    subs = []
    for a in range(G):
        for b in range(G):
            s = xpad[:, a::stride, b::stride, :][:, :Ho + 2, :Wo + 2, :]
            s = jnp.pad(s, ((0, 0), (0, Ho + 2 - s.shape[1]),
                            (0, Wo + 2 - s.shape[2]), (0, 0)))
            subs.append(s)
    subs = jnp.concatenate(subs, axis=1)     # (N, G*G*(Ho+2), Wo+2, Cpin) f32

    w1 = jnp.pad(params["w1"], ((0, 0), (0, 0), (0, Cpin - Cin), (0, Cpout - Cout)))
    w1 = w1.reshape(9 * Cpin, Cpout).astype(bf16)
    w2 = jnp.pad(params["w2"], ((0, 0), (0, 0), (0, Cpout - Cout), (0, Cpout - Cout)))
    w2 = w2.reshape(9 * Cpout, Cpout).astype(bf16)

    def pad_vec(v):
        v = v.reshape(-1).astype(f32)
        return jnp.pad(v, (0, Cpout - v.shape[0]))

    g1, b1 = pad_vec(params["g1"]), pad_vec(params["b1"])
    g2, b2 = pad_vec(params["g2"]), pad_vec(params["b2"])

    Bt = _pick_batch_tile(N, M_img, Ho + 2, Wo + 2, G * G, Cpin, Cpout)
    steps = N // Bt
    count = float(N * M_img)

    def bn_affine(st_part, gamma, beta):
        st = jnp.sum(st_part, axis=0)                 # reduce per-step partials
        mean = st[0] / count
        var = jnp.maximum(st[1] / count - mean * mean, 0.0)
        scale = gamma * lax.rsqrt(var + EPS)
        shift = beta - mean * scale
        return scale.reshape(1, Cpout), shift.reshape(1, Cpout)

    # common shapes / specs
    y_sds = jax.ShapeDtypeStruct((N, M_img, Cpout), bf16)
    st_sds = jax.ShapeDtypeStruct((steps, 2, Cpout), f32)
    act_spec = pl.BlockSpec((Bt, M_img, Cpout), lambda n: (n, 0, 0))
    st_spec = pl.BlockSpec((1, 2, Cpout), lambda n: (n, 0, 0))
    vec_spec = pl.BlockSpec((1, Cpout), lambda n: (0, 0))

    # -------- kernel 1: conv1 (+ shortcut 1x1 conv) + per-step BN partials ----
    subs_spec = pl.BlockSpec((Bt, G * G * (Ho + 2), Wo + 2, Cpin),
                             lambda n: (n, 0, 0, 0))
    w1_spec = pl.BlockSpec((9 * Cpin, Cpout), lambda n: (0, 0))
    in1 = [subs, w1]
    specs1 = [subs_spec, w1_spec]
    outs1 = [y_sds, st_sds]
    ospecs1 = [act_spec, st_spec]
    flops1 = 2 * N * M_img * 9 * Cpin * Cpout
    if has_proj:
        ws = jnp.pad(params["ws"], ((0, 0), (0, 0), (0, Cpin - Cin),
                                    (0, Cpout - Cout)))
        ws = ws.reshape(Cpin, Cpout).astype(bf16)
        in1.append(ws)
        specs1.append(pl.BlockSpec((Cpin, Cpout), lambda n: (0, 0)))
        outs1 += [y_sds, st_sds]
        ospecs1 += [act_spec, st_spec]
        flops1 += 2 * N * M_img * Cpin * Cpout
    blk1 = (Bt * G * G * (Ho + 2) * (Wo + 2) * Cpin * 4
            + 9 * Cpin * Cpout * 2
            + (Bt * M_img * Cpout * 2 + 2 * Cpout * 4) * (2 if has_proj else 1)
            + (Cpin * Cpout * 2 if has_proj else 0))
    tmp1 = Bt * M_img * (Cpout * 4 + Cpin * 4)
    r1 = pl.pallas_call(
        _conv1_kernel(has_proj, stride, G, Bt, Ho, Wo, Cpin, Cpout),
        grid=(steps,),
        in_specs=specs1,
        out_specs=ospecs1,
        out_shape=tuple(outs1),
        compiler_params=_mosaic_params(("parallel",), blk1, temp_bytes=tmp1),
        cost_estimate=_cost(flops1, in1, outs1),
    )(*in1)
    if has_proj:
        y1, st1p, ysc, stsp = r1
    else:
        y1, st1p = r1

    sc1, sh1 = bn_affine(st1p, g1, b1)

    # -------- kernel 2: bn1 + relu + conv2 + per-step BN2 partials -------------
    w2_spec = pl.BlockSpec((9 * Cpout, Cpout), lambda n: (0, 0))
    blk2 = (2 * Bt * M_img * Cpout * 2 + 2 * Cpout * 4 * 2
            + 2 * Cpout * 4 + 9 * Cpout * Cpout * 2)
    scratch2 = Bt * (Ho + 2) * (Wo + 2) * Cpout * 4
    tmp2 = 2 * Bt * M_img * Cpout * 4
    in2 = [y1, sc1, sh1, w2]
    outs2 = (y_sds, st_sds)
    y2, st2p = pl.pallas_call(
        _conv2_kernel(Bt, Ho, Wo, Cpout),
        grid=(steps,),
        in_specs=[act_spec, vec_spec, vec_spec, w2_spec],
        out_specs=[act_spec, st_spec],
        out_shape=outs2,
        scratch_shapes=[pltpu.VMEM((Bt, Ho + 2, Wo + 2, Cpout), f32)],
        compiler_params=_mosaic_params(("parallel",), blk2, scratch2, tmp2),
        cost_estimate=_cost(2 * N * M_img * 9 * Cpout * Cpout, in2, outs2),
    )(*in2)

    sc2, sh2 = bn_affine(st2p, g2, b2)

    # -------- kernel 3: bn2 + shortcut(BN) + residual add + relu ---------------
    out_sds = jax.ShapeDtypeStruct((N, M_img, Cpout), f32)
    out_spec = pl.BlockSpec((Bt, M_img, Cpout), lambda n: (n, 0, 0))
    if has_proj:
        gs, bs = pad_vec(params["gs"]), pad_vec(params["bs"])
        scs, shs = bn_affine(stsp, gs, bs)
        in3 = [y2, sc2, sh2, ysc, scs, shs]
        specs3 = [act_spec, vec_spec, vec_spec, act_spec, vec_spec, vec_spec]
    else:
        xid = x_c.reshape(N, M_img, Cpout)   # stride==1 and Cpin==Cpout here
        in3 = [y2, sc2, sh2, xid]
        specs3 = [act_spec, vec_spec, vec_spec,
                  pl.BlockSpec((Bt, M_img, Cpout), lambda n: (n, 0, 0))]
    blk3 = 3 * Bt * M_img * Cpout * 4
    out = pl.pallas_call(
        _epilogue_kernel(has_proj),
        grid=(steps,),
        in_specs=specs3,
        out_specs=out_spec,
        out_shape=out_sds,
        compiler_params=_mosaic_params(("parallel",), blk3),
        cost_estimate=_cost(6 * N * M_img * Cpout, in3, (out_sds,)),
    )(*in3)

    return out.reshape(N, Ho, Wo, Cpout)[:, :, :, :Cout]


# ---------------- pure-JAX reference (for correctness check) ------------------
def _bn_ref(x, g, b):
    mean = jnp.mean(x, axis=(0, 1, 2), keepdims=True)
    var = jnp.mean((x - mean) ** 2, axis=(0, 1, 2), keepdims=True)
    return (x - mean) * lax.rsqrt(var + EPS) * g.reshape(1, 1, 1, -1) + b.reshape(1, 1, 1, -1)


def ref_basic_block(x, params, stride):
    dn = ("NHWC", "HWIO", "NHWC")
    Cin, Cout = x.shape[-1], params["w1"].shape[-1]
    o = lax.conv_general_dilated(x, params["w1"], (stride, stride),
                                 ((1, 1), (1, 1)), dimension_numbers=dn)
    o = jnp.maximum(_bn_ref(o, params["g1"], params["b1"]), 0.0)
    o = lax.conv_general_dilated(o, params["w2"], (1, 1),
                                 ((1, 1), (1, 1)), dimension_numbers=dn)
    o = _bn_ref(o, params["g2"], params["b2"])
    if stride != 1 or Cin != Cout:
        sc = lax.conv_general_dilated(x, params["ws"], (stride, stride),
                                      ((0, 0), (0, 0)), dimension_numbers=dn)
        sc = _bn_ref(sc, params["gs"], params["bs"])
    else:
        sc = x
    return jnp.maximum(o + sc, 0.0)


def init_params(key, in_planes, planes, stride):
    ks = jax.random.split(key, 9)
    p = {
        "w1": 0.2 * jax.random.normal(ks[0], (3, 3, in_planes, planes), jnp.float32),
        "g1": 1.0 + 0.1 * jax.random.normal(ks[1], (1, planes), jnp.float32),
        "b1": 0.1 * jax.random.normal(ks[2], (1, planes), jnp.float32),
        "w2": 0.2 * jax.random.normal(ks[3], (3, 3, planes, planes), jnp.float32),
        "g2": 1.0 + 0.1 * jax.random.normal(ks[4], (1, planes), jnp.float32),
        "b2": 0.1 * jax.random.normal(ks[5], (1, planes), jnp.float32),
    }
    if stride != 1 or in_planes != planes:
        p["ws"] = 0.2 * jax.random.normal(ks[6], (1, 1, in_planes, planes), jnp.float32)
        p["gs"] = 1.0 + 0.1 * jax.random.normal(ks[7], (1, planes), jnp.float32)
        p["bs"] = 0.1 * jax.random.normal(ks[8], (1, planes), jnp.float32)
    return p


if __name__ == "__main__":
    key = jax.random.PRNGKey(0)
    kx, kp1, kp2 = jax.random.split(key, 3)
    ok = True

    # Case 1: projection shortcut (in_planes=4, planes=8, stride=2)
    N, Cin, H, W, planes, stride = 2, 4, 16, 16, 8, 2
    x_nchw = jax.random.normal(kx, (N, Cin, H, W), jnp.float32)
    x = jnp.transpose(x_nchw, (0, 2, 3, 1))                 # NCHW -> NHWC
    params = init_params(kp1, Cin, planes, stride)
    out = jax.block_until_ready(basic_block(x, params, stride=stride))
    ref = ref_basic_block(x, params, stride)
    err1 = float(jnp.max(jnp.abs(out - ref)))
    ok = ok and (out.shape == ref.shape) and (err1 < 5e-2)

    # Case 2: identity shortcut (in_planes=planes=8, stride=1)
    N2, C2, H2, W2 = 2, 8, 8, 8
    x2 = jnp.transpose(jax.random.normal(kx, (N2, C2, H2, W2), jnp.float32),
                       (0, 2, 3, 1))
    params2 = init_params(kp2, C2, C2, 1)
    out2 = jax.block_until_ready(basic_block(x2, params2, stride=1))
    ref2 = ref_basic_block(x2, params2, 1)
    err2 = float(jnp.max(jnp.abs(out2 - ref2)))
    ok = ok and (out2.shape == ref2.shape) and (err2 < 5e-2)

    if ok:
        print("KERNEL_OK")
    else:
        print("MISMATCH", err1, err2)
</pallas_src>

<mosaic_0001>
module attributes {stable_mosaic.version = 11 : i64} {
  func.func @kernel(%arg0: i32, %arg1: memref<2x40x10x128xf32, #tpu.memory_space<vmem>>, %arg2: memref<1152x128xbf16, #tpu.memory_space<vmem>>, %arg3: memref<128x128xbf16, #tpu.memory_space<vmem>>, %arg4: memref<2x64x128xbf16, #tpu.memory_space<vmem>>, %arg5: memref<1x2x128xf32, #tpu.memory_space<vmem>>, %arg6: memref<2x64x128xbf16, #tpu.memory_space<vmem>>, %arg7: memref<1x2x128xf32, #tpu.memory_space<vmem>>) attributes {dimension_semantics = [#tpu.dimension_semantics<parallel>], iteration_bounds = array<i64: 1>, scalar_prefetch = 0 : i64, scratch_operands = 0 : i64, tpu.core_type = #tpu.core_type<tc>, window_params = [{transform_indices = @transform_0, window_bounds = array<i64: 2, 40, 10, 128>}, {pipeline_mode = #tpu.pipeline_mode<synchronous>, transform_indices = @transform_1, window_bounds = array<i64: 1152, 128>}, {pipeline_mode = #tpu.pipeline_mode<synchronous>, transform_indices = @transform_2, window_bounds = array<i64: 128, 128>}, {transform_indices = @transform_3, window_bounds = array<i64: 2, 64, 128>}, {transform_indices = @transform_4, window_bounds = array<i64: 1, 2, 128>}, {transform_indices = @transform_5, window_bounds = array<i64: 2, 64, 128>}, {transform_indices = @transform_6, window_bounds = array<i64: 1, 2, 128>}]} {
    %cst = arith.constant 0.000000e+00 : f32
    %0 = vector.broadcast %cst : f32 to vector<128x128xf32>
    %c0 = arith.constant 0 : index
    %c0_0 = arith.constant 0 : index
    %c0_1 = arith.constant 0 : index
    %c0_2 = arith.constant 0 : index
    %1 = vector.load %arg1[%c0, %c0_0, %c0_1, %c0_2] : memref<2x40x10x128xf32, #tpu.memory_space<vmem>>, vector<2x8x8x128xf32>
    %2 = vector.shape_cast %1 : vector<2x8x8x128xf32> to vector<128x128xf32>
    %3 = arith.truncf %2 : vector<128x128xf32> to vector<128x128xbf16>
    %c0_3 = arith.constant 0 : index
    %c0_4 = arith.constant 0 : index
    %4 = vector.load %arg2[%c0_3, %c0_4] : memref<1152x128xbf16, #tpu.memory_space<vmem>>, vector<128x128xbf16>
    %cst_5 = arith.constant dense<0.000000e+00> : vector<128x128xf32>
    %5 = tpu.matmul %3, %4, %cst_5 {dimension_numbers = #tpu.dot_dimension_numbers<[1], [0], [0], [1], [0, 0, 1, 1], [], []>} : vector<128x128xbf16>, vector<128x128xbf16>, vector<128x128xf32> -> vector<128x128xf32>
    %6 = arith.addf %0, %5 : vector<128x128xf32>
    %c0_6 = arith.constant 0 : index
    %c10 = arith.constant 10 : index
    %c0_7 = arith.constant 0 : index
    %c0_8 = arith.constant 0 : index
    %7 = vector.load %arg1[%c0_6, %c10, %c0_7, %c0_8] : memref<2x40x10x128xf32, #tpu.memory_space<vmem>>, vector<2x8x8x128xf32>
    %8 = vector.shape_cast %7 : vector<2x8x8x128xf32> to vector<128x128xf32>
    %9 = arith.truncf %8 : vector<128x128xf32> to vector<128x128xbf16>
    %c128 = arith.constant 128 : index
    %c0_9 = arith.constant 0 : index
    %10 = vector.load %arg2[%c128, %c0_9] : memref<1152x128xbf16, #tpu.memory_space<vmem>>, vector<128x128xbf16>
    %cst_10 = arith.constant dense<0.000000e+00> : vector<128x128xf32>
    %11 = tpu.matmul %9, %10, %cst_10 {dimension_numbers = #tpu.dot_dimension_numbers<[1], [0], [0], [1], [0, 0, 1, 1], [], []>} : vector<128x128xbf16>, vector<128x128xbf16>, vector<128x128xf32> -> vector<128x128xf32>
    %12 = arith.addf %6, %11 : vector<128x128xf32>
    %c0_11 = arith.constant 0 : index
    %c0_12 = arith.constant 0 : index
    %c1 = arith.constant 1 : index
    %c0_13 = arith.constant 0 : index
    %13 = vector.load %arg1[%c0_11, %c0_12, %c1, %c0_13] : memref<2x40x10x128xf32, #tpu.memory_space<vmem>>, vector<2x8x8x128xf32>
    %14 = vector.shape_cast %13 : vector<2x8x8x128xf32> to vector<128x128xf32>
    %15 = arith.truncf %14 : vector<128x128xf32> to vector<128x128xbf16>
    %c256 = arith.constant 256 : index
    %c0_14 = arith.constant 0 : index
    %16 = vector.load %arg2[%c256, %c0_14] : memref<1152x128xbf16, #tpu.memory_space<vmem>>, vector<128x128xbf16>
    %cst_15 = arith.constant dense<0.000000e+00> : vector<128x128xf32>
    %17 = tpu.matmul %15, %16, %cst_15 {dimension_numbers = #tpu.dot_dimension_numbers<[1], [0], [0], [1], [0, 0, 1, 1], [], []>} : vector<128x128xbf16>, vector<128x128xbf16>, vector<128x128xf32> -> vector<128x128xf32>
    %18 = arith.addf %12, %17 : vector<128x128xf32>
    %c0_16 = arith.constant 0 : index
    %c20 = arith.constant 20 : index
    %c0_17 = arith.constant 0 : index
    %c0_18 = arith.constant 0 : index
    %19 = vector.load %arg1[%c0_16, %c20, %c0_17, %c0_18] : memref<2x40x10x128xf32, #tpu.memory_space<vmem>>, vector<2x8x8x128xf32>
    %20 = vector.shape_cast %19 : vector<2x8x8x128xf32> to vector<128x128xf32>
    %21 = arith.truncf %20 : vector<128x128xf32> to vector<128x128xbf16>
    %c384 = arith.constant 384 : index
    %c0_19 = arith.constant 0 : index
    %22 = vector.load %arg2[%c384, %c0_19] : memref<1152x128xbf16, #tpu.memory_space<vmem>>, vector<128x128xbf16>
    %cst_20 = arith.constant dense<0.000000e+00> : vector<128x128xf32>
    %23 = tpu.matmul %21, %22, %cst_20 {dimension_numbers = #tpu.dot_dimension_numbers<[1], [0], [0], [1], [0, 0, 1, 1], [], []>} : vector<128x128xbf16>, vector<128x128xbf16>, vector<128x128xf32> -> vector<128x128xf32>
    %24 = arith.addf %18, %23 : vector<128x128xf32>
    %c0_21 = arith.constant 0 : index
    %c30 = arith.constant 30 : index
    %c0_22 = arith.constant 0 : index
    %c0_23 = arith.constant 0 : index
    %25 = vector.load %arg1[%c0_21, %c30, %c0_22, %c0_23] : memref<2x40x10x128xf32, #tpu.memory_space<vmem>>, vector<2x8x8x128xf32>
    %26 = vector.shape_cast %25 : vector<2x8x8x128xf32> to vector<128x128xf32>
    %27 = arith.truncf %26 : vector<128x128xf32> to vector<128x128xbf16>
    %c512 = arith.constant 512 : index
    %c0_24 = arith.constant 0 : index
    %28 = vector.load %arg2[%c512, %c0_24] : memref<1152x128xbf16, #tpu.memory_space<vmem>>, vector<128x128xbf16>
    %cst_25 = arith.constant dense<0.000000e+00> : vector<128x128xf32>
    %29 = tpu.matmul %27, %28, %cst_25 {dimension_numbers = #tpu.dot_dimension_numbers<[1], [0], [0], [1], [0, 0, 1, 1], [], []>} : vector<128x128xbf16>, vector<128x128xbf16>, vector<128x128xf32> -> vector<128x128xf32>
    %30 = arith.addf %24, %29 : vector<128x128xf32>
    %c0_26 = arith.constant 0 : index
    %c20_27 = arith.constant 20 : index
    %c1_28 = arith.constant 1 : index
    %c0_29 = arith.constant 0 : index
    %31 = vector.load %arg1[%c0_26, %c20_27, %c1_28, %c0_29] : memref<2x40x10x128xf32, #tpu.memory_space<vmem>>, vector<2x8x8x128xf32>
    %32 = vector.shape_cast %31 : vector<2x8x8x128xf32> to vector<128x128xf32>
    %33 = arith.truncf %32 : vector<128x128xf32> to vector<128x128xbf16>
    %c640 = arith.constant 640 : index
    %c0_30 = arith.constant 0 : index
    %34 = vector.load %arg2[%c640, %c0_30] : memref<1152x128xbf16, #tpu.memory_space<vmem>>, vector<128x128xbf16>
    %cst_31 = arith.constant dense<0.000000e+00> : vector<128x128xf32>
    %35 = tpu.matmul %33, %34, %cst_31 {dimension_numbers = #tpu.dot_dimension_numbers<[1], [0], [0], [1], [0, 0, 1, 1], [], []>} : vector<128x128xbf16>, vector<128x128xbf16>, vector<128x128xf32> -> vector<128x128xf32>
    %36 = arith.addf %30, %35 : vector<128x128xf32>
    %c0_32 = arith.constant 0 : index
    %c1_33 = arith.constant 1 : index
    %c0_34 = arith.constant 0 : index
    %c0_35 = arith.constant 0 : index
    %37 = vector.load %arg1[%c0_32, %c1_33, %c0_34, %c0_35] : memref<2x40x10x128xf32, #tpu.memory_space<vmem>>, vector<2x8x8x128xf32>
    %38 = vector.shape_cast %37 : vector<2x8x8x128xf32> to vector<128x128xf32>
    %39 = arith.truncf %38 : vector<128x128xf32> to vector<128x128xbf16>
    %c768 = arith.constant 768 : index
    %c0_36 = arith.constant 0 : index
    %40 = vector.load %arg2[%c768, %c0_36] : memref<1152x128xbf16, #tpu.memory_space<vmem>>, vector<128x128xbf16>
    %cst_37 = arith.constant dense<0.000000e+00> : vector<128x128xf32>
    %41 = tpu.matmul %39, %40, %cst_37 {dimension_numbers = #tpu.dot_dimension_numbers<[1], [0], [0], [1], [0, 0, 1, 1], [], []>} : vector<128x128xbf16>, vector<128x128xbf16>, vector<128x128xf32> -> vector<128x128xf32>
    %42 = arith.addf %36, %41 : vector<128x128xf32>
    %c0_38 = arith.constant 0 : index
    %c11 = arith.constant 11 : index
    %c0_39 = arith.constant 0 : index
    %c0_40 = arith.constant 0 : index
    %43 = vector.load %arg1[%c0_38, %c11, %c0_39, %c0_40] : memref<2x40x10x128xf32, #tpu.memory_space<vmem>>, vector<2x8x8x128xf32>
    %44 = vector.shape_cast %43 : vector<2x8x8x128xf32> to vector<128x128xf32>
    %45 = arith.truncf %44 : vector<128x128xf32> to vector<128x128xbf16>
    %c896 = arith.constant 896 : index
    %c0_41 = arith.constant 0 : index
    %46 = vector.load %arg2[%c896, %c0_41] : memref<1152x128xbf16, #tpu.memory_space<vmem>>, vector<128x128xbf16>
    %cst_42 = arith.constant dense<0.000000e+00> : vector<128x128xf32>
    %47 = tpu.matmul %45, %46, %cst_42 {dimension_numbers = #tpu.dot_dimension_numbers<[1], [0], [0], [1], [0, 0, 1, 1], [], []>} : vector<128x128xbf16>, vector<128x128xbf16>, vector<128x128xf32> -> vector<128x128xf32>
    %48 = arith.addf %42, %47 : vector<128x128xf32>
    %c0_43 = arith.constant 0 : index
    %c1_44 = arith.constant 1 : index
    %c1_45 = arith.constant 1 : index
    %c0_46 = arith.constant 0 : index
    %49 = vector.load %arg1[%c0_43, %c1_44, %c1_45, %c0_46] : memref<2x40x10x128xf32, #tpu.memory_space<vmem>>, vector<2x8x8x128xf32>
    %50 = vector.shape_cast %49 : vector<2x8x8x128xf32> to vector<128x128xf32>
    %51 = arith.truncf %50 : vector<128x128xf32> to vector<128x128xbf16>
    %c1024 = arith.constant 1024 : index
    %c0_47 = arith.constant 0 : index
    %52 = vector.load %arg2[%c1024, %c0_47] : memref<1152x128xbf16, #tpu.memory_space<vmem>>, vector<128x128xbf16>
    %cst_48 = arith.constant dense<0.000000e+00> : vector<128x128xf32>
    %53 = tpu.matmul %51, %52, %cst_48 {dimension_numbers = #tpu.dot_dimension_numbers<[1], [0], [0], [1], [0, 0, 1, 1], [], []>} : vector<128x128xbf16>, vector<128x128xbf16>, vector<128x128xf32> -> vector<128x128xf32>
    %54 = arith.addf %48, %53 : vector<128x128xf32>
    %55 = vector.shape_cast %54 : vector<128x128xf32> to vector<2x64x128xf32>
    %56 = arith.truncf %55 : vector<2x64x128xf32> to vector<2x64x128xbf16>
    %c0_49 = arith.constant 0 : index
    %c0_50 = arith.constant 0 : index
    %c0_51 = arith.constant 0 : index
    %57 = vector.load %arg4[%c0_49, %c0_50, %c0_51] : memref<2x64x128xbf16, #tpu.memory_space<vmem>>, vector<2x64x128xbf16>
    tpu.vector_store %arg4[%c0_49, %c0_50, %c0_51], %56 {strides = array<i32>} : memref<2x64x128xbf16, #tpu.memory_space<vmem>>, vector<2x64x128xbf16>,
    %cst_52 = arith.constant dense<0.000000e+00> : vector<128xf32>
    %58 = vector.multi_reduction <add>, %54, %cst_52 [0] : vector<128x128xf32> to vector<128xf32>
    %59 = vector.shape_cast %58 : vector<128xf32> to vector<1x128xf32>
    %60 = arith.mulf %54, %54 : vector<128x128xf32>
    %cst_53 = arith.constant dense<0.000000e+00> : vector<128xf32>
    %61 = vector.multi_reduction <add>, %60, %cst_53 [0] : vector<128x128xf32> to vector<128xf32>
    %62 = vector.shape_cast %61 : vector<128xf32> to vector<1x128xf32>
    %63 = tpu.concatenate %59, %62 in 0 : vector<1x128xf32>, vector<1x128xf32> -> vector<2x128xf32>
    %c0_54 = arith.constant 0 : index
    %c0_55 = arith.constant 0 : index
    %c0_56 = arith.constant 0 : index
    %64 = vector.load %arg5[%c0_54, %c0_55, %c0_56] : memref<1x2x128xf32, #tpu.memory_space<vmem>>, vector<1x2x128xf32>
    %65 = vector.shape_cast %64 : vector<1x2x128xf32> to vector<2x128xf32>
    %66 = vector.shape_cast %63 : vector<2x128xf32> to vector<1x2x128xf32>
    tpu.vector_store %arg5[%c0_54, %c0_55, %c0_56], %66 {strides = array<i32>} : memref<1x2x128xf32, #tpu.memory_space<vmem>>, vector<1x2x128xf32>,
    %c0_57 = arith.constant 0 : index
    %c30_58 = arith.constant 30 : index
    %c0_59 = arith.constant 0 : index
    %c0_60 = arith.constant 0 : index
    %67 = vector.load %arg1[%c0_57, %c30_58, %c0_59, %c0_60] : memref<2x40x10x128xf32, #tpu.memory_space<vmem>>, vector<2x8x8x128xf32>
    %68 = vector.shape_cast %67 : vector<2x8x8x128xf32> to vector<128x128xf32>
    %69 = arith.truncf %68 : vector<128x128xf32> to vector<128x128xbf16>
    %c0_61 = arith.constant 0 : index
    %c0_62 = arith.constant 0 : index
    %70 = vector.load %arg3[%c0_61, %c0_62] : memref<128x128xbf16, #tpu.memory_space<vmem>>, vector<128x128xbf16>
    %cst_63 = arith.constant dense<0.000000e+00> : vector<128x128xf32>
    %71 = tpu.matmul %69, %70, %cst_63 {dimension_numbers = #tpu.dot_dimension_numbers<[1], [0], [0], [1], [0, 0, 1, 1], [], []>} : vector<128x128xbf16>, vector<128x128xbf16>, vector<128x128xf32> -> vector<128x128xf32>
    %72 = vector.shape_cast %71 : vector<128x128xf32> to vector<2x64x128xf32>
    %73 = arith.truncf %72 : vector<2x64x128xf32> to vector<2x64x128xbf16>
    %c0_64 = arith.constant 0 : index
    %c0_65 = arith.constant 0 : index
    %c0_66 = arith.constant 0 : index
    %74 = vector.load %arg6[%c0_64, %c0_65, %c0_66] : memref<2x64x128xbf16, #tpu.memory_space<vmem>>, vector<2x64x128xbf16>
    tpu.vector_store %arg6[%c0_64, %c0_65, %c0_66], %73 {strides = array<i32>} : memref<2x64x128xbf16, #tpu.memory_space<vmem>>, vector<2x64x128xbf16>,
    %cst_67 = arith.constant dense<0.000000e+00> : vector<128xf32>
    %75 = vector.multi_reduction <add>, %71, %cst_67 [0] : vector<128x128xf32> to vector<128xf32>
    %76 = vector.shape_cast %75 : vector<128xf32> to vector<1x128xf32>
    %77 = arith.mulf %71, %71 : vector<128x128xf32>
    %cst_68 = arith.constant dense<0.000000e+00> : vector<128xf32>
    %78 = vector.multi_reduction <add>, %77, %cst_68 [0] : vector<128x128xf32> to vector<128xf32>
    %79 = vector.shape_cast %78 : vector<128xf32> to vector<1x128xf32>
    %80 = tpu.concatenate %76, %79 in 0 : vector<1x128xf32>, vector<1x128xf32> -> vector<2x128xf32>
    %c0_69 = arith.constant 0 : index
    %c0_70 = arith.constant 0 : index
    %c0_71 = arith.constant 0 : index
    %81 = vector.load %arg7[%c0_69, %c0_70, %c0_71] : memref<1x2x128xf32, #tpu.memory_space<vmem>>, vector<1x2x128xf32>
    %82 = vector.shape_cast %81 : vector<1x2x128xf32> to vector<2x128xf32>
    %83 = vector.shape_cast %80 : vector<2x128xf32> to vector<1x2x128xf32>
    tpu.vector_store %arg7[%c0_69, %c0_70, %c0_71], %83 {strides = array<i32>} : memref<1x2x128xf32, #tpu.memory_space<vmem>>, vector<1x2x128xf32>,
    return
  }
  func.func @transform_0(%arg0: i32) -> (i32, i32, i32, i32) {
    %c0_i32 = arith.constant 0 : i32
    %c0_i32_0 = arith.constant 0 : i32
    %c0_i32_1 = arith.constant 0 : i32
    %c0_i32_2 = arith.constant 0 : i32
    return %arg0, %c0_i32, %c0_i32_0, %c0_i32_1 : i32, i32, i32, i32
  }
  func.func @transform_1(%arg0: i32) -> (i32, i32) {
    %c0_i32 = arith.constant 0 : i32
    %c0_i32_0 = arith.constant 0 : i32
    %c0_i32_1 = arith.constant 0 : i32
    return %c0_i32, %c0_i32_0 : i32, i32
  }
  func.func @transform_2(%arg0: i32) -> (i32, i32) {
    %c0_i32 = arith.constant 0 : i32
    %c0_i32_0 = arith.constant 0 : i32
    %c0_i32_1 = arith.constant 0 : i32
    return %c0_i32, %c0_i32_0 : i32, i32
  }
  func.func @transform_3(%arg0: i32) -> (i32, i32, i32) {
    %c0_i32 = arith.constant 0 : i32
    %c0_i32_0 = arith.constant 0 : i32
    %c0_i32_1 = arith.constant 0 : i32
    return %arg0, %c0_i32, %c0_i32_0 : i32, i32, i32
  }
  func.func @transform_4(%arg0: i32) -> (i32, i32, i32) {
    %c0_i32 = arith.constant 0 : i32
    %c0_i32_0 = arith.constant 0 : i32
    %c0_i32_1 = arith.constant 0 : i32
    return %arg0, %c0_i32, %c0_i32_0 : i32, i32, i32
  }
  func.func @transform_5(%arg0: i32) -> (i32, i32, i32) {
    %c0_i32 = arith.constant 0 : i32
    %c0_i32_0 = arith.constant 0 : i32
    %c0_i32_1 = arith.constant 0 : i32
    return %arg0, %c0_i32, %c0_i32_0 : i32, i32, i32
  }
  func.func @transform_6(%arg0: i32) -> (i32, i32, i32) {
    %c0_i32 = arith.constant 0 : i32
    %c0_i32_0 = arith.constant 0 : i32
    %c0_i32_1 = arith.constant 0 : i32
    return %arg0, %c0_i32, %c0_i32_0 : i32, i32, i32
  }
}

module attributes {stable_mosaic.version = 11 : i64} {
  func.func @kernel(%arg0: i32, %arg1: memref<2x64x128xbf16, #tpu.memory_space<vmem>>, %arg2: memref<1x128xf32, #tpu.memory_space<vmem>>, %arg3: memref<1x128xf32, #tpu.memory_space<vmem>>, %arg4: memref<1152x128xbf16, #tpu.memory_space<vmem>>, %arg5: memref<2x64x128xbf16, #tpu.memory_space<vmem>>, %arg6: memref<1x2x128xf32, #tpu.memory_space<vmem>>, %arg7: memref<2x10x10x128xf32, #tpu.memory_space<vmem>>) attributes {dimension_semantics = [#tpu.dimension_semantics<parallel>], iteration_bounds = array<i64: 1>, scalar_prefetch = 0 : i64, scratch_operands = 1 : i64, tpu.core_type = #tpu.core_type<tc>, window_params = [{transform_indices = @transform_0, window_bounds = array<i64: 2, 64, 128>}, {pipeline_mode = #tpu.pipeline_mode<synchronous>, transform_indices = @transform_1, window_bounds = array<i64: 1, 128>}, {pipeline_mode = #tpu.pipeline_mode<synchronous>, transform_indices = @transform_2, window_bounds = array<i64: 1, 128>}, {pipeline_mode = #tpu.pipeline_mode<synchronous>, transform_indices = @transform_3, window_bounds = array<i64: 1152, 128>}, {transform_indices = @transform_4, window_bounds = array<i64: 2, 64, 128>}, {transform_indices = @transform_5, window_bounds = array<i64: 1, 2, 128>}]} {
    %cst = arith.constant 0.000000e+00 : f32
    %0 = vector.broadcast %cst : f32 to vector<2x1x10x128xf32>
    %cst_0 = arith.constant 0.000000e+00 : f32
    %1 = vector.broadcast %cst_0 : f32 to vector<2x10x1x128xf32>
    %c0 = arith.constant 0 : index
    %c0_1 = arith.constant 0 : index
    %c0_2 = arith.constant 0 : index
    %c0_3 = arith.constant 0 : index
    %2 = vector.load %arg7[%c0, %c0_1, %c0_2, %c0_3] : memref<2x10x10x128xf32, #tpu.memory_space<vmem>>, vector<2x1x10x128xf32>
    tpu.vector_store %arg7[%c0, %c0_1, %c0_2, %c0_3], %0 {strides = array<i32>} : memref<2x10x10x128xf32, #tpu.memory_space<vmem>>, vector<2x1x10x128xf32>,
    %c0_4 = arith.constant 0 : index
    %c9 = arith.constant 9 : index
    %c0_5 = arith.constant 0 : index
    %c0_6 = arith.constant 0 : index
    %3 = vector.load %arg7[%c0_4, %c9, %c0_5, %c0_6] : memref<2x10x10x128xf32, #tpu.memory_space<vmem>>, vector<2x1x10x128xf32>
    tpu.vector_store %arg7[%c0_4, %c9, %c0_5, %c0_6], %0 {strides = array<i32>} : memref<2x10x10x128xf32, #tpu.memory_space<vmem>>, vector<2x1x10x128xf32>,
    %c0_7 = arith.constant 0 : index
    %c0_8 = arith.constant 0 : index
    %c0_9 = arith.constant 0 : index
    %c0_10 = arith.constant 0 : index
    %4 = vector.load %arg7[%c0_7, %c0_8, %c0_9, %c0_10] : memref<2x10x10x128xf32, #tpu.memory_space<vmem>>, vector<2x10x1x128xf32>
    tpu.vector_store %arg7[%c0_7, %c0_8, %c0_9, %c0_10], %1 {strides = array<i32>} : memref<2x10x10x128xf32, #tpu.memory_space<vmem>>, vector<2x10x1x128xf32>,
    %c0_11 = arith.constant 0 : index
    %c0_12 = arith.constant 0 : index
    %c9_13 = arith.constant 9 : index
    %c0_14 = arith.constant 0 : index
    %5 = vector.load %arg7[%c0_11, %c0_12, %c9_13, %c0_14] : memref<2x10x10x128xf32, #tpu.memory_space<vmem>>, vector<2x10x1x128xf32>
    tpu.vector_store %arg7[%c0_11, %c0_12, %c9_13, %c0_14], %1 {strides = array<i32>} : memref<2x10x10x128xf32, #tpu.memory_space<vmem>>, vector<2x10x1x128xf32>,
    %c0_15 = arith.constant 0 : index
    %c0_16 = arith.constant 0 : index
    %c0_17 = arith.constant 0 : index
    %6 = vector.load %arg1[%c0_15, %c0_16, %c0_17] : memref<2x64x128xbf16, #tpu.memory_space<vmem>>, vector<2x64x128xbf16>
    %7 = arith.extf %6 : vector<2x64x128xbf16> to vector<2x64x128xf32>
    %c0_18 = arith.constant 0 : index
    %c0_19 = arith.constant 0 : index
    %8 = vector.load %arg2[%c0_18, %c0_19] : memref<1x128xf32, #tpu.memory_space<vmem>>, vector<1x128xf32>
    %9 = vector.shape_cast %8 : vector<1x128xf32> to vector<1x1x128xf32>
    %10 = vector.broadcast %9 : vector<1x1x128xf32> to vector<2x64x128xf32>
    %11 = arith.mulf %7, %10 : vector<2x64x128xf32>
    %c0_20 = arith.constant 0 : index
    %c0_21 = arith.constant 0 : index
    %12 = vector.load %arg3[%c0_20, %c0_21] : memref<1x128xf32, #tpu.memory_space<vmem>>, vector<1x128xf32>
    %13 = vector.shape_cast %12 : vector<1x128xf32> to vector<1x1x128xf32>
    %14 = vector.broadcast %13 : vector<1x1x128xf32> to vector<2x64x128xf32>
    %15 = arith.addf %11, %14 : vector<2x64x128xf32>
    %cst_22 = arith.constant 0.000000e+00 : f32
    %16 = vector.broadcast %cst_22 : f32 to vector<2x64x128xf32>
    %17 = arith.maximumf %15, %16 : vector<2x64x128xf32>
    %18 = vector.shape_cast %17 : vector<2x64x128xf32> to vector<2x8x8x128xf32>
    %c0_23 = arith.constant 0 : index
    %c1 = arith.constant 1 : index
    %c1_24 = arith.constant 1 : index
    %c0_25 = arith.constant 0 : index
    %19 = vector.load %arg7[%c0_23, %c1, %c1_24, %c0_25] : memref<2x10x10x128xf32, #tpu.memory_space<vmem>>, vector<2x8x8x128xf32>
    tpu.vector_store %arg7[%c0_23, %c1, %c1_24, %c0_25], %18 {strides = array<i32>} : memref<2x10x10x128xf32, #tpu.memory_space<vmem>>, vector<2x8x8x128xf32>,
    %cst_26 = arith.constant 0.000000e+00 : f32
    %20 = vector.broadcast %cst_26 : f32 to vector<128x128xf32>
    %c0_27 = arith.constant 0 : index
    %c0_28 = arith.constant 0 : index
    %c0_29 = arith.constant 0 : index
    %c0_30 = arith.constant 0 : index
    %21 = vector.load %arg7[%c0_27, %c0_28, %c0_29, %c0_30] : memref<2x10x10x128xf32, #tpu.memory_space<vmem>>, vector<2x8x8x128xf32>
    %22 = vector.shape_cast %21 : vector<2x8x8x128xf32> to vector<128x128xf32>
    %23 = arith.truncf %22 : vector<128x128xf32> to vector<128x128xbf16>
    %c0_31 = arith.constant 0 : index
    %c0_32 = arith.constant 0 : index
    %24 = vector.load %arg4[%c0_31, %c0_32] : memref<1152x128xbf16, #tpu.memory_space<vmem>>, vector<128x128xbf16>
    %cst_33 = arith.constant dense<0.000000e+00> : vector<128x128xf32>
    %25 = tpu.matmul %23, %24, %cst_33 {dimension_numbers = #tpu.dot_dimension_numbers<[1], [0], [0], [1], [0, 0, 1, 1], [], []>} : vector<128x128xbf16>, vector<128x128xbf16>, vector<128x128xf32> -> vector<128x128xf32>
    %26 = arith.addf %20, %25 : vector<128x128xf32>
    %c0_34 = arith.constant 0 : index
    %c0_35 = arith.constant 0 : index
    %c1_36 = arith.constant 1 : index
    %c0_37 = arith.constant 0 : index
    %27 = vector.load %arg7[%c0_34, %c0_35, %c1_36, %c0_37] : memref<2x10x10x128xf32, #tpu.memory_space<vmem>>, vector<2x8x8x128xf32>
    %28 = vector.shape_cast %27 : vector<2x8x8x128xf32> to vector<128x128xf32>
    %29 = arith.truncf %28 : vector<128x128xf32> to vector<128x128xbf16>
    %c128 = arith.constant 128 : index
    %c0_38 = arith.constant 0 : index
    %30 = vector.load %arg4[%c128, %c0_38] : memref<1152x128xbf16, #tpu.memory_space<vmem>>, vector<128x128xbf16>
    %cst_39 = arith.constant dense<0.000000e+00> : vector<128x128xf32>
    %31 = tpu.matmul %29, %30, %cst_39 {dimension_numbers = #tpu.dot_dimension_numbers<[1], [0], [0], [1], [0, 0, 1, 1], [], []>} : vector<128x128xbf16>, vector<128x128xbf16>, vector<128x128xf32> -> vector<128x128xf32>
    %32 = arith.addf %26, %31 : vector<128x128xf32>
    %c0_40 = arith.constant 0 : index
    %c0_41 = arith.constant 0 : index
    %c2 = arith.constant 2 : index
    %c0_42 = arith.constant 0 : index
    %33 = vector.load %arg7[%c0_40, %c0_41, %c2, %c0_42] : memref<2x10x10x128xf32, #tpu.memory_space<vmem>>, vector<2x8x8x128xf32>
    %34 = vector.shape_cast %33 : vector<2x8x8x128xf32> to vector<128x128xf32>
    %35 = arith.truncf %34 : vector<128x128xf32> to vector<128x128xbf16>
    %c256 = arith.constant 256 : index
    %c0_43 = arith.constant 0 : index
    %36 = vector.load %arg4[%c256, %c0_43] : memref<1152x128xbf16, #tpu.memory_space<vmem>>, vector<128x128xbf16>
    %cst_44 = arith.constant dense<0.000000e+00> : vector<128x128xf32>
    %37 = tpu.matmul %35, %36, %cst_44 {dimension_numbers = #tpu.dot_dimension_numbers<[1], [0], [0], [1], [0, 0, 1, 1], [], []>} : vector<128x128xbf16>, vector<128x128xbf16>, vector<128x128xf32> -> vector<128x128xf32>
    %38 = arith.addf %32, %37 : vector<128x128xf32>
    %c0_45 = arith.constant 0 : index
    %c1_46 = arith.constant 1 : index
    %c0_47 = arith.constant 0 : index
    %c0_48 = arith.constant 0 : index
    %39 = vector.load %arg7[%c0_45, %c1_46, %c0_47, %c0_48] : memref<2x10x10x128xf32, #tpu.memory_space<vmem>>, vector<2x8x8x128xf32>
    %40 = vector.shape_cast %39 : vector<2x8x8x128xf32> to vector<128x128xf32>
    %41 = arith.truncf %40 : vector<128x128xf32> to vector<128x128xbf16>
    %c384 = arith.constant 384 : index
    %c0_49 = arith.constant 0 : index
    %42 = vector.load %arg4[%c384, %c0_49] : memref<1152x128xbf16, #tpu.memory_space<vmem>>, vector<128x128xbf16>
    %cst_50 = arith.constant dense<0.000000e+00> : vector<128x128xf32>
    %43 = tpu.matmul %41, %42, %cst_50 {dimension_numbers = #tpu.dot_dimension_numbers<[1], [0], [0], [1], [0, 0, 1, 1], [], []>} : vector<128x128xbf16>, vector<128x128xbf16>, vector<128x128xf32> -> vector<128x128xf32>
    %44 = arith.addf %38, %43 : vector<128x128xf32>
    %c0_51 = arith.constant 0 : index
    %c1_52 = arith.constant 1 : index
    %c1_53 = arith.constant 1 : index
    %c0_54 = arith.constant 0 : index
    %45 = vector.load %arg7[%c0_51, %c1_52, %c1_53, %c0_54] : memref<2x10x10x128xf32, #tpu.memory_space<vmem>>, vector<2x8x8x128xf32>
    %46 = vector.shape_cast %45 : vector<2x8x8x128xf32> to vector<128x128xf32>
    %47 = arith.truncf %46 : vector<128x128xf32> to vector<128x128xbf16>
    %c512 = arith.constant 512 : index
    %c0_55 = arith.constant 0 : index
    %48 = vector.load %arg4[%c512, %c0_55] : memref<1152x128xbf16, #tpu.memory_space<vmem>>, vector<128x128xbf16>
    %cst_56 = arith.constant dense<0.000000e+00> : vector<128x128xf32>
    %49 = tpu.matmul %47, %48, %cst_56 {dimension_numbers = #tpu.dot_dimension_numbers<[1], [0], [0], [1], [0, 0, 1, 1], [], []>} : vector<128x128xbf16>, vector<128x128xbf16>, vector<128x128xf32> -> vector<128x128xf32>
    %50 = arith.addf %44, %49 : vector<128x128xf32>
    %c0_57 = arith.constant 0 : index
    %c1_58 = arith.constant 1 : index
    %c2_59 = arith.constant 2 : index
    %c0_60 = arith.constant 0 : index
    %51 = vector.load %arg7[%c0_57, %c1_58, %c2_59, %c0_60] : memref<2x10x10x128xf32, #tpu.memory_space<vmem>>, vector<2x8x8x128xf32>
    %52 = vector.shape_cast %51 : vector<2x8x8x128xf32> to vector<128x128xf32>
    %53 = arith.truncf %52 : vector<128x128xf32> to vector<128x128xbf16>
    %c640 = arith.constant 640 : index
    %c0_61 = arith.constant 0 : index
    %54 = vector.load %arg4[%c640, %c0_61] : memref<1152x128xbf16, #tpu.memory_space<vmem>>, vector<128x128xbf16>
    %cst_62 = arith.constant dense<0.000000e+00> : vector<128x128xf32>
    %55 = tpu.matmul %53, %54, %cst_62 {dimension_numbers = #tpu.dot_dimension_numbers<[1], [0], [0], [1], [0, 0, 1, 1], [], []>} : vector<128x128xbf16>, vector<128x128xbf16>, vector<128x128xf32> -> vector<128x128xf32>
    %56 = arith.addf %50, %55 : vector<128x128xf32>
    %c0_63 = arith.constant 0 : index
    %c2_64 = arith.constant 2 : index
    %c0_65 = arith.constant 0 : index
    %c0_66 = arith.constant 0 : index
    %57 = vector.load %arg7[%c0_63, %c2_64, %c0_65, %c0_66] : memref<2x10x10x128xf32, #tpu.memory_space<vmem>>, vector<2x8x8x128xf32>
    %58 = vector.shape_cast %57 : vector<2x8x8x128xf32> to vector<128x128xf32>
    %59 = arith.truncf %58 : vector<128x128xf32> to vector<128x128xbf16>
    %c768 = arith.constant 768 : index
    %c0_67 = arith.constant 0 : index
    %60 = vector.load %arg4[%c768, %c0_67] : memref<1152x128xbf16, #tpu.memory_space<vmem>>, vector<128x128xbf16>
    %cst_68 = arith.constant dense<0.000000e+00> : vector<128x128xf32>
    %61 = tpu.matmul %59, %60, %cst_68 {dimension_numbers = #tpu.dot_dimension_numbers<[1], [0], [0], [1], [0, 0, 1, 1], [], []>} : vector<128x128xbf16>, vector<128x128xbf16>, vector<128x128xf32> -> vector<128x128xf32>
    %62 = arith.addf %56, %61 : vector<128x128xf32>
    %c0_69 = arith.constant 0 : index
    %c2_70 = arith.constant 2 : index
    %c1_71 = arith.constant 1 : index
    %c0_72 = arith.constant 0 : index
    %63 = vector.load %arg7[%c0_69, %c2_70, %c1_71, %c0_72] : memref<2x10x10x128xf32, #tpu.memory_space<vmem>>, vector<2x8x8x128xf32>
    %64 = vector.shape_cast %63 : vector<2x8x8x128xf32> to vector<128x128xf32>
    %65 = arith.truncf %64 : vector<128x128xf32> to vector<128x128xbf16>
    %c896 = arith.constant 896 : index
    %c0_73 = arith.constant 0 : index
    %66 = vector.load %arg4[%c896, %c0_73] : memref<1152x128xbf16, #tpu.memory_space<vmem>>, vector<128x128xbf16>
    %cst_74 = arith.constant dense<0.000000e+00> : vector<128x128xf32>
    %67 = tpu.matmul %65, %66, %cst_74 {dimension_numbers = #tpu.dot_dimension_numbers<[1], [0], [0], [1], [0, 0, 1, 1], [], []>} : vector<128x128xbf16>, vector<128x128xbf16>, vector<128x128xf32> -> vector<128x128xf32>
    %68 = arith.addf %62, %67 : vector<128x128xf32>
    %c0_75 = arith.constant 0 : index
    %c2_76 = arith.constant 2 : index
    %c2_77 = arith.constant 2 : index
    %c0_78 = arith.constant 0 : index
    %69 = vector.load %arg7[%c0_75, %c2_76, %c2_77, %c0_78] : memref<2x10x10x128xf32, #tpu.memory_space<vmem>>, vector<2x8x8x128xf32>
    %70 = vector.shape_cast %69 : vector<2x8x8x128xf32> to vector<128x128xf32>
    %71 = arith.truncf %70 : vector<128x128xf32> to vector<128x128xbf16>
    %c1024 = arith.constant 1024 : index
    %c0_79 = arith.constant 0 : index
    %72 = vector.load %arg4[%c1024, %c0_79] : memref<1152x128xbf16, #tpu.memory_space<vmem>>, vector<128x128xbf16>
    %cst_80 = arith.constant dense<0.000000e+00> : vector<128x128xf32>
    %73 = tpu.matmul %71, %72, %cst_80 {dimension_numbers = #tpu.dot_dimension_numbers<[1], [0], [0], [1], [0, 0, 1, 1], [], []>} : vector<128x128xbf16>, vector<128x128xbf16>, vector<128x128xf32> -> vector<128x128xf32>
    %74 = arith.addf %68, %73 : vector<128x128xf32>
    %75 = vector.shape_cast %74 : vector<128x128xf32> to vector<2x64x128xf32>
    %76 = arith.truncf %75 : vector<2x64x128xf32> to vector<2x64x128xbf16>
    %c0_81 = arith.constant 0 : index
    %c0_82 = arith.constant 0 : index
    %c0_83 = arith.constant 0 : index
    %77 = vector.load %arg5[%c0_81, %c0_82, %c0_83] : memref<2x64x128xbf16, #tpu.memory_space<vmem>>, vector<2x64x128xbf16>
    tpu.vector_store %arg5[%c0_81, %c0_82, %c0_83], %76 {strides = array<i32>} : memref<2x64x128xbf16, #tpu.memory_space<vmem>>, vector<2x64x128xbf16>,
    %cst_84 = arith.constant dense<0.000000e+00> : vector<128xf32>
    %78 = vector.multi_reduction <add>, %74, %cst_84 [0] : vector<128x128xf32> to vector<128xf32>
    %79 = vector.shape_cast %78 : vector<128xf32> to vector<1x128xf32>
    %80 = arith.mulf %74, %74 : vector<128x128xf32>
    %cst_85 = arith.constant dense<0.000000e+00> : vector<128xf32>
    %81 = vector.multi_reduction <add>, %80, %cst_85 [0] : vector<128x128xf32> to vector<128xf32>
    %82 = vector.shape_cast %81 : vector<128xf32> to vector<1x128xf32>
    %83 = tpu.concatenate %79, %82 in 0 : vector<1x128xf32>, vector<1x128xf32> -> vector<2x128xf32>
    %c0_86 = arith.constant 0 : index
    %c0_87 = arith.constant 0 : index
    %c0_88 = arith.constant 0 : index
    %84 = vector.load %arg6[%c0_86, %c0_87, %c0_88] : memref<1x2x128xf32, #tpu.memory_space<vmem>>, vector<1x2x128xf32>
    %85 = vector.shape_cast %84 : vector<1x2x128xf32> to vector<2x128xf32>
    %86 = vector.shape_cast %83 : vector<2x128xf32> to vector<1x2x128xf32>
    tpu.vector_store %arg6[%c0_86, %c0_87, %c0_88], %86 {strides = array<i32>} : memref<1x2x128xf32, #tpu.memory_space<vmem>>, vector<1x2x128xf32>,
    return
  }
  func.func @transform_0(%arg0: i32) -> (i32, i32, i32) {
    %c0_i32 = arith.constant 0 : i32
    %c0_i32_0 = arith.constant 0 : i32
    %c0_i32_1 = arith.constant 0 : i32
    return %arg0, %c0_i32, %c0_i32_0 : i32, i32, i32
  }
  func.func @transform_1(%arg0: i32) -> (i32, i32) {
    %c0_i32 = arith.constant 0 : i32
    %c0_i32_0 = arith.constant 0 : i32
    %c0_i32_1 = arith.constant 0 : i32
    return %c0_i32, %c0_i32_0 : i32, i32
  }
  func.func @transform_2(%arg0: i32) -> (i32, i32) {
    %c0_i32 = arith.constant 0 : i32
    %c0_i32_0 = arith.constant 0 : i32
    %c0_i32_1 = arith.constant 0 : i32
    return %c0_i32, %c0_i32_0 : i32, i32
  }
  func.func @transform_3(%arg0: i32) -> (i32, i32) {
    %c0_i32 = arith.constant 0 : i32
    %c0_i32_0 = arith.constant 0 : i32
    %c0_i32_1 = arith.constant 0 : i32
    return %c0_i32, %c0_i32_0 : i32, i32
  }
  func.func @transform_4(%arg0: i32) -> (i32, i32, i32) {
    %c0_i32 = arith.constant 0 : i32
    %c0_i32_0 = arith.constant 0 : i32
    %c0_i32_1 = arith.constant 0 : i32
    return %arg0, %c0_i32, %c0_i32_0 : i32, i32, i32
  }
  func.func @transform_5(%arg0: i32) -> (i32, i32, i32) {
    %c0_i32 = arith.constant 0 : i32
    %c0_i32_0 = arith.constant 0 : i32
    %c0_i32_1 = arith.constant 0 : i32
    return %arg0, %c0_i32, %c0_i32_0 : i32, i32, i32
  }
}

module attributes {stable_mosaic.version = 11 : i64} {
  func.func @kernel(%arg0: i32, %arg1: memref<2x64x128xbf16, #tpu.memory_space<vmem>>, %arg2: memref<1x128xf32, #tpu.memory_space<vmem>>, %arg3: memref<1x128xf32, #tpu.memory_space<vmem>>, %arg4: memref<2x64x128xbf16, #tpu.memory_space<vmem>>, %arg5: memref<1x128xf32, #tpu.memory_space<vmem>>, %arg6: memref<1x128xf32, #tpu.memory_space<vmem>>, %arg7: memref<2x64x128xf32, #tpu.memory_space<vmem>>) attributes {dimension_semantics = [#tpu.dimension_semantics<parallel>], iteration_bounds = array<i64: 1>, scalar_prefetch = 0 : i64, scratch_operands = 0 : i64, tpu.core_type = #tpu.core_type<tc>, window_params = [{transform_indices = @transform_0, window_bounds = array<i64: 2, 64, 128>}, {pipeline_mode = #tpu.pipeline_mode<synchronous>, transform_indices = @transform_1, window_bounds = array<i64: 1, 128>}, {pipeline_mode = #tpu.pipeline_mode<synchronous>, transform_indices = @transform_2, window_bounds = array<i64: 1, 128>}, {transform_indices = @transform_3, window_bounds = array<i64: 2, 64, 128>}, {pipeline_mode = #tpu.pipeline_mode<synchronous>, transform_indices = @transform_4, window_bounds = array<i64: 1, 128>}, {pipeline_mode = #tpu.pipeline_mode<synchronous>, transform_indices = @transform_5, window_bounds = array<i64: 1, 128>}, {transform_indices = @transform_6, window_bounds = array<i64: 2, 64, 128>}]} {
    %c0 = arith.constant 0 : index
    %c0_0 = arith.constant 0 : index
    %c0_1 = arith.constant 0 : index
    %0 = vector.load %arg4[%c0, %c0_0, %c0_1] : memref<2x64x128xbf16, #tpu.memory_space<vmem>>, vector<2x64x128xbf16>
    %1 = arith.extf %0 : vector<2x64x128xbf16> to vector<2x64x128xf32>
    %c0_2 = arith.constant 0 : index
    %c0_3 = arith.constant 0 : index
    %2 = vector.load %arg5[%c0_2, %c0_3] : memref<1x128xf32, #tpu.memory_space<vmem>>, vector<1x128xf32>
    %3 = vector.shape_cast %2 : vector<1x128xf32> to vector<1x1x128xf32>
    %4 = vector.broadcast %3 : vector<1x1x128xf32> to vector<2x64x128xf32>
    %5 = arith.mulf %1, %4 : vector<2x64x128xf32>
    %c0_4 = arith.constant 0 : index
    %c0_5 = arith.constant 0 : index
    %6 = vector.load %arg6[%c0_4, %c0_5] : memref<1x128xf32, #tpu.memory_space<vmem>>, vector<1x128xf32>
    %7 = vector.shape_cast %6 : vector<1x128xf32> to vector<1x1x128xf32>
    %8 = vector.broadcast %7 : vector<1x1x128xf32> to vector<2x64x128xf32>
    %9 = arith.addf %5, %8 : vector<2x64x128xf32>
    %c0_6 = arith.constant 0 : index
    %c0_7 = arith.constant 0 : index
    %c0_8 = arith.constant 0 : index
    %10 = vector.load %arg1[%c0_6, %c0_7, %c0_8] : memref<2x64x128xbf16, #tpu.memory_space<vmem>>, vector<2x64x128xbf16>
    %11 = arith.extf %10 : vector<2x64x128xbf16> to vector<2x64x128xf32>
    %c0_9 = arith.constant 0 : index
    %c0_10 = arith.constant 0 : index
    %12 = vector.load %arg2[%c0_9, %c0_10] : memref<1x128xf32, #tpu.memory_space<vmem>>, vector<1x128xf32>
    %13 = vector.shape_cast %12 : vector<1x128xf32> to vector<1x1x128xf32>
    %14 = vector.broadcast %13 : vector<1x1x128xf32> to vector<2x64x128xf32>
    %15 = arith.mulf %11, %14 : vector<2x64x128xf32>
    %c0_11 = arith.constant 0 : index
    %c0_12 = arith.constant 0 : index
    %16 = vector.load %arg3[%c0_11, %c0_12] : memref<1x128xf32, #tpu.memory_space<vmem>>, vector<1x128xf32>
    %17 = vector.shape_cast %16 : vector<1x128xf32> to vector<1x1x128xf32>
    %18 = vector.broadcast %17 : vector<1x1x128xf32> to vector<2x64x128xf32>
    %19 = arith.addf %15, %18 : vector<2x64x128xf32>
    %20 = arith.addf %19, %9 : vector<2x64x128xf32>
    %cst = arith.constant 0.000000e+00 : f32
    %21 = vector.broadcast %cst : f32 to vector<2x64x128xf32>
    %22 = arith.maximumf %20, %21 : vector<2x64x128xf32>
    %c0_13 = arith.constant 0 : index
    %c0_14 = arith.constant 0 : index
    %c0_15 = arith.constant 0 : index
    %23 = vector.load %arg7[%c0_13, %c0_14, %c0_15] : memref<2x64x128xf32, #tpu.memory_space<vmem>>, vector<2x64x128xf32>
    tpu.vector_store %arg7[%c0_13, %c0_14, %c0_15], %22 {strides = array<i32>} : memref<2x64x128xf32, #tpu.memory_space<vmem>>, vector<2x64x128xf32>,
    return
  }
  func.func @transform_0(%arg0: i32) -> (i32, i32, i32) {
    %c0_i32 = arith.constant 0 : i32
    %c0_i32_0 = arith.constant 0 : i32
    %c0_i32_1 = arith.constant 0 : i32
    return %arg0, %c0_i32, %c0_i32_0 : i32, i32, i32
  }
  func.func @transform_1(%arg0: i32) -> (i32, i32) {
    %c0_i32 = arith.constant 0 : i32
    %c0_i32_0 = arith.constant 0 : i32
    %c0_i32_1 = arith.constant 0 : i32
    return %c0_i32, %c0_i32_0 : i32, i32
  }
  func.func @transform_2(%arg0: i32) -> (i32, i32) {
    %c0_i32 = arith.constant 0 : i32
    %c0_i32_0 = arith.constant 0 : i32
    %c0_i32_1 = arith.constant 0 : i32
    return %c0_i32, %c0_i32_0 : i32, i32
  }
  func.func @transform_3(%arg0: i32) -> (i32, i32, i32) {
    %c0_i32 = arith.constant 0 : i32
    %c0_i32_0 = arith.constant 0 : i32
    %c0_i32_1 = arith.constant 0 : i32
    return %arg0, %c0_i32, %c0_i32_0 : i32, i32, i32
  }
  func.func @transform_4(%arg0: i32) -> (i32, i32) {
    %c0_i32 = arith.constant 0 : i32
    %c0_i32_0 = arith.constant 0 : i32
    %c0_i32_1 = arith.constant 0 : i32
    return %c0_i32, %c0_i32_0 : i32, i32
  }
  func.func @transform_5(%arg0: i32) -> (i32, i32) {
    %c0_i32 = arith.constant 0 : i32
    %c0_i32_0 = arith.constant 0 : i32
    %c0_i32_1 = arith.constant 0 : i32
    return %c0_i32, %c0_i32_0 : i32, i32
  }
  func.func @transform_6(%arg0: i32) -> (i32, i32, i32) {
    %c0_i32 = arith.constant 0 : i32
    %c0_i32_0 = arith.constant 0 : i32
    %c0_i32_1 = arith.constant 0 : i32
    return %arg0, %c0_i32, %c0_i32_0 : i32, i32, i32
  }
}

</mosaic_0001>

<llo_original>
// kernel: basic_block.5
$region0: #{basic_block.5}
  #allocation0 [shape = 'u32[]', space=smem, size = 0x4, offset = 0x4, fixed_abs, tag = 'smem constant byte address 0x4 - core index']
  #allocation1 [shape = 'u32[144,128]{1,0:T(1,128)}', space=vmem, size = 0x12000, scoped, tag = 'internal scratch']
  %s0 = inlined_call_operand.vmem [shape: bf16[2,64,128], index: 0, kind: input, shape index: {}]
  %s1 = inlined_call_operand.vmem [shape: f32[1,128], index: 1, kind: input, shape index: {}]
  %s2 = inlined_call_operand.vmem [shape: f32[1,128], index: 2, kind: input, shape index: {}]
  %s3 = inlined_call_operand.vmem [shape: bf16[2,64,128], index: 3, kind: input, shape index: {}]
  %s4 = inlined_call_operand.vmem [shape: f32[1,128], index: 4, kind: input, shape index: {}]
  %s5 = inlined_call_operand.vmem [shape: f32[1,128], index: 5, kind: input, shape index: {}]
  %s6 = inlined_call_operand.hbm [shape: f32[2,64,128], index: 6, kind: output, shape index: {}]
  %s7 = sld [smem:[#allocation0]]
  $region34: #{basic_block.5} parent=0
    _
  %s9 = ssub.s32 1, %s7
  %s10 = scalar_select 0, %s9, %s7
  $region1: #{basic_block.5} parent=0
    #allocation2 [shape = 'u8[65536]{0}', space=vmem, size = 0x10000, scoped, tag = 'output window, operand 0, single buffered']
    #allocation3 [shape = 's32[1]{0}', space=sflag, size = 0x4, scoped, tag = 'scoped memory for basic_block.5']
    %11 = vsyncpa [#allocation3], 0
    // Predicated region
    $region2: #{basic_block.5} parent=1 // pred_check
      _
    $region3: #{basic_block.5} parent=1 // pred_check_branch
      %13 = sbr.rel (0) target = $region5
    $region4: #{basic_block.5} parent=1 // pred_region
      _
    $region5: #{basic_block.5} parent=1 // pred_fallthru
      _
    // Predicated region
    $region6: #{basic_block.5} parent=1 // pred_check
      _
    $region7: #{basic_block.5} parent=1 // pred_check_branch
      %15 = sbr.rel (0) target = $region9
    $region8: #{basic_block.5} parent=1 // pred_region
      _
    $region9: #{basic_block.5} parent=1 // pred_fallthru
      _
    // Predicated region
    $region10: #{basic_block.5} parent=1 // pred_check
      _
    $region11: #{basic_block.5} parent=1 // pred_check_branch
      %17 = sbr.rel (0) target = $region13
    $region12: #{basic_block.5} parent=1 // pred_region
      _
    $region13: #{basic_block.5} parent=1 // pred_fallthru
      _
    // Predicated region
    $region14: #{basic_block.5} parent=1 // pred_check
      _
    $region15: #{basic_block.5} parent=1 // pred_check_branch
      %19 = sbr.rel (0) target = $region17
    $region16: #{basic_block.5} parent=1 // pred_region
      _
    $region17: #{basic_block.5} parent=1 // pred_fallthru
      _
    // Predicated region
    $region18: #{basic_block.5} parent=1 // pred_check
      _
    $region19: #{basic_block.5} parent=1 // pred_check_branch
      %21 = sbr.rel (0) target = $region21
    $region20: #{basic_block.5} parent=1 // pred_region
      _
    $region21: #{basic_block.5} parent=1 // pred_fallthru
      _
    // Predicated region
    $region22: #{basic_block.5} parent=1 // pred_check
      _
    $region23: #{basic_block.5} parent=1 // pred_check_branch
      %23 = sbr.rel (0) target = $region25
    $region24: #{basic_block.5} parent=1 // pred_region
      _
    $region25: #{basic_block.5} parent=1 // pred_fallthru
      _
    %v24 = vld [vmem:[%s3] sm:$0xf]
    %v25 = vld [vmem:[%s3 + $0x4] sm:$0xf]
    %v26 = vld [vmem:[%s3 + $0x8] sm:$0xf]
    %v27 = vld [vmem:[%s3 + $0xc] sm:$0xf]
    %v28 = vld [vmem:[%s3 + $0x10] sm:$0xf]
    %v29 = vld [vmem:[%s3 + $0x14] sm:$0xf]
    %v30 = vld [vmem:[%s3 + $0x18] sm:$0xf]
    %v31 = vld [vmem:[%s3 + $0x1c] sm:$0xf]
    %v32 = vld [vmem:[%s3 + $0x20] sm:$0xf]
    %v33 = vld [vmem:[%s3 + $0x24] sm:$0xf]
    %v34 = vld [vmem:[%s3 + $0x28] sm:$0xf]
    %v35 = vld [vmem:[%s3 + $0x2c] sm:$0xf]
    %v36 = vld [vmem:[%s3 + $0x30] sm:$0xf]
    %v37 = vld [vmem:[%s3 + $0x34] sm:$0xf]
    %v38 = vld [vmem:[%s3 + $0x38] sm:$0xf]
    %v39 = vld [vmem:[%s3 + $0x3c] sm:$0xf]
    %v40 = vunpack.c.l.bf16 %v24
    %v41 = vunpack.c.l.bf16 %v25
    %v42 = vunpack.c.l.bf16 %v26
    %v43 = vunpack.c.l.bf16 %v27
    %v44 = vunpack.c.l.bf16 %v28
    %v45 = vunpack.c.l.bf16 %v29
    %v46 = vunpack.c.l.bf16 %v30
    %v47 = vunpack.c.l.bf16 %v31
    %v48 = vunpack.c.l.bf16 %v32
    %v49 = vunpack.c.l.bf16 %v33
    %v50 = vunpack.c.l.bf16 %v34
    %v51 = vunpack.c.l.bf16 %v35
    %v52 = vunpack.c.l.bf16 %v36
    %v53 = vunpack.c.l.bf16 %v37
    %v54 = vunpack.c.l.bf16 %v38
    %v55 = vunpack.c.l.bf16 %v39
    %v56 = vld [vmem:[%s4] sm:$0x1]
    %v58 = vlaneseq
    %v59 = vshrl.u32 %v58, 7
    %v60 = vsub.s32 0, %v59
    %v61 = vrot.slane %v56, %v60
    %v63 = vmul.f32 %v40, %v61
    %v64 = vmul.f32 %v41, %v61
    %v65 = vmul.f32 %v42, %v61
    %v66 = vmul.f32 %v43, %v61
    %v67 = vmul.f32 %v44, %v61
    %v68 = vmul.f32 %v45, %v61
    %v69 = vmul.f32 %v46, %v61
    %v70 = vmul.f32 %v47, %v61
    %v71 = vmul.f32 %v48, %v61
    %v72 = vmul.f32 %v49, %v61
    %v73 = vmul.f32 %v50, %v61
    %v74 = vmul.f32 %v51, %v61
    %v75 = vmul.f32 %v52, %v61
    %v76 = vmul.f32 %v53, %v61
    %v77 = vmul.f32 %v54, %v61
    %v78 = vmul.f32 %v55, %v61
    %v79 = vld [vmem:[%s5] sm:$0x1]
    %v81 = vlaneseq
    %v82 = vshrl.u32 %v81, 7
    %v83 = vsub.s32 0, %v82
    %v84 = vrot.slane %v79, %v83
    %v86 = vadd.f32 %v63, %v84
    %v87 = vadd.f32 %v64, %v84
    %v88 = vadd.f32 %v65, %v84
    %v89 = vadd.f32 %v66, %v84
    %v90 = vadd.f32 %v67, %v84
    %v91 = vadd.f32 %v68, %v84
    %v92 = vadd.f32 %v69, %v84
    %v93 = vadd.f32 %v70, %v84
    %v94 = vadd.f32 %v71, %v84
    %v95 = vadd.f32 %v72, %v84
    %v96 = vadd.f32 %v73, %v84
    %v97 = vadd.f32 %v74, %v84
    %v98 = vadd.f32 %v75, %v84
    %v99 = vadd.f32 %v76, %v84
    %v100 = vadd.f32 %v77, %v84
    %v101 = vadd.f32 %v78, %v84
    %v102 = vld [vmem:[%s0] sm:$0xf]
    %v103 = vld [vmem:[%s0 + $0x4] sm:$0xf]
    %v104 = vld [vmem:[%s0 + $0x8] sm:$0xf]
    %v105 = vld [vmem:[%s0 + $0xc] sm:$0xf]
    %v106 = vld [vmem:[%s0 + $0x10] sm:$0xf]
    %v107 = vld [vmem:[%s0 + $0x14] sm:$0xf]
    %v108 = vld [vmem:[%s0 + $0x18] sm:$0xf]
    %v109 = vld [vmem:[%s0 + $0x1c] sm:$0xf]
    %v110 = vld [vmem:[%s0 + $0x20] sm:$0xf]
    %v111 = vld [vmem:[%s0 + $0x24] sm:$0xf]
    %v112 = vld [vmem:[%s0 + $0x28] sm:$0xf]
    %v113 = vld [vmem:[%s0 + $0x2c] sm:$0xf]
    %v114 = vld [vmem:[%s0 + $0x30] sm:$0xf]
    %v115 = vld [vmem:[%s0 + $0x34] sm:$0xf]
    %v116 = vld [vmem:[%s0 + $0x38] sm:$0xf]
    %v117 = vld [vmem:[%s0 + $0x3c] sm:$0xf]
    %v118 = vunpack.c.l.bf16 %v102
    %v119 = vunpack.c.l.bf16 %v103
    %v120 = vunpack.c.l.bf16 %v104
    %v121 = vunpack.c.l.bf16 %v105
    %v122 = vunpack.c.l.bf16 %v106
    %v123 = vunpack.c.l.bf16 %v107
    %v124 = vunpack.c.l.bf16 %v108
    %v125 = vunpack.c.l.bf16 %v109
    %v126 = vunpack.c.l.bf16 %v110
    %v127 = vunpack.c.l.bf16 %v111
    %v128 = vunpack.c.l.bf16 %v112
    %v129 = vunpack.c.l.bf16 %v113
    %v130 = vunpack.c.l.bf16 %v114
    %v131 = vunpack.c.l.bf16 %v115
    %v132 = vunpack.c.l.bf16 %v116
    %v133 = vunpack.c.l.bf16 %v117
    %v134 = vld [vmem:[%s1] sm:$0x1]
    %v136 = vlaneseq
    %v137 = vshrl.u32 %v136, 7
    %v138 = vsub.s32 0, %v137
    %v139 = vrot.slane %v134, %v138
    %v141 = vmul.f32 %v118, %v139
    %v142 = vmul.f32 %v119, %v139
    %v143 = vmul.f32 %v120, %v139
    %v144 = vmul.f32 %v121, %v139
    %v145 = vmul.f32 %v122, %v139
    %v146 = vmul.f32 %v123, %v139
    %v147 = vmul.f32 %v124, %v139
    %v148 = vmul.f32 %v125, %v139
    %v149 = vmul.f32 %v126, %v139
    %v150 = vmul.f32 %v127, %v139
    %v151 = vmul.f32 %v128, %v139
    %v152 = vmul.f32 %v129, %v139
    %v153 = vmul.f32 %v130, %v139
    %v154 = vmul.f32 %v131, %v139
    %v155 = vmul.f32 %v132, %v139
    %v156 = vmul.f32 %v133, %v139
    %v157 = vld [vmem:[%s2] sm:$0x1]
    %v159 = vlaneseq
    %v160 = vshrl.u32 %v159, 7
    %v161 = vsub.s32 0, %v160
    %v162 = vrot.slane %v157, %v161
    %v164 = vadd.f32 %v141, %v162
    %v165 = vadd.f32 %v142, %v162
    %v166 = vadd.f32 %v143, %v162
    %v167 = vadd.f32 %v144, %v162
    %v168 = vadd.f32 %v145, %v162
    %v169 = vadd.f32 %v146, %v162
    %v170 = vadd.f32 %v147, %v162
    %v171 = vadd.f32 %v148, %v162
    %v172 = vadd.f32 %v149, %v162
    %v173 = vadd.f32 %v150, %v162
    %v174 = vadd.f32 %v151, %v162
    %v175 = vadd.f32 %v152, %v162
    %v176 = vadd.f32 %v153, %v162
    %v177 = vadd.f32 %v154, %v162
    %v178 = vadd.f32 %v155, %v162
    %v179 = vadd.f32 %v156, %v162
    %v180 = vadd.f32 %v164, %v86
    %v181 = vadd.f32 %v165, %v87
    %v182 = vadd.f32 %v166, %v88
    %v183 = vadd.f32 %v167, %v89
    %v184 = vadd.f32 %v168, %v90
    %v185 = vadd.f32 %v169, %v91
    %v186 = vadd.f32 %v170, %v92
    %v187 = vadd.f32 %v171, %v93
    %v188 = vadd.f32 %v172, %v94
    %v189 = vadd.f32 %v173, %v95
    %v190 = vadd.f32 %v174, %v96
    %v191 = vadd.f32 %v175, %v97
    %v192 = vadd.f32 %v176, %v98
    %v193 = vadd.f32 %v177, %v99
    %v194 = vadd.f32 %v178, %v100
    %v195 = vadd.f32 %v179, %v101
    %v196 = vmax.f32 %v180, 0.0
    %v197 = vmax.f32 %v181, 0.0
    %v198 = vmax.f32 %v182, 0.0
    %v199 = vmax.f32 %v183, 0.0
    %v200 = vmax.f32 %v184, 0.0
    %v201 = vmax.f32 %v185, 0.0
    %v202 = vmax.f32 %v186, 0.0
    %v203 = vmax.f32 %v187, 0.0
    %v204 = vmax.f32 %v188, 0.0
    %v205 = vmax.f32 %v189, 0.0
    %v206 = vmax.f32 %v190, 0.0
    %v207 = vmax.f32 %v191, 0.0
    %v208 = vmax.f32 %v192, 0.0
    %v209 = vmax.f32 %v193, 0.0
    %v210 = vmax.f32 %v194, 0.0
    %v211 = vmax.f32 %v195, 0.0
    %212 = vst [vmem:[#allocation2] sm:$0xff] %v196
    %213 = vst [vmem:[#allocation2 + $0x8] sm:$0xff] %v197
    %214 = vst [vmem:[#allocation2 + $0x10] sm:$0xff] %v198
    %215 = vst [vmem:[#allocation2 + $0x18] sm:$0xff] %v199
    %216 = vst [vmem:[#allocation2 + $0x20] sm:$0xff] %v200
    %217 = vst [vmem:[#allocation2 + $0x28] sm:$0xff] %v201
    %218 = vst [vmem:[#allocation2 + $0x30] sm:$0xff] %v202
    %219 = vst [vmem:[#allocation2 + $0x38] sm:$0xff] %v203
    %220 = vst [vmem:[#allocation2 + $0x40] sm:$0xff] %v204
    %221 = vst [vmem:[#allocation2 + $0x48] sm:$0xff] %v205
    %222 = vst [vmem:[#allocation2 + $0x50] sm:$0xff] %v206
    %223 = vst [vmem:[#allocation2 + $0x58] sm:$0xff] %v207
    %224 = vst [vmem:[#allocation2 + $0x60] sm:$0xff] %v208
    %225 = vst [vmem:[#allocation2 + $0x68] sm:$0xff] %v209
    %226 = vst [vmem:[#allocation2 + $0x70] sm:$0xff] %v210
    %227 = vst [vmem:[#allocation2 + $0x78] sm:$0xff] %v211
    // Predicated region
    $region26: #{basic_block.5} parent=1 // pred_check
      _
    $region27: #{basic_block.5} parent=1 // pred_check_branch
      %229 = sbr.rel (0) target = $region29
    $region28: #{basic_block.5} parent=1 // pred_region
      %s231 = ssub.s32 2048, 2048
      %232 = vsyncadd [#allocation3], %s231
      %s233 = sshll.u32 [#allocation2], 4
      %s234 = int_to_ptr.vmem [resolvable:$true] %s233
      %239 = dma.vmem_to_hbm [thread:$0]  %s234, 2048, %s6, [#allocation3], 128, 128, 8
    $region29: #{basic_block.5} parent=1 // pred_fallthru
      _
    // Predicated region
    $region30: #{basic_block.5} parent=1 // pred_check
      _
    $region31: #{basic_block.5} parent=1 // pred_check_branch
      %241 = sbr.rel (0) target = $region33
    $region32: #{basic_block.5} parent=1 // pred_region
      %242 = dma.done [#allocation3], 2048
    $region33: #{basic_block.5} parent=1 // pred_fallthru
      _
    %243 = vsyncpa [#allocation3], 1

// kernel: basic_block.3
$region0: #{basic_block.3}
  #allocation0 [shape = 'u32[]', space=smem, size = 0x4, offset = 0x4, fixed_abs, tag = 'smem constant byte address 0x4 - core index']
  #allocation1 [shape = 'u32[144,128]{1,0:T(1,128)}', space=vmem, size = 0x12000, scoped, tag = 'internal scratch']
  %s0 = inlined_call_operand.vmem [shape: f32[2,40,10,128], index: 0, kind: input, shape index: {}]
  %s1 = inlined_call_operand.vmem [shape: bf16[1152,128], index: 1, kind: input, shape index: {}]
  %s2 = inlined_call_operand.vmem [shape: bf16[128,128], index: 2, kind: input, shape index: {}]
  %s3 = inlined_call_operand.vmem [shape: bf16[2,64,128], index: 3, kind: output, shape index: {0}]
  %s4 = inlined_call_operand.vmem [shape: f32[1,2,128], index: 4, kind: output, shape index: {1}]
  %s5 = inlined_call_operand.vmem [shape: bf16[2,64,128], index: 5, kind: output, shape index: {2}]
  %s6 = inlined_call_operand.vmem [shape: f32[1,2,128], index: 6, kind: output, shape index: {3}]
  %7 = xla_tuple %s3, %s4, %s5, %s6
  %s8 = sld [smem:[#allocation0]]
  $region46: #{basic_block.3} parent=0
    _
  %s10 = ssub.s32 1, %s8
  %s11 = scalar_select 0, %s10, %s8
  // Predicated region
  $region2: #{basic_block.3} parent=0 // pred_check
    _
  $region3: #{basic_block.3} parent=0 // pred_check_branch
    %13 = sbr.rel (0) target = $region5
  $region4: #{basic_block.3} parent=0 // pred_region
    _
  $region5: #{basic_block.3} parent=0 // pred_fallthru
    _
  // Predicated region
  $region6: #{basic_block.3} parent=0 // pred_check
    _
  $region7: #{basic_block.3} parent=0 // pred_check_branch
    %15 = sbr.rel (0) target = $region9
  $region8: #{basic_block.3} parent=0 // pred_region
    _
  $region9: #{basic_block.3} parent=0 // pred_fallthru
    _
  // Predicated region
  $region10: #{basic_block.3} parent=0 // pred_check
    _
  $region11: #{basic_block.3} parent=0 // pred_check_branch
    %17 = sbr.rel (0) target = $region13
  $region12: #{basic_block.3} parent=0 // pred_region
    _
  $region13: #{basic_block.3} parent=0 // pred_fallthru
    _
  %v19 = vld [vmem:[%s0] sm:$0xff]
  %v20 = vld [vmem:[%s0 + $0x10] sm:$0xff]
  %v21 = vld [vmem:[%s0 + $0x20] sm:$0xff]
  %v22 = vld [vmem:[%s0 + $0x30] sm:$0xff]
  %v23 = vld [vmem:[%s0 + $0x40] sm:$0xff]
  %v24 = vld [vmem:[%s0 + $0x50] sm:$0xff]
  %v25 = vld [vmem:[%s0 + $0x60] sm:$0xff]
  %v26 = vld [vmem:[%s0 + $0x70] sm:$0xff]
  %v27 = vld [vmem:[%s0 + $0x280] sm:$0xff]
  %v28 = vld [vmem:[%s0 + $0x290] sm:$0xff]
  %v29 = vld [vmem:[%s0 + $0x2a0] sm:$0xff]
  %v30 = vld [vmem:[%s0 + $0x2b0] sm:$0xff]
  %v31 = vld [vmem:[%s0 + $0x2c0] sm:$0xff]
  %v32 = vld [vmem:[%s0 + $0x2d0] sm:$0xff]
  %v33 = vld [vmem:[%s0 + $0x2e0] sm:$0xff]
  %v34 = vld [vmem:[%s0 + $0x2f0] sm:$0xff]
  %v35 = vpack.c.bf16 %v20, %v19
  %v36 = vpack.c.bf16 %v22, %v21
  %v37 = vpack.c.bf16 %v24, %v23
  %v38 = vpack.c.bf16 %v26, %v25
  %v39 = vpack.c.bf16 %v28, %v27
  %v40 = vpack.c.bf16 %v30, %v29
  %v41 = vpack.c.bf16 %v32, %v31
  %v42 = vpack.c.bf16 %v34, %v33
  %v43 = vld [vmem:[%s1] sm:$0xf]
  %v44 = vld [vmem:[%s1 + $0x4] sm:$0xf]
  %v45 = vld [vmem:[%s1 + $0x8] sm:$0xf]
  %v46 = vld [vmem:[%s1 + $0xc] sm:$0xf]
  %v47 = vld [vmem:[%s1 + $0x10] sm:$0xf]
  %v48 = vld [vmem:[%s1 + $0x14] sm:$0xf]
  %v49 = vld [vmem:[%s1 + $0x18] sm:$0xf]
  %v50 = vld [vmem:[%s1 + $0x1c] sm:$0xf]
  %v51 = vld [vmem:[%s1 + $0x20] sm:$0xf]
  %v52 = vld [vmem:[%s1 + $0x24] sm:$0xf]
  %v53 = vld [vmem:[%s1 + $0x28] sm:$0xf]
  %v54 = vld [vmem:[%s1 + $0x2c] sm:$0xf]
  %v55 = vld [vmem:[%s1 + $0x30] sm:$0xf]
  %v56 = vld [vmem:[%s1 + $0x34] sm:$0xf]
  %v57 = vld [vmem:[%s1 + $0x38] sm:$0xf]
  %v58 = vld [vmem:[%s1 + $0x3c] sm:$0xf]
  %s59 = scalar_lea.vmem %s0, 160
  %v60 = vld [vmem:[%s59] sm:$0xff]
  %v61 = vld [vmem:[%s59 + $0x10] sm:$0xff]
  %v62 = vld [vmem:[%s59 + $0x20] sm:$0xff]
  %v63 = vld [vmem:[%s59 + $0x30] sm:$0xff]
  %v64 = vld [vmem:[%s59 + $0x40] sm:$0xff]
  %v65 = vld [vmem:[%s59 + $0x50] sm:$0xff]
  %v66 = vld [vmem:[%s59 + $0x60] sm:$0xff]
  %v67 = vld [vmem:[%s59 + $0x70] sm:$0xff]
  %v68 = vld [vmem:[%s59 + $0x280] sm:$0xff]
  %v69 = vld [vmem:[%s59 + $0x290] sm:$0xff]
  %v70 = vld [vmem:[%s59 + $0x2a0] sm:$0xff]
  %v71 = vld [vmem:[%s59 + $0x2b0] sm:$0xff]
  %v72 = vld [vmem:[%s59 + $0x2c0] sm:$0xff]
  %v73 = vld [vmem:[%s59 + $0x2d0] sm:$0xff]
  %v74 = vld [vmem:[%s59 + $0x2e0] sm:$0xff]
  %v75 = vld [vmem:[%s59 + $0x2f0] sm:$0xff]
  %v76 = vpack.c.bf16 %v61, %v60
  %v77 = vpack.c.bf16 %v63, %v62
  %v78 = vpack.c.bf16 %v65, %v64
  %v79 = vpack.c.bf16 %v67, %v66
  %v80 = vpack.c.bf16 %v69, %v68
  %v81 = vpack.c.bf16 %v71, %v70
  %v82 = vpack.c.bf16 %v73, %v72
  %v83 = vpack.c.bf16 %v75, %v74
  %v84 = vld [vmem:[%s1 + $0x40] sm:$0xf]
  %v85 = vld [vmem:[%s1 + $0x44] sm:$0xf]
  %v86 = vld [vmem:[%s1 + $0x48] sm:$0xf]
  %v87 = vld [vmem:[%s1 + $0x4c] sm:$0xf]
  %v88 = vld [vmem:[%s1 + $0x50] sm:$0xf]
  %v89 = vld [vmem:[%s1 + $0x54] sm:$0xf]
  %v90 = vld [vmem:[%s1 + $0x58] sm:$0xf]
  %v91 = vld [vmem:[%s1 + $0x5c] sm:$0xf]
  %v92 = vld [vmem:[%s1 + $0x60] sm:$0xf]
  %v93 = vld [vmem:[%s1 + $0x64] sm:$0xf]
  %v94 = vld [vmem:[%s1 + $0x68] sm:$0xf]
  %v95 = vld [vmem:[%s1 + $0x6c] sm:$0xf]
  %v96 = vld [vmem:[%s1 + $0x70] sm:$0xf]
  %v97 = vld [vmem:[%s1 + $0x74] sm:$0xf]
  %v98 = vld [vmem:[%s1 + $0x78] sm:$0xf]
  %v99 = vld [vmem:[%s1 + $0x7c] sm:$0xf]
  %v116 = vunpack.c.l.b16 %v84
  %v117 = vunpack.c.l.b16 %v85
  %v118 = vunpack.c.l.b16 %v86
  %v119 = vunpack.c.l.b16 %v87
  %v120 = vunpack.c.l.b16 %v88
  %v121 = vunpack.c.l.b16 %v89
  %v122 = vunpack.c.l.b16 %v90
  %v123 = vunpack.c.l.b16 %v91
  %v124 = vunpack.c.l.b16 %v92
  %v125 = vunpack.c.l.b16 %v93
  %v126 = vunpack.c.l.b16 %v94
  %v127 = vunpack.c.l.b16 %v95
  %v128 = vunpack.c.l.b16 %v96
  %v129 = vunpack.c.l.b16 %v97
  %v130 = vunpack.c.l.b16 %v98
  %v131 = vunpack.c.l.b16 %v99
  %v132 = vpack.c.b16 %v117, %v116
  %v133 = vpack.c.b16 %v119, %v118
  %v134 = vpack.c.b16 %v121, %v120
  %v135 = vpack.c.b16 %v123, %v122
  %v136 = vpack.c.b16 %v125, %v124
  %v137 = vpack.c.b16 %v127, %v126
  %v138 = vpack.c.b16 %v129, %v128
  %v139 = vpack.c.b16 %v131, %v130
  %148 = vmatprep.subr.bf16.mxu0 0
  %149 = vmatpush1.bf16.msra.mxu0 %v139
  %150 = vmatprep.subr.bf16.mxu0 0
  %151 = vmatpush1.bf16.msra.mxu0 %v138
  %152 = vmatprep.subr.bf16.mxu0 0
  %153 = vmatpush1.bf16.msra.mxu0 %v137
  %154 = vmatprep.subr.bf16.mxu0 0
  %155 = vmatpush1.bf16.msra.mxu0 %v136
  %156 = vmatprep.subr.bf16.mxu0 0
  %157 = vmatpush1.bf16.msra.mxu0 %v135
  %158 = vmatprep.subr.bf16.mxu0 0
  %159 = vmatpush1.bf16.msra.mxu0 %v134
  %160 = vmatprep.subr.bf16.mxu0 0
  %161 = vmatpush1.bf16.msra.mxu0 %v133
  %162 = vmatprep.subr.bf16.mxu0 0
  %163 = vmatpush1.bf16.msra.mxu0 %v132
  %164 = vmatprep.subr.bf16.mxu0 0
  %165 = vmatpush2.bf16.msra.mxu0 0
  %166 = vmatprep.subr.bf16.mxu0 0
  %167 = vmatpush2.bf16.msra.mxu0 0
  %168 = vmatprep.subr.bf16.mxu0 0
  %169 = vmatpush2.bf16.msra.mxu0 0
  %170 = vmatprep.subr.bf16.mxu0 0
  %171 = vmatpush2.bf16.msra.mxu0 0
  %172 = vmatprep.subr.bf16.mxu0 0
  %173 = vmatpush2.bf16.msra.mxu0 0
  %174 = vmatprep.subr.bf16.mxu0 0
  %175 = vmatpush2.bf16.msra.mxu0 0
  %176 = vmatprep.subr.bf16.mxu0 0
  %177 = vmatpush2.bf16.msra.mxu0 0
  %178 = vmatprep.subr.bf16.mxu0 0
  %179 = vmatpush2.bf16.msra.mxu0 0
  %180 = vmatprep.mubr.bf16.mxu0 0
  %181 = vmatmul.mubr.bf16.gmra.mxu0 %v76
  %v182 = vpop.f32.mrf.mxu0
  %v183 = vadd.f32 0.0, %v182
  %v184 = vpop.f32.mrf.mxu0
  %v185 = vpop.f32.mrf.mxu0
  %v186 = vadd.f32 0.0, %v185
  %v187 = vpop.f32.mrf.mxu0
  %188 = vmatprep.mubr.bf16.mxu0 0
  %189 = vmatmul.mubr.bf16.gmra.mxu0 %v77
  %v190 = vpop.f32.mrf.mxu0
  %v191 = vadd.f32 0.0, %v190
  %v192 = vpop.f32.mrf.mxu0
  %v193 = vpop.f32.mrf.mxu0
  %v194 = vadd.f32 0.0, %v193
  %v195 = vpop.f32.mrf.mxu0
  %196 = vmatprep.mubr.bf16.mxu0 0
  %197 = vmatmul.mubr.bf16.gmra.mxu0 %v78
  %v198 = vpop.f32.mrf.mxu0
  %v199 = vadd.f32 0.0, %v198
  %v200 = vpop.f32.mrf.mxu0
  %v201 = vpop.f32.mrf.mxu0
  %v202 = vadd.f32 0.0, %v201
  %v203 = vpop.f32.mrf.mxu0
  %204 = vmatprep.mubr.bf16.mxu0 0
  %205 = vmatmul.mubr.bf16.gmra.mxu0 %v79
  %v206 = vpop.f32.mrf.mxu0
  %v207 = vadd.f32 0.0, %v206
  %v208 = vpop.f32.mrf.mxu0
  %v209 = vpop.f32.mrf.mxu0
  %v210 = vadd.f32 0.0, %v209
  %v211 = vpop.f32.mrf.mxu0
  %212 = vmatprep.mubr.bf16.mxu0 0
  %213 = vmatmul.mubr.bf16.gmra.mxu0 %v80
  %v214 = vpop.f32.mrf.mxu0
  %v215 = vadd.f32 0.0, %v214
  %v216 = vpop.f32.mrf.mxu0
  %v217 = vpop.f32.mrf.mxu0
  %v218 = vadd.f32 0.0, %v217
  %v219 = vpop.f32.mrf.mxu0
  %220 = vmatprep.mubr.bf16.mxu0 0
  %221 = vmatmul.mubr.bf16.gmra.mxu0 %v81
  %v222 = vpop.f32.mrf.mxu0
  %v223 = vadd.f32 0.0, %v222
  %v224 = vpop.f32.mrf.mxu0
  %v225 = vpop.f32.mrf.mxu0
  %v226 = vadd.f32 0.0, %v225
  %v227 = vpop.f32.mrf.mxu0
  %228 = vmatprep.mubr.bf16.mxu0 0
  %229 = vmatmul.mubr.bf16.gmra.mxu0 %v82
  %v230 = vpop.f32.mrf.mxu0
  %v231 = vadd.f32 0.0, %v230
  %v232 = vpop.f32.mrf.mxu0
  %v233 = vpop.f32.mrf.mxu0
  %v234 = vadd.f32 0.0, %v233
  %v235 = vpop.f32.mrf.mxu0
  %236 = vmatprep.mubr.bf16.mxu0 0
  %237 = vmatmul.mubr.bf16.gmra.mxu0 %v83
  %v238 = vpop.f32.mrf.mxu0
  %v239 = vadd.f32 0.0, %v238
  %v240 = vpop.f32.mrf.mxu0
  %v241 = vpop.f32.mrf.mxu0
  %v242 = vadd.f32 0.0, %v241
  %v243 = vpop.f32.mrf.mxu0
  %244 = vdwg.mxu0
  %v261 = vunpack.c.l.b16 %v43
  %v262 = vunpack.c.l.b16 %v44
  %v263 = vunpack.c.l.b16 %v45
  %v264 = vunpack.c.l.b16 %v46
  %v265 = vunpack.c.l.b16 %v47
  %v266 = vunpack.c.l.b16 %v48
  %v267 = vunpack.c.l.b16 %v49
  %v268 = vunpack.c.l.b16 %v50
  %v269 = vunpack.c.l.b16 %v51
  %v270 = vunpack.c.l.b16 %v52
  %v271 = vunpack.c.l.b16 %v53
  %v272 = vunpack.c.l.b16 %v54
  %v273 = vunpack.c.l.b16 %v55
  %v274 = vunpack.c.l.b16 %v56
  %v275 = vunpack.c.l.b16 %v57
  %v276 = vunpack.c.l.b16 %v58
  %v277 = vpack.c.b16 %v262, %v261
  %v278 = vpack.c.b16 %v264, %v263
  %v279 = vpack.c.b16 %v266, %v265
  %v280 = vpack.c.b16 %v268, %v267
  %v281 = vpack.c.b16 %v270, %v269
  %v282 = vpack.c.b16 %v272, %v271
  %v283 = vpack.c.b16 %v274, %v273
  %v284 = vpack.c.b16 %v276, %v275
  %293 = vmatprep.subr.bf16.mxu0 0
  %294 = vmatpush1.bf16.msra.mxu0 %v284
  %295 = vmatprep.subr.bf16.mxu0 0
  %296 = vmatpush1.bf16.msra.mxu0 %v283
  %297 = vmatprep.subr.bf16.mxu0 0
  %298 = vmatpush1.bf16.msra.mxu0 %v282
  %299 = vmatprep.subr.bf16.mxu0 0
  %300 = vmatpush1.bf16.msra.mxu0 %v281
  %301 = vmatprep.subr.bf16.mxu0 0
  %302 = vmatpush1.bf16.msra.mxu0 %v280
  %303 = vmatprep.subr.bf16.mxu0 0
  %304 = vmatpush1.bf16.msra.mxu0 %v279
  %305 = vmatprep.subr.bf16.mxu0 0
  %306 = vmatpush1.bf16.msra.mxu0 %v278
  %307 = vmatprep.subr.bf16.mxu0 0
  %308 = vmatpush1.bf16.msra.mxu0 %v277
  %309 = vmatprep.subr.bf16.mxu0 0
  %310 = vmatpush2.bf16.msra.mxu0 0
  %311 = vmatprep.subr.bf16.mxu0 0
  %312 = vmatpush2.bf16.msra.mxu0 0
  %313 = vmatprep.subr.bf16.mxu0 0
  %314 = vmatpush2.bf16.msra.mxu0 0
  %315 = vmatprep.subr.bf16.mxu0 0
  %316 = vmatpush2.bf16.msra.mxu0 0
  %317 = vmatprep.subr.bf16.mxu0 0
  %318 = vmatpush2.bf16.msra.mxu0 0
  %319 = vmatprep.subr.bf16.mxu0 0
  %320 = vmatpush2.bf16.msra.mxu0 0
  %321 = vmatprep.subr.bf16.mxu0 0
  %322 = vmatpush2.bf16.msra.mxu0 0
  %323 = vmatprep.subr.bf16.mxu0 0
  %324 = vmatpush2.bf16.msra.mxu0 0
  %325 = vmatprep.mubr.bf16.mxu0 0
  %326 = vmatmul.mubr.bf16.gmra.mxu0 %v35
  %v327 = vpop.f32.mrf.mxu0
  %v328 = vadd.f32 %v183, %v327
  %v329 = vpop.f32.mrf.mxu0
  %v330 = vpop.f32.mrf.mxu0
  %v331 = vadd.f32 %v186, %v330
  %v332 = vpop.f32.mrf.mxu0
  %333 = vmatprep.mubr.bf16.mxu0 0
  %334 = vmatmul.mubr.bf16.gmra.mxu0 %v36
  %v335 = vpop.f32.mrf.mxu0
  %v336 = vadd.f32 %v191, %v335
  %v337 = vpop.f32.mrf.mxu0
  %v338 = vpop.f32.mrf.mxu0
  %v339 = vadd.f32 %v194, %v338
  %v340 = vpop.f32.mrf.mxu0
  %341 = vmatprep.mubr.bf16.mxu0 0
  %342 = vmatmul.mubr.bf16.gmra.mxu0 %v37
  %v343 = vpop.f32.mrf.mxu0
  %v344 = vadd.f32 %v199, %v343
  %v345 = vpop.f32.mrf.mxu0
  %v346 = vpop.f32.mrf.mxu0
  %v347 = vadd.f32 %v202, %v346
  %v348 = vpop.f32.mrf.mxu0
  %349 = vmatprep.mubr.bf16.mxu0 0
  %350 = vmatmul.mubr.bf16.gmra.mxu0 %v38
  %v351 = vpop.f32.mrf.mxu0
  %v352 = vadd.f32 %v207, %v351
  %v353 = vpop.f32.mrf.mxu0
  %v354 = vpop.f32.mrf.mxu0
  %v355 = vadd.f32 %v210, %v354
  %v356 = vpop.f32.mrf.mxu0
  %357 = vmatprep.mubr.bf16.mxu0 0
  %358 = vmatmul.mubr.bf16.gmra.mxu0 %v39
  %v359 = vpop.f32.mrf.mxu0
  %v360 = vadd.f32 %v215, %v359
  %v361 = vpop.f32.mrf.mxu0
  %v362 = vpop.f32.mrf.mxu0
  %v363 = vadd.f32 %v218, %v362
  %v364 = vpop.f32.mrf.mxu0
  %365 = vmatprep.mubr.bf16.mxu0 0
  %366 = vmatmul.mubr.bf16.gmra.mxu0 %v40
  %v367 = vpop.f32.mrf.mxu0
  %v368 = vadd.f32 %v223, %v367
  %v369 = vpop.f32.mrf.mxu0
  %v370 = vpop.f32.mrf.mxu0
  %v371 = vadd.f32 %v226, %v370
  %v372 = vpop.f32.mrf.mxu0
  %373 = vmatprep.mubr.bf16.mxu0 0
  %374 = vmatmul.mubr.bf16.gmra.mxu0 %v41
  %v375 = vpop.f32.mrf.mxu0
  %v376 = vadd.f32 %v231, %v375
  %v377 = vpop.f32.mrf.mxu0
  %v378 = vpop.f32.mrf.mxu0
  %v379 = vadd.f32 %v234, %v378
  %v380 = vpop.f32.mrf.mxu0
  %381 = vmatprep.mubr.bf16.mxu0 0
  %382 = vmatmul.mubr.bf16.gmra.mxu0 %v42
  %v383 = vpop.f32.mrf.mxu0
  %v384 = vadd.f32 %v239, %v383
  %v385 = vpop.f32.mrf.mxu0
  %v386 = vpop.f32.mrf.mxu0
  %v387 = vadd.f32 %v242, %v386
  %v388 = vpop.f32.mrf.mxu0
  %389 = vdwg.mxu0
  %v390 = vld [vmem:[%s0 + $0x1] sm:$0xff]
  %v391 = vld [vmem:[%s0 + $0x11] sm:$0xff]
  %v392 = vld [vmem:[%s0 + $0x21] sm:$0xff]
  %v393 = vld [vmem:[%s0 + $0x31] sm:$0xff]
  %v394 = vld [vmem:[%s0 + $0x41] sm:$0xff]
  %v395 = vld [vmem:[%s0 + $0x51] sm:$0xff]
  %v396 = vld [vmem:[%s0 + $0x61] sm:$0xff]
  %v397 = vld [vmem:[%s0 + $0x71] sm:$0xff]
  %v398 = vld [vmem:[%s0 + $0x281] sm:$0xff]
  %v399 = vld [vmem:[%s0 + $0x291] sm:$0xff]
  %v400 = vld [vmem:[%s0 + $0x2a1] sm:$0xff]
  %v401 = vld [vmem:[%s0 + $0x2b1] sm:$0xff]
  %v402 = vld [vmem:[%s0 + $0x2c1] sm:$0xff]
  %v403 = vld [vmem:[%s0 + $0x2d1] sm:$0xff]
  %v404 = vld [vmem:[%s0 + $0x2e1] sm:$0xff]
  %v405 = vld [vmem:[%s0 + $0x2f1] sm:$0xff]
  %v406 = vpack.c.bf16 %v391, %v390
  %v407 = vpack.c.bf16 %v393, %v392
  %v408 = vpack.c.bf16 %v395, %v394
  %v409 = vpack.c.bf16 %v397, %v396
  %v410 = vpack.c.bf16 %v399, %v398
  %v411 = vpack.c.bf16 %v401, %v400
  %v412 = vpack.c.bf16 %v403, %v402
  %v413 = vpack.c.bf16 %v405, %v404
  %v414 = vld [vmem:[%s1 + $0x80] sm:$0xf]
  %v415 = vld [vmem:[%s1 + $0x84] sm:$0xf]
  %v416 = vld [vmem:[%s1 + $0x88] sm:$0xf]
  %v417 = vld [vmem:[%s1 + $0x8c] sm:$0xf]
  %v418 = vld [vmem:[%s1 + $0x90] sm:$0xf]
  %v419 = vld [vmem:[%s1 + $0x94] sm:$0xf]
  %v420 = vld [vmem:[%s1 + $0x98] sm:$0xf]
  %v421 = vld [vmem:[%s1 + $0x9c] sm:$0xf]
  %v422 = vld [vmem:[%s1 + $0xa0] sm:$0xf]
  %v423 = vld [vmem:[%s1 + $0xa4] sm:$0xf]
  %v424 = vld [vmem:[%s1 + $0xa8] sm:$0xf]
  %v425 = vld [vmem:[%s1 + $0xac] sm:$0xf]
  %v426 = vld [vmem:[%s1 + $0xb0] sm:$0xf]
  %v427 = vld [vmem:[%s1 + $0xb4] sm:$0xf]
  %v428 = vld [vmem:[%s1 + $0xb8] sm:$0xf]
  %v429 = vld [vmem:[%s1 + $0xbc] sm:$0xf]
  %v446 = vunpack.c.l.b16 %v414
  %v447 = vunpack.c.l.b16 %v415
  %v448 = vunpack.c.l.b16 %v416
  %v449 = vunpack.c.l.b16 %v417
  %v450 = vunpack.c.l.b16 %v418
  %v451 = vunpack.c.l.b16 %v419
  %v452 = vunpack.c.l.b16 %v420
  %v453 = vunpack.c.l.b16 %v421
  %v454 = vunpack.c.l.b16 %v422
  %v455 = vunpack.c.l.b16 %v423
  %v456 = vunpack.c.l.b16 %v424
  %v457 = vunpack.c.l.b16 %v425
  %v458 = vunpack.c.l.b16 %v426
  %v459 = vunpack.c.l.b16 %v427
  %v460 = vunpack.c.l.b16 %v428
  %v461 = vunpack.c.l.b16 %v429
  %v462 = vpack.c.b16 %v447, %v446
  %v463 = vpack.c.b16 %v449, %v448
  %v464 = vpack.c.b16 %v451, %v450
  %v465 = vpack.c.b16 %v453, %v452
  %v466 = vpack.c.b16 %v455, %v454
  %v467 = vpack.c.b16 %v457, %v456
  %v468 = vpack.c.b16 %v459, %v458
  %v469 = vpack.c.b16 %v461, %v460
  %478 = vmatprep.subr.bf16.mxu0 0
  %479 = vmatpush1.bf16.msra.mxu0 %v469
  %480 = vmatprep.subr.bf16.mxu0 0
  %481 = vmatpush1.bf16.msra.mxu0 %v468
  %482 = vmatprep.subr.bf16.mxu0 0
  %483 = vmatpush1.bf16.msra.mxu0 %v467
  %484 = vmatprep.subr.bf16.mxu0 0
  %485 = vmatpush1.bf16.msra.mxu0 %v466
  %486 = vmatprep.subr.bf16.mxu0 0
  %487 = vmatpush1.bf16.msra.mxu0 %v465
  %488 = vmatprep.subr.bf16.mxu0 0
  %489 = vmatpush1.bf16.msra.mxu0 %v464
  %490 = vmatprep.subr.bf16.mxu0 0
  %491 = vmatpush1.bf16.msra.mxu0 %v463
  %492 = vmatprep.subr.bf16.mxu0 0
  %493 = vmatpush1.bf16.msra.mxu0 %v462
  %494 = vmatprep.subr.bf16.mxu0 0
  %495 = vmatpush2.bf16.msra.mxu0 0
  %496 = vmatprep.subr.bf16.mxu0 0
  %497 = vmatpush2.bf16.msra.mxu0 0
  %498 = vmatprep.subr.bf16.mxu0 0
  %499 = vmatpush2.bf16.msra.mxu0 0
  %500 = vmatprep.subr.bf16.mxu0 0
  %501 = vmatpush2.bf16.msra.mxu0 0
  %502 = vmatprep.subr.bf16.mxu0 0
  %503 = vmatpush2.bf16.msra.mxu0 0
  %504 = vmatprep.subr.bf16.mxu0 0
  %505 = vmatpush2.bf16.msra.mxu0 0
  %506 = vmatprep.subr.bf16.mxu0 0
  %507 = vmatpush2.bf16.msra.mxu0 0
  %508 = vmatprep.subr.bf16.mxu0 0
  %509 = vmatpush2.bf16.msra.mxu0 0
  %510 = vmatprep.mubr.bf16.mxu0 0
  %511 = vmatmul.mubr.bf16.gmra.mxu0 %v406
  %v512 = vpop.f32.mrf.mxu0
  %v513 = vadd.f32 0.0, %v512
  %v514 = vpop.f32.mrf.mxu0
  %v515 = vpop.f32.mrf.mxu0
  %v516 = vadd.f32 0.0, %v515
  %v517 = vpop.f32.mrf.mxu0
  %518 = vmatprep.mubr.bf16.mxu0 0
  %519 = vmatmul.mubr.bf16.gmra.mxu0 %v407
  %v520 = vpop.f32.mrf.mxu0
  %v521 = vadd.f32 0.0, %v520
  %v522 = vpop.f32.mrf.mxu0
  %v523 = vpop.f32.mrf.mxu0
  %v524 = vadd.f32 0.0, %v523
  %v525 = vpop.f32.mrf.mxu0
  %526 = vmatprep.mubr.bf16.mxu0 0
  %527 = vmatmul.mubr.bf16.gmra.mxu0 %v408
  %v528 = vpop.f32.mrf.mxu0
  %v529 = vadd.f32 0.0, %v528
  %v530 = vpop.f32.mrf.mxu0
  %v531 = vpop.f32.mrf.mxu0
  %v532 = vadd.f32 0.0, %v531
  %v533 = vpop.f32.mrf.mxu0
  %534 = vmatprep.mubr.bf16.mxu0 0
  %535 = vmatmul.mubr.bf16.gmra.mxu0 %v409
  %v536 = vpop.f32.mrf.mxu0
  %v537 = vadd.f32 0.0, %v536
  %v538 = vpop.f32.mrf.mxu0
  %v539 = vpop.f32.mrf.mxu0
  %v540 = vadd.f32 0.0, %v539
  %v541 = vpop.f32.mrf.mxu0
  %542 = vmatprep.mubr.bf16.mxu0 0
  %543 = vmatmul.mubr.bf16.gmra.mxu0 %v410
  %v544 = vpop.f32.mrf.mxu0
  %v545 = vadd.f32 0.0, %v544
  %v546 = vpop.f32.mrf.mxu0
  %v547 = vpop.f32.mrf.mxu0
  %v548 = vadd.f32 0.0, %v547
  %v549 = vpop.f32.mrf.mxu0
  %550 = vmatprep.mubr.bf16.mxu0 0
  %551 = vmatmul.mubr.bf16.gmra.mxu0 %v411
  %v552 = vpop.f32.mrf.mxu0
  %v553 = vadd.f32 0.0, %v552
  %v554 = vpop.f32.mrf.mxu0
  %v555 = vpop.f32.mrf.mxu0
  %v556 = vadd.f32 0.0, %v555
  %v557 = vpop.f32.mrf.mxu0
  %558 = vmatprep.mubr.bf16.mxu0 0
  %559 = vmatmul.mubr.bf16.gmra.mxu0 %v412
  %v560 = vpop.f32.mrf.mxu0
  %v561 = vadd.f32 0.0, %v560
  %v562 = vpop.f32.mrf.mxu0
  %v563 = vpop.f32.mrf.mxu0
  %v564 = vadd.f32 0.0, %v563
  %v565 = vpop.f32.mrf.mxu0
  %566 = vmatprep.mubr.bf16.mxu0 0
  %567 = vmatmul.mubr.bf16.gmra.mxu0 %v413
  %v568 = vpop.f32.mrf.mxu0
  %v569 = vadd.f32 0.0, %v568
  %v570 = vpop.f32.mrf.mxu0
  %v571 = vpop.f32.mrf.mxu0
  %v572 = vadd.f32 0.0, %v571
  %v573 = vpop.f32.mrf.mxu0
  %574 = vdwg.mxu0
  %v575 = vadd.f32 %v328, %v513
  %v576 = vadd.f32 %v331, %v516
  %v577 = vadd.f32 %v336, %v521
  %v578 = vadd.f32 %v339, %v524
  %v579 = vadd.f32 %v344, %v529
  %v580 = vadd.f32 %v347, %v532
  %v581 = vadd.f32 %v352, %v537
  %v582 = vadd.f32 %v355, %v540
  %v583 = vadd.f32 %v360, %v545
  %v584 = vadd.f32 %v363, %v548
  %v585 = vadd.f32 %v368, %v553
  %v586 = vadd.f32 %v371, %v556
  %v587 = vadd.f32 %v376, %v561
  %v588 = vadd.f32 %v379, %v564
  %v589 = vadd.f32 %v384, %v569
  %v590 = vadd.f32 %v387, %v572
  %s591 = scalar_lea.vmem %s0, 320
  %v592 = vld [vmem:[%s591] sm:$0xff]
  %v593 = vld [vmem:[%s591 + $0x10] sm:$0xff]
  %v594 = vld [vmem:[%s591 + $0x20] sm:$0xff]
  %v595 = vld [vmem:[%s591 + $0x30] sm:$0xff]
  %v596 = vld [vmem:[%s591 + $0x40] sm:$0xff]
  %v597 = vld [vmem:[%s591 + $0x50] sm:$0xff]
  %v598 = vld [vmem:[%s591 + $0x60] sm:$0xff]
  %v599 = vld [vmem:[%s591 + $0x70] sm:$0xff]
  %v600 = vld [vmem:[%s591 + $0x280] sm:$0xff]
  %v601 = vld [vmem:[%s591 + $0x290] sm:$0xff]
  %v602 = vld [vmem:[%s591 + $0x2a0] sm:$0xff]
  %v603 = vld [vmem:[%s591 + $0x2b0] sm:$0xff]
  %v604 = vld [vmem:[%s591 + $0x2c0] sm:$0xff]
  %v605 = vld [vmem:[%s591 + $0x2d0] sm:$0xff]
  %v606 = vld [vmem:[%s591 + $0x2e0] sm:$0xff]
  %v607 = vld [vmem:[%s591 + $0x2f0] sm:$0xff]
  %v608 = vpack.c.bf16 %v593, %v592
  %v609 = vpack.c.bf16 %v595, %v594
  %v610 = vpack.c.bf16 %v597, %v596
  %v611 = vpack.c.bf16 %v599, %v598
  %v612 = vpack.c.bf16 %v601, %v600
  %v613 = vpack.c.bf16 %v603, %v602
  %v614 = vpack.c.bf16 %v605, %v604
  %v615 = vpack.c.bf16 %v607, %v606
  %v616 = vld [vmem:[%s1 + $0xc0] sm:$0xf]
  %v617 = vld [vmem:[%s1 + $0xc4] sm:$0xf]
  %v618 = vld [vmem:[%s1 + $0xc8] sm:$0xf]
  %v619 = vld [vmem:[%s1 + $0xcc] sm:$0xf]
  %v620 = vld [vmem:[%s1 + $0xd0] sm:$0xf]
  %v621 = vld [vmem:[%s1 + $0xd4] sm:$0xf]
  %v622 = vld [vmem:[%s1 + $0xd8] sm:$0xf]
  %v623 = vld [vmem:[%s1 + $0xdc] sm:$0xf]
  %v624 = vld [vmem:[%s1 + $0xe0] sm:$0xf]
  %v625 = vld [vmem:[%s1 + $0xe4] sm:$0xf]
  %v626 = vld [vmem:[%s1 + $0xe8] sm:$0xf]
  %v627 = vld [vmem:[%s1 + $0xec] sm:$0xf]
  %v628 = vld [vmem:[%s1 + $0xf0] sm:$0xf]
  %v629 = vld [vmem:[%s1 + $0xf4] sm:$0xf]
  %v630 = vld [vmem:[%s1 + $0xf8] sm:$0xf]
  %v631 = vld [vmem:[%s1 + $0xfc] sm:$0xf]
  %v648 = vunpack.c.l.b16 %v616
  %v649 = vunpack.c.l.b16 %v617
  %v650 = vunpack.c.l.b16 %v618
  %v651 = vunpack.c.l.b16 %v619
  %v652 = vunpack.c.l.b16 %v620
  %v653 = vunpack.c.l.b16 %v621
  %v654 = vunpack.c.l.b16 %v622
  %v655 = vunpack.c.l.b16 %v623
  %v656 = vunpack.c.l.b16 %v624
  %v657 = vunpack.c.l.b16 %v625
  %v658 = vunpack.c.l.b16 %v626
  %v659 = vunpack.c.l.b16 %v627
  %v660 = vunpack.c.l.b16 %v628
  %v661 = vunpack.c.l.b16 %v629
  %v662 = vunpack.c.l.b16 %v630
  %v663 = vunpack.c.l.b16 %v631
  %v664 = vpack.c.b16 %v649, %v648
  %v665 = vpack.c.b16 %v651, %v650
  %v666 = vpack.c.b16 %v653, %v652
  %v667 = vpack.c.b16 %v655, %v654
  %v668 = vpack.c.b16 %v657, %v656
  %v669 = vpack.c.b16 %v659, %v658
  %v670 = vpack.c.b16 %v661, %v660
  %v671 = vpack.c.b16 %v663, %v662
  %680 = vmatprep.subr.bf16.mxu0 0
  %681 = vmatpush1.bf16.msra.mxu0 %v671
  %682 = vmatprep.subr.bf16.mxu0 0
  %683 = vmatpush1.bf16.msra.mxu0 %v670
  %684 = vmatprep.subr.bf16.mxu0 0
  %685 = vmatpush1.bf16.msra.mxu0 %v669
  %686 = vmatprep.subr.bf16.mxu0 0
  %687 = vmatpush1.bf16.msra.mxu0 %v668
  %688 = vmatprep.subr.bf16.mxu0 0
  %689 = vmatpush1.bf16.msra.mxu0 %v667
  %690 = vmatprep.subr.bf16.mxu0 0
  %691 = vmatpush1.bf16.msra.mxu0 %v666
  %692 = vmatprep.subr.bf16.mxu0 0
  %693 = vmatpush1.bf16.msra.mxu0 %v665
  %694 = vmatprep.subr.bf16.mxu0 0
  %695 = vmatpush1.bf16.msra.mxu0 %v664
  %696 = vmatprep.subr.bf16.mxu0 0
  %697 = vmatpush2.bf16.msra.mxu0 0
  %698 = vmatprep.subr.bf16.mxu0 0
  %699 = vmatpush2.bf16.msra.mxu0 0
  %700 = vmatprep.subr.bf16.mxu0 0
  %701 = vmatpush2.bf16.msra.mxu0 0
  %702 = vmatprep.subr.bf16.mxu0 0
  %703 = vmatpush2.bf16.msra.mxu0 0
  %704 = vmatprep.subr.bf16.mxu0 0
  %705 = vmatpush2.bf16.msra.mxu0 0
  %706 = vmatprep.subr.bf16.mxu0 0
  %707 = vmatpush2.bf16.msra.mxu0 0
  %708 = vmatprep.subr.bf16.mxu0 0
  %709 = vmatpush2.bf16.msra.mxu0 0
  %710 = vmatprep.subr.bf16.mxu0 0
  %711 = vmatpush2.bf16.msra.mxu0 0
  %712 = vmatprep.mubr.bf16.mxu0 0
  %713 = vmatmul.mubr.bf16.gmra.mxu0 %v608
  %v714 = vpop.f32.mrf.mxu0
  %v715 = vadd.f32 0.0, %v714
  %v716 = vpop.f32.mrf.mxu0
  %v717 = vpop.f32.mrf.mxu0
  %v718 = vadd.f32 0.0, %v717
  %v719 = vpop.f32.mrf.mxu0
  %720 = vmatprep.mubr.bf16.mxu0 0
  %721 = vmatmul.mubr.bf16.gmra.mxu0 %v609
  %v722 = vpop.f32.mrf.mxu0
  %v723 = vadd.f32 0.0, %v722
  %v724 = vpop.f32.mrf.mxu0
  %v725 = vpop.f32.mrf.mxu0
  %v726 = vadd.f32 0.0, %v725
  %v727 = vpop.f32.mrf.mxu0
  %728 = vmatprep.mubr.bf16.mxu0 0
  %729 = vmatmul.mubr.bf16.gmra.mxu0 %v610
  %v730 = vpop.f32.mrf.mxu0
  %v731 = vadd.f32 0.0, %v730
  %v732 = vpop.f32.mrf.mxu0
  %v733 = vpop.f32.mrf.mxu0
  %v734 = vadd.f32 0.0, %v733
  %v735 = vpop.f32.mrf.mxu0
  %736 = vmatprep.mubr.bf16.mxu0 0
  %737 = vmatmul.mubr.bf16.gmra.mxu0 %v611
  %v738 = vpop.f32.mrf.mxu0
  %v739 = vadd.f32 0.0, %v738
  %v740 = vpop.f32.mrf.mxu0
  %v741 = vpop.f32.mrf.mxu0
  %v742 = vadd.f32 0.0, %v741
  %v743 = vpop.f32.mrf.mxu0
  %744 = vmatprep.mubr.bf16.mxu0 0
  %745 = vmatmul.mubr.bf16.gmra.mxu0 %v612
  %v746 = vpop.f32.mrf.mxu0
  %v747 = vadd.f32 0.0, %v746
  %v748 = vpop.f32.mrf.mxu0
  %v749 = vpop.f32.mrf.mxu0
  %v750 = vadd.f32 0.0, %v749
  %v751 = vpop.f32.mrf.mxu0
  %752 = vmatprep.mubr.bf16.mxu0 0
  %753 = vmatmul.mubr.bf16.gmra.mxu0 %v613
  %v754 = vpop.f32.mrf.mxu0
  %v755 = vadd.f32 0.0, %v754
  %v756 = vpop.f32.mrf.mxu0
  %v757 = vpop.f32.mrf.mxu0
  %v758 = vadd.f32 0.0, %v757
  %v759 = vpop.f32.mrf.mxu0
  %760 = vmatprep.mubr.bf16.mxu0 0
  %761 = vmatmul.mubr.bf16.gmra.mxu0 %v614
  %v762 = vpop.f32.mrf.mxu0
  %v763 = vadd.f32 0.0, %v762
  %v764 = vpop.f32.mrf.mxu0
  %v765 = vpop.f32.mrf.mxu0
  %v766 = vadd.f32 0.0, %v765
  %v767 = vpop.f32.mrf.mxu0
  %768 = vmatprep.mubr.bf16.mxu0 0
  %769 = vmatmul.mubr.bf16.gmra.mxu0 %v615
  %v770 = vpop.f32.mrf.mxu0
  %v771 = vadd.f32 0.0, %v770
  %v772 = vpop.f32.mrf.mxu0
  %v773 = vpop.f32.mrf.mxu0
  %v774 = vadd.f32 0.0, %v773
  %v775 = vpop.f32.mrf.mxu0
  %776 = vdwg.mxu0
  %v777 = vadd.f32 %v575, %v715
  %v778 = vadd.f32 %v576, %v718
  %v779 = vadd.f32 %v577, %v723
  %v780 = vadd.f32 %v578, %v726
  %v781 = vadd.f32 %v579, %v731
  %v782 = vadd.f32 %v580, %v734
  %v783 = vadd.f32 %v581, %v739
  %v784 = vadd.f32 %v582, %v742
  %v785 = vadd.f32 %v583, %v747
  %v786 = vadd.f32 %v584, %v750
  %v787 = vadd.f32 %v585, %v755
  %v788 = vadd.f32 %v586, %v758
  %v789 = vadd.f32 %v587, %v763
  %v790 = vadd.f32 %v588, %v766
  %v791 = vadd.f32 %v589, %v771
  %v792 = vadd.f32 %v590, %v774
  %s793 = scalar_lea.vmem %s0, 480
  %v794 = vld [vmem:[%s793] sm:$0xff]
  %v795 = vld [vmem:[%s793 + $0x10] sm:$0xff]
  %v796 = vld [vmem:[%s793 + $0x20] sm:$0xff]
  %v797 = vld [vmem:[%s793 + $0x30] sm:$0xff]
  %v798 = vld [vmem:[%s793 + $0x40] sm:$0xff]
  %v799 = vld [vmem:[%s793 + $0x50] sm:$0xff]
  %v800 = vld [vmem:[%s793 + $0x60] sm:$0xff]
  %v801 = vld [vmem:[%s793 + $0x70] sm:$0xff]
  %v802 = vld [vmem:[%s793 + $0x280] sm:$0xff]
  %v803 = vld [vmem:[%s793 + $0x290] sm:$0xff]
  %v804 = vld [vmem:[%s793 + $0x2a0] sm:$0xff]
  %v805 = vld [vmem:[%s793 + $0x2b0] sm:$0xff]
  %v806 = vld [vmem:[%s793 + $0x2c0] sm:$0xff]
  %v807 = vld [vmem:[%s793 + $0x2d0] sm:$0xff]
  %v808 = vld [vmem:[%s793 + $0x2e0] sm:$0xff]
  %v809 = vld [vmem:[%s793 + $0x2f0] sm:$0xff]
  %v810 = vpack.c.bf16 %v795, %v794
  %v811 = vpack.c.bf16 %v797, %v796
  %v812 = vpack.c.bf16 %v799, %v798
  %v813 = vpack.c.bf16 %v801, %v800
  %v814 = vpack.c.bf16 %v803, %v802
  %v815 = vpack.c.bf16 %v805, %v804
  %v816 = vpack.c.bf16 %v807, %v806
  %v817 = vpack.c.bf16 %v809, %v808
  %v818 = vld [vmem:[%s1 + $0x100] sm:$0xf]
  %v819 = vld [vmem:[%s1 + $0x104] sm:$0xf]
  %v820 = vld [vmem:[%s1 + $0x108] sm:$0xf]
  %v821 = vld [vmem:[%s1 + $0x10c] sm:$0xf]
  %v822 = vld [vmem:[%s1 + $0x110] sm:$0xf]
  %v823 = vld [vmem:[%s1 + $0x114] sm:$0xf]
  %v824 = vld [vmem:[%s1 + $0x118] sm:$0xf]
  %v825 = vld [vmem:[%s1 + $0x11c] sm:$0xf]
  %v826 = vld [vmem:[%s1 + $0x120] sm:$0xf]
  %v827 = vld [vmem:[%s1 + $0x124] sm:$0xf]
  %v828 = vld [vmem:[%s1 + $0x128] sm:$0xf]
  %v829 = vld [vmem:[%s1 + $0x12c] sm:$0xf]
  %v830 = vld [vmem:[%s1 + $0x130] sm:$0xf]
  %v831 = vld [vmem:[%s1 + $0x134] sm:$0xf]
  %v832 = vld [vmem:[%s1 + $0x138] sm:$0xf]
  %v833 = vld [vmem:[%s1 + $0x13c] sm:$0xf]
  %v850 = vunpack.c.l.b16 %v818
  %v851 = vunpack.c.l.b16 %v819
  %v852 = vunpack.c.l.b16 %v820
  %v853 = vunpack.c.l.b16 %v821
  %v854 = vunpack.c.l.b16 %v822
  %v855 = vunpack.c.l.b16 %v823
  %v856 = vunpack.c.l.b16 %v824
  %v857 = vunpack.c.l.b16 %v825
  %v858 = vunpack.c.l.b16 %v826
  %v859 = vunpack.c.l.b16 %v827
  %v860 = vunpack.c.l.b16 %v828
  %v861 = vunpack.c.l.b16 %v829
  %v862 = vunpack.c.l.b16 %v830
  %v863 = vunpack.c.l.b16 %v831
  %v864 = vunpack.c.l.b16 %v832
  %v865 = vunpack.c.l.b16 %v833
  %v866 = vpack.c.b16 %v851, %v850
  %v867 = vpack.c.b16 %v853, %v852
  %v868 = vpack.c.b16 %v855, %v854
  %v869 = vpack.c.b16 %v857, %v856
  %v870 = vpack.c.b16 %v859, %v858
  %v871 = vpack.c.b16 %v861, %v860
  %v872 = vpack.c.b16 %v863, %v862
  %v873 = vpack.c.b16 %v865, %v864
  %882 = vmatprep.subr.bf16.mxu0 0
  %883 = vmatpush1.bf16.msra.mxu0 %v873
  %884 = vmatprep.subr.bf16.mxu0 0
  %885 = vmatpush1.bf16.msra.mxu0 %v872
  %886 = vmatprep.subr.bf16.mxu0 0
  %887 = vmatpush1.bf16.msra.mxu0 %v871
  %888 = vmatprep.subr.bf16.mxu0 0
  %889 = vmatpush1.bf16.msra.mxu0 %v870
  %890 = vmatprep.subr.bf16.mxu0 0
  %891 = vmatpush1.bf16.msra.mxu0 %v869
  %892 = vmatprep.subr.bf16.mxu0 0
  %893 = vmatpush1.bf16.msra.mxu0 %v868
  %894 = vmatprep.subr.bf16.mxu0 0
  %895 = vmatpush1.bf16.msra.mxu0 %v867
  %896 = vmatprep.subr.bf16.mxu0 0
  %897 = vmatpush1.bf16.msra.mxu0 %v866
  %898 = vmatprep.subr.bf16.mxu0 0
  %899 = vmatpush2.bf16.msra.mxu0 0
  %900 = vmatprep.subr.bf16.mxu0 0
  %901 = vmatpush2.bf16.msra.mxu0 0
  %902 = vmatprep.subr.bf16.mxu0 0
  %903 = vmatpush2.bf16.msra.mxu0 0
  %904 = vmatprep.subr.bf16.mxu0 0
  %905 = vmatpush2.bf16.msra.mxu0 0
  %906 = vmatprep.subr.bf16.mxu0 0
  %907 = vmatpush2.bf16.msra.mxu0 0
  %908 = vmatprep.subr.bf16.mxu0 0
  %909 = vmatpush2.bf16.msra.mxu0 0
  %910 = vmatprep.subr.bf16.mxu0 0
  %911 = vmatpush2.bf16.msra.mxu0 0
  %912 = vmatprep.subr.bf16.mxu0 0
  %913 = vmatpush2.bf16.msra.mxu0 0
  %914 = vmatprep.mubr.bf16.mxu0 0
  %915 = vmatmul.mubr.bf16.gmra.mxu0 %v810
  %v916 = vpop.f32.mrf.mxu0
  %v917 = vadd.f32 0.0, %v916
  %v918 = vpop.f32.mrf.mxu0
  %v919 = vpop.f32.mrf.mxu0
  %v920 = vadd.f32 0.0, %v919
  %v921 = vpop.f32.mrf.mxu0
  %922 = vmatprep.mubr.bf16.mxu0 0
  %923 = vmatmul.mubr.bf16.gmra.mxu0 %v811
  %v924 = vpop.f32.mrf.mxu0
  %v925 = vadd.f32 0.0, %v924
  %v926 = vpop.f32.mrf.mxu0
  %v927 = vpop.f32.mrf.mxu0
  %v928 = vadd.f32 0.0, %v927
  %v929 = vpop.f32.mrf.mxu0
  %930 = vmatprep.mubr.bf16.mxu0 0
  %931 = vmatmul.mubr.bf16.gmra.mxu0 %v812
  %v932 = vpop.f32.mrf.mxu0
  %v933 = vadd.f32 0.0, %v932
  %v934 = vpop.f32.mrf.mxu0
  %v935 = vpop.f32.mrf.mxu0
  %v936 = vadd.f32 0.0, %v935
  %v937 = vpop.f32.mrf.mxu0
  %938 = vmatprep.mubr.bf16.mxu0 0
  %939 = vmatmul.mubr.bf16.gmra.mxu0 %v813
  %v940 = vpop.f32.mrf.mxu0
  %v941 = vadd.f32 0.0, %v940
  %v942 = vpop.f32.mrf.mxu0
  %v943 = vpop.f32.mrf.mxu0
  %v944 = vadd.f32 0.0, %v943
  %v945 = vpop.f32.mrf.mxu0
  %946 = vmatprep.mubr.bf16.mxu0 0
  %947 = vmatmul.mubr.bf16.gmra.mxu0 %v814
  %v948 = vpop.f32.mrf.mxu0
  %v949 = vadd.f32 0.0, %v948
  %v950 = vpop.f32.mrf.mxu0
  %v951 = vpop.f32.mrf.mxu0
  %v952 = vadd.f32 0.0, %v951
  %v953 = vpop.f32.mrf.mxu0
  %954 = vmatprep.mubr.bf16.mxu0 0
  %955 = vmatmul.mubr.bf16.gmra.mxu0 %v815
  %v956 = vpop.f32.mrf.mxu0
  %v957 = vadd.f32 0.0, %v956
  %v958 = vpop.f32.mrf.mxu0
  %v959 = vpop.f32.mrf.mxu0
  %v960 = vadd.f32 0.0, %v959
  %v961 = vpop.f32.mrf.mxu0
  %962 = vmatprep.mubr.bf16.mxu0 0
  %963 = vmatmul.mubr.bf16.gmra.mxu0 %v816
  %v964 = vpop.f32.mrf.mxu0
  %v965 = vadd.f32 0.0, %v964
  %v966 = vpop.f32.mrf.mxu0
  %v967 = vpop.f32.mrf.mxu0
  %v968 = vadd.f32 0.0, %v967
  %v969 = vpop.f32.mrf.mxu0
  %970 = vmatprep.mubr.bf16.mxu0 0
  %971 = vmatmul.mubr.bf16.gmra.mxu0 %v817
  %v972 = vpop.f32.mrf.mxu0
  %v973 = vadd.f32 0.0, %v972
  %v974 = vpop.f32.mrf.mxu0
  %v975 = vpop.f32.mrf.mxu0
  %v976 = vadd.f32 0.0, %v975
  %v977 = vpop.f32.mrf.mxu0
  %978 = vdwg.mxu0
  %v979 = vadd.f32 %v777, %v917
  %v980 = vadd.f32 %v778, %v920
  %v981 = vadd.f32 %v779, %v925
  %v982 = vadd.f32 %v780, %v928
  %v983 = vadd.f32 %v781, %v933
  %v984 = vadd.f32 %v782, %v936
  %v985 = vadd.f32 %v783, %v941
  %v986 = vadd.f32 %v784, %v944
  %v987 = vadd.f32 %v785, %v949
  %v988 = vadd.f32 %v786, %v952
  %v989 = vadd.f32 %v787, %v957
  %v990 = vadd.f32 %v788, %v960
  %v991 = vadd.f32 %v789, %v965
  %v992 = vadd.f32 %v790, %v968
  %v993 = vadd.f32 %v791, %v973
  %v994 = vadd.f32 %v792, %v976
  %v995 = vld [vmem:[%s591 + $0x1] sm:$0xff]
  %v996 = vld [vmem:[%s591 + $0x11] sm:$0xff]
  %v997 = vld [vmem:[%s591 + $0x21] sm:$0xff]
  %v998 = vld [vmem:[%s591 + $0x31] sm:$0xff]
  %v999 = vld [vmem:[%s591 + $0x41] sm:$0xff]
  %v1000 = vld [vmem:[%s591 + $0x51] sm:$0xff]
  %v1001 = vld [vmem:[%s591 + $0x61] sm:$0xff]
  %v1002 = vld [vmem:[%s591 + $0x71] sm:$0xff]
  %v1003 = vld [vmem:[%s591 + $0x281] sm:$0xff]
  %v1004 = vld [vmem:[%s591 + $0x291] sm:$0xff]
  %v1005 = vld [vmem:[%s591 + $0x2a1] sm:$0xff]
  %v1006 = vld [vmem:[%s591 + $0x2b1] sm:$0xff]
  %v1007 = vld [vmem:[%s591 + $0x2c1] sm:$0xff]
  %v1008 = vld [vmem:[%s591 + $0x2d1] sm:$0xff]
  %v1009 = vld [vmem:[%s591 + $0x2e1] sm:$0xff]
  %v1010 = vld [vmem:[%s591 + $0x2f1] sm:$0xff]
  %v1011 = vpack.c.bf16 %v996, %v995
  %v1012 = vpack.c.bf16 %v998, %v997
  %v1013 = vpack.c.bf16 %v1000, %v999
  %v1014 = vpack.c.bf16 %v1002, %v1001
  %v1015 = vpack.c.bf16 %v1004, %v1003
  %v1016 = vpack.c.bf16 %v1006, %v1005
  %v1017 = vpack.c.bf16 %v1008, %v1007
  %v1018 = vpack.c.bf16 %v1010, %v1009
  %v1019 = vld [vmem:[%s1 + $0x140] sm:$0xf]
  %v1020 = vld [vmem:[%s1 + $0x144] sm:$0xf]
  %v1021 = vld [vmem:[%s1 + $0x148] sm:$0xf]
  %v1022 = vld [vmem:[%s1 + $0x14c] sm:$0xf]
  %v1023 = vld [vmem:[%s1 + $0x150] sm:$0xf]
  %v1024 = vld [vmem:[%s1 + $0x154] sm:$0xf]
  %v1025 = vld [vmem:[%s1 + $0x158] sm:$0xf]
  %v1026 = vld [vmem:[%s1 + $0x15c] sm:$0xf]
  %v1027 = vld [vmem:[%s1 + $0x160] sm:$0xf]
  %v1028 = vld [vmem:[%s1 + $0x164] sm:$0xf]
  %v1029 = vld [vmem:[%s1 + $0x168] sm:$0xf]
  %v1030 = vld [vmem:[%s1 + $0x16c] sm:$0xf]
  %v1031 = vld [vmem:[%s1 + $0x170] sm:$0xf]
  %v1032 = vld [vmem:[%s1 + $0x174] sm:$0xf]
  %v1033 = vld [vmem:[%s1 + $0x178] sm:$0xf]
  %v1034 = vld [vmem:[%s1 + $0x17c] sm:$0xf]
  %v1051 = vunpack.c.l.b16 %v1019
  %v1052 = vunpack.c.l.b16 %v1020
  %v1053 = vunpack.c.l.b16 %v1021
  %v1054 = vunpack.c.l.b16 %v1022
  %v1055 = vunpack.c.l.b16 %v1023
  %v1056 = vunpack.c.l.b16 %v1024
  %v1057 = vunpack.c.l.b16 %v1025
  %v1058 = vunpack.c.l.b16 %v1026
  %v1059 = vunpack.c.l.b16 %v1027
  %v1060 = vunpack.c.l.b16 %v1028
  %v1061 = vunpack.c.l.b16 %v1029
  %v1062 = vunpack.c.l.b16 %v1030
  %v1063 = vunpack.c.l.b16 %v1031
  %v1064 = vunpack.c.l.b16 %v1032
  %v1065 = vunpack.c.l.b16 %v1033
  %v1066 = vunpack.c.l.b16 %v1034
  %v1067 = vpack.c.b16 %v1052, %v1051
  %v1068 = vpack.c.b16 %v1054, %v1053
  %v1069 = vpack.c.b16 %v1056, %v1055
  %v1070 = vpack.c.b16 %v1058, %v1057
  %v1071 = vpack.c.b16 %v1060, %v1059
  %v1072 = vpack.c.b16 %v1062, %v1061
  %v1073 = vpack.c.b16 %v1064, %v1063
  %v1074 = vpack.c.b16 %v1066, %v1065
  %1083 = vmatprep.subr.bf16.mxu0 0
  %1084 = vmatpush1.bf16.msra.mxu0 %v1074
  %1085 = vmatprep.subr.bf16.mxu0 0
  %1086 = vmatpush1.bf16.msra.mxu0 %v1073
  %1087 = vmatprep.subr.bf16.mxu0 0
  %1088 = vmatpush1.bf16.msra.mxu0 %v1072
  %1089 = vmatprep.subr.bf16.mxu0 0
  %1090 = vmatpush1.bf16.msra.mxu0 %v1071
  %1091 = vmatprep.subr.bf16.mxu0 0
  %1092 = vmatpush1.bf16.msra.mxu0 %v1070
  %1093 = vmatprep.subr.bf16.mxu0 0
  %1094 = vmatpush1.bf16.msra.mxu0 %v1069
  %1095 = vmatprep.subr.bf16.mxu0 0
  %1096 = vmatpush1.bf16.msra.mxu0 %v1068
  %1097 = vmatprep.subr.bf16.mxu0 0
  %1098 = vmatpush1.bf16.msra.mxu0 %v1067
  %1099 = vmatprep.subr.bf16.mxu0 0
  %1100 = vmatpush2.bf16.msra.mxu0 0
  %1101 = vmatprep.subr.bf16.mxu0 0
  %1102 = vmatpush2.bf16.msra.mxu0 0
  %1103 = vmatprep.subr.bf16.mxu0 0
  %1104 = vmatpush2.bf16.msra.mxu0 0
  %1105 = vmatprep.subr.bf16.mxu0 0
  %1106 = vmatpush2.bf16.msra.mxu0 0
  %1107 = vmatprep.subr.bf16.mxu0 0
  %1108 = vmatpush2.bf16.msra.mxu0 0
  %1109 = vmatprep.subr.bf16.mxu0 0
  %1110 = vmatpush2.bf16.msra.mxu0 0
  %1111 = vmatprep.subr.bf16.mxu0 0
  %1112 = vmatpush2.bf16.msra.mxu0 0
  %1113 = vmatprep.subr.bf16.mxu0 0
  %1114 = vmatpush2.bf16.msra.mxu0 0
  %1115 = vmatprep.mubr.bf16.mxu0 0
  %1116 = vmatmul.mubr.bf16.gmra.mxu0 %v1011
  %v1117 = vpop.f32.mrf.mxu0
  %v1118 = vadd.f32 0.0, %v1117
  %v1119 = vpop.f32.mrf.mxu0
  %v1120 = vpop.f32.mrf.mxu0
  %v1121 = vadd.f32 0.0, %v1120
  %v1122 = vpop.f32.mrf.mxu0
  %1123 = vmatprep.mubr.bf16.mxu0 0
  %1124 = vmatmul.mubr.bf16.gmra.mxu0 %v1012
  %v1125 = vpop.f32.mrf.mxu0
  %v1126 = vadd.f32 0.0, %v1125
  %v1127 = vpop.f32.mrf.mxu0
  %v1128 = vpop.f32.mrf.mxu0
  %v1129 = vadd.f32 0.0, %v1128
  %v1130 = vpop.f32.mrf.mxu0
  %1131 = vmatprep.mubr.bf16.mxu0 0
  %1132 = vmatmul.mubr.bf16.gmra.mxu0 %v1013
  %v1133 = vpop.f32.mrf.mxu0
  %v1134 = vadd.f32 0.0, %v1133
  %v1135 = vpop.f32.mrf.mxu0
  %v1136 = vpop.f32.mrf.mxu0
  %v1137 = vadd.f32 0.0, %v1136
  %v1138 = vpop.f32.mrf.mxu0
  %1139 = vmatprep.mubr.bf16.mxu0 0
  %1140 = vmatmul.mubr.bf16.gmra.mxu0 %v1014
  %v1141 = vpop.f32.mrf.mxu0
  %v1142 = vadd.f32 0.0, %v1141
  %v1143 = vpop.f32.mrf.mxu0
  %v1144 = vpop.f32.mrf.mxu0
  %v1145 = vadd.f32 0.0, %v1144
  %v1146 = vpop.f32.mrf.mxu0
  %1147 = vmatprep.mubr.bf16.mxu0 0
  %1148 = vmatmul.mubr.bf16.gmra.mxu0 %v1015
  %v1149 = vpop.f32.mrf.mxu0
  %v1150 = vadd.f32 0.0, %v1149
  %v1151 = vpop.f32.mrf.mxu0
  %v1152 = vpop.f32.mrf.mxu0
  %v1153 = vadd.f32 0.0, %v1152
  %v1154 = vpop.f32.mrf.mxu0
  %1155 = vmatprep.mubr.bf16.mxu0 0
  %1156 = vmatmul.mubr.bf16.gmra.mxu0 %v1016
  %v1157 = vpop.f32.mrf.mxu0
  %v1158 = vadd.f32 0.0, %v1157
  %v1159 = vpop.f32.mrf.mxu0
  %v1160 = vpop.f32.mrf.mxu0
  %v1161 = vadd.f32 0.0, %v1160
  %v1162 = vpop.f32.mrf.mxu0
  %1163 = vmatprep.mubr.bf16.mxu0 0
  %1164 = vmatmul.mubr.bf16.gmra.mxu0 %v1017
  %v1165 = vpop.f32.mrf.mxu0
  %v1166 = vadd.f32 0.0, %v1165
  %v1167 = vpop.f32.mrf.mxu0
  %v1168 = vpop.f32.mrf.mxu0
  %v1169 = vadd.f32 0.0, %v1168
  %v1170 = vpop.f32.mrf.mxu0
  %1171 = vmatprep.mubr.bf16.mxu0 0
  %1172 = vmatmul.mubr.bf16.gmra.mxu0 %v1018
  %v1173 = vpop.f32.mrf.mxu0
  %v1174 = vadd.f32 0.0, %v1173
  %v1175 = vpop.f32.mrf.mxu0
  %v1176 = vpop.f32.mrf.mxu0
  %v1177 = vadd.f32 0.0, %v1176
  %v1178 = vpop.f32.mrf.mxu0
  %1179 = vdwg.mxu0
  %v1180 = vadd.f32 %v979, %v1118
  %v1181 = vadd.f32 %v980, %v1121
  %v1182 = vadd.f32 %v981, %v1126
  %v1183 = vadd.f32 %v982, %v1129
  %v1184 = vadd.f32 %v983, %v1134
  %v1185 = vadd.f32 %v984, %v1137
  %v1186 = vadd.f32 %v985, %v1142
  %v1187 = vadd.f32 %v986, %v1145
  %v1188 = vadd.f32 %v987, %v1150
  %v1189 = vadd.f32 %v988, %v1153
  %v1190 = vadd.f32 %v989, %v1158
  %v1191 = vadd.f32 %v990, %v1161
  %v1192 = vadd.f32 %v991, %v1166
  %v1193 = vadd.f32 %v992, %v1169
  %v1194 = vadd.f32 %v993, %v1174
  %v1195 = vadd.f32 %v994, %v1177
  %s1196 = scalar_lea.vmem %s0, 16
  %v1197 = vld [vmem:[%s1196] sm:$0xff]
  %v1198 = vld [vmem:[%s1196 + $0x10] sm:$0xff]
  %v1199 = vld [vmem:[%s1196 + $0x20] sm:$0xff]
  %v1200 = vld [vmem:[%s1196 + $0x30] sm:$0xff]
  %v1201 = vld [vmem:[%s1196 + $0x40] sm:$0xff]
  %v1202 = vld [vmem:[%s1196 + $0x50] sm:$0xff]
  %v1203 = vld [vmem:[%s1196 + $0x60] sm:$0xff]
  %v1204 = vld [vmem:[%s1196 + $0x70] sm:$0xff]
  %v1205 = vld [vmem:[%s1196 + $0x280] sm:$0xff]
  %v1206 = vld [vmem:[%s1196 + $0x290] sm:$0xff]
  %v1207 = vld [vmem:[%s1196 + $0x2a0] sm:$0xff]
  %v1208 = vld [vmem:[%s1196 + $0x2b0] sm:$0xff]
  %v1209 = vld [vmem:[%s1196 + $0x2c0] sm:$0xff]
  %v1210 = vld [vmem:[%s1196 + $0x2d0] sm:$0xff]
  %v1211 = vld [vmem:[%s1196 + $0x2e0] sm:$0xff]
  %v1212 = vld [vmem:[%s1196 + $0x2f0] sm:$0xff]
  %v1213 = vpack.c.bf16 %v1198, %v1197
  %v1214 = vpack.c.bf16 %v1200, %v1199
  %v1215 = vpack.c.bf16 %v1202, %v1201
  %v1216 = vpack.c.bf16 %v1204, %v1203
  %v1217 = vpack.c.bf16 %v1206, %v1205
  %v1218 = vpack.c.bf16 %v1208, %v1207
  %v1219 = vpack.c.bf16 %v1210, %v1209
  %v1220 = vpack.c.bf16 %v1212, %v1211
  %v1221 = vld [vmem:[%s1 + $0x180] sm:$0xf]
  %v1222 = vld [vmem:[%s1 + $0x184] sm:$0xf]
  %v1223 = vld [vmem:[%s1 + $0x188] sm:$0xf]
  %v1224 = vld [vmem:[%s1 + $0x18c] sm:$0xf]
  %v1225 = vld [vmem:[%s1 + $0x190] sm:$0xf]
  %v1226 = vld [vmem:[%s1 + $0x194] sm:$0xf]
  %v1227 = vld [vmem:[%s1 + $0x198] sm:$0xf]
  %v1228 = vld [vmem:[%s1 + $0x19c] sm:$0xf]
  %v1229 = vld [vmem:[%s1 + $0x1a0] sm:$0xf]
  %v1230 = vld [vmem:[%s1 + $0x1a4] sm:$0xf]
  %v1231 = vld [vmem:[%s1 + $0x1a8] sm:$0xf]
  %v1232 = vld [vmem:[%s1 + $0x1ac] sm:$0xf]
  %v1233 = vld [vmem:[%s1 + $0x1b0] sm:$0xf]
  %v1234 = vld [vmem:[%s1 + $0x1b4] sm:$0xf]
  %v1235 = vld [vmem:[%s1 + $0x1b8] sm:$0xf]
  %v1236 = vld [vmem:[%s1 + $0x1bc] sm:$0xf]
  %v1253 = vunpack.c.l.b16 %v1221
  %v1254 = vunpack.c.l.b16 %v1222
  %v1255 = vunpack.c.l.b16 %v1223
  %v1256 = vunpack.c.l.b16 %v1224
  %v1257 = vunpack.c.l.b16 %v1225
  %v1258 = vunpack.c.l.b16 %v1226
  %v1259 = vunpack.c.l.b16 %v1227
  %v1260 = vunpack.c.l.b16 %v1228
  %v1261 = vunpack.c.l.b16 %v1229
  %v1262 = vunpack.c.l.b16 %v1230
  %v1263 = vunpack.c.l.b16 %v1231
  %v1264 = vunpack.c.l.b16 %v1232
  %v1265 = vunpack.c.l.b16 %v1233
  %v1266 = vunpack.c.l.b16 %v1234
  %v1267 = vunpack.c.l.b16 %v1235
  %v1268 = vunpack.c.l.b16 %v1236
  %v1269 = vpack.c.b16 %v1254, %v1253
  %v1270 = vpack.c.b16 %v1256, %v1255
  %v1271 = vpack.c.b16 %v1258, %v1257
  %v1272 = vpack.c.b16 %v1260, %v1259
  %v1273 = vpack.c.b16 %v1262, %v1261
  %v1274 = vpack.c.b16 %v1264, %v1263
  %v1275 = vpack.c.b16 %v1266, %v1265
  %v1276 = vpack.c.b16 %v1268, %v1267
  %1285 = vmatprep.subr.bf16.mxu0 0
  %1286 = vmatpush1.bf16.msra.mxu0 %v1276
  %1287 = vmatprep.subr.bf16.mxu0 0
  %1288 = vmatpush1.bf16.msra.mxu0 %v1275
  %1289 = vmatprep.subr.bf16.mxu0 0
  %1290 = vmatpush1.bf16.msra.mxu0 %v1274
  %1291 = vmatprep.subr.bf16.mxu0 0
  %1292 = vmatpush1.bf16.msra.mxu0 %v1273
  %1293 = vmatprep.subr.bf16.mxu0 0
  %1294 = vmatpush1.bf16.msra.mxu0 %v1272
  %1295 = vmatprep.subr.bf16.mxu0 0
  %1296 = vmatpush1.bf16.msra.mxu0 %v1271
  %1297 = vmatprep.subr.bf16.mxu0 0
  %1298 = vmatpush1.bf16.msra.mxu0 %v1270
  %1299 = vmatprep.subr.bf16.mxu0 0
  %1300 = vmatpush1.bf16.msra.mxu0 %v1269
  %1301 = vmatprep.subr.bf16.mxu0 0
  %1302 = vmatpush2.bf16.msra.mxu0 0
  %1303 = vmatprep.subr.bf16.mxu0 0
  %1304 = vmatpush2.bf16.msra.mxu0 0
  %1305 = vmatprep.subr.bf16.mxu0 0
  %1306 = vmatpush2.bf16.msra.mxu0 0
  %1307 = vmatprep.subr.bf16.mxu0 0
  %1308 = vmatpush2.bf16.msra.mxu0 0
  %1309 = vmatprep.subr.bf16.mxu0 0
  %1310 = vmatpush2.bf16.msra.mxu0 0
  %1311 = vmatprep.subr.bf16.mxu0 0
  %1312 = vmatpush2.bf16.msra.mxu0 0
  %1313 = vmatprep.subr.bf16.mxu0 0
  %1314 = vmatpush2.bf16.msra.mxu0 0
  %1315 = vmatprep.subr.bf16.mxu0 0
  %1316 = vmatpush2.bf16.msra.mxu0 0
  %1317 = vmatprep.mubr.bf16.mxu0 0
  %1318 = vmatmul.mubr.bf16.gmra.mxu0 %v1213
  %v1319 = vpop.f32.mrf.mxu0
  %v1320 = vadd.f32 0.0, %v1319
  %v1321 = vpop.f32.mrf.mxu0
  %v1322 = vpop.f32.mrf.mxu0
  %v1323 = vadd.f32 0.0, %v1322
  %v1324 = vpop.f32.mrf.mxu0
  %1325 = vmatprep.mubr.bf16.mxu0 0
  %1326 = vmatmul.mubr.bf16.gmra.mxu0 %v1214
  %v1327 = vpop.f32.mrf.mxu0
  %v1328 = vadd.f32 0.0, %v1327
  %v1329 = vpop.f32.mrf.mxu0
  %v1330 = vpop.f32.mrf.mxu0
  %v1331 = vadd.f32 0.0, %v1330
  %v1332 = vpop.f32.mrf.mxu0
  %1333 = vmatprep.mubr.bf16.mxu0 0
  %1334 = vmatmul.mubr.bf16.gmra.mxu0 %v1215
  %v1335 = vpop.f32.mrf.mxu0
  %v1336 = vadd.f32 0.0, %v1335
  %v1337 = vpop.f32.mrf.mxu0
  %v1338 = vpop.f32.mrf.mxu0
  %v1339 = vadd.f32 0.0, %v1338
  %v1340 = vpop.f32.mrf.mxu0
  %1341 = vmatprep.mubr.bf16.mxu0 0
  %1342 = vmatmul.mubr.bf16.gmra.mxu0 %v1216
  %v1343 = vpop.f32.mrf.mxu0
  %v1344 = vadd.f32 0.0, %v1343
  %v1345 = vpop.f32.mrf.mxu0
  %v1346 = vpop.f32.mrf.mxu0
  %v1347 = vadd.f32 0.0, %v1346
  %v1348 = vpop.f32.mrf.mxu0
  %1349 = vmatprep.mubr.bf16.mxu0 0
  %1350 = vmatmul.mubr.bf16.gmra.mxu0 %v1217
  %v1351 = vpop.f32.mrf.mxu0
  %v1352 = vadd.f32 0.0, %v1351
  %v1353 = vpop.f32.mrf.mxu0
  %v1354 = vpop.f32.mrf.mxu0
  %v1355 = vadd.f32 0.0, %v1354
  %v1356 = vpop.f32.mrf.mxu0
  %1357 = vmatprep.mubr.bf16.mxu0 0
  %1358 = vmatmul.mubr.bf16.gmra.mxu0 %v1218
  %v1359 = vpop.f32.mrf.mxu0
  %v1360 = vadd.f32 0.0, %v1359
  %v1361 = vpop.f32.mrf.mxu0
  %v1362 = vpop.f32.mrf.mxu0
  %v1363 = vadd.f32 0.0, %v1362
  %v1364 = vpop.f32.mrf.mxu0
  %1365 = vmatprep.mubr.bf16.mxu0 0
  %1366 = vmatmul.mubr.bf16.gmra.mxu0 %v1219
  %v1367 = vpop.f32.mrf.mxu0
  %v1368 = vadd.f32 0.0, %v1367
  %v1369 = vpop.f32.mrf.mxu0
  %v1370 = vpop.f32.mrf.mxu0
  %v1371 = vadd.f32 0.0, %v1370
  %v1372 = vpop.f32.mrf.mxu0
  %1373 = vmatprep.mubr.bf16.mxu0 0
  %1374 = vmatmul.mubr.bf16.gmra.mxu0 %v1220
  %v1375 = vpop.f32.mrf.mxu0
  %v1376 = vadd.f32 0.0, %v1375
  %v1377 = vpop.f32.mrf.mxu0
  %v1378 = vpop.f32.mrf.mxu0
  %v1379 = vadd.f32 0.0, %v1378
  %v1380 = vpop.f32.mrf.mxu0
  %1381 = vdwg.mxu0
  %v1382 = vadd.f32 %v1180, %v1320
  %v1383 = vadd.f32 %v1181, %v1323
  %v1384 = vadd.f32 %v1182, %v1328
  %v1385 = vadd.f32 %v1183, %v1331
  %v1386 = vadd.f32 %v1184, %v1336
  %v1387 = vadd.f32 %v1185, %v1339
  %v1388 = vadd.f32 %v1186, %v1344
  %v1389 = vadd.f32 %v1187, %v1347
  %v1390 = vadd.f32 %v1188, %v1352
  %v1391 = vadd.f32 %v1189, %v1355
  %v1392 = vadd.f32 %v1190, %v1360
  %v1393 = vadd.f32 %v1191, %v1363
  %v1394 = vadd.f32 %v1192, %v1368
  %v1395 = vadd.f32 %v1193, %v1371
  %v1396 = vadd.f32 %v1194, %v1376
  %v1397 = vadd.f32 %v1195, %v1379
  %s1398 = scalar_lea.vmem %s0, 176
  %v1399 = vld [vmem:[%s1398] sm:$0xff]
  %v1400 = vld [vmem:[%s1398 + $0x10] sm:$0xff]
  %v1401 = vld [vmem:[%s1398 + $0x20] sm:$0xff]
  %v1402 = vld [vmem:[%s1398 + $0x30] sm:$0xff]
  %v1403 = vld [vmem:[%s1398 + $0x40] sm:$0xff]
  %v1404 = vld [vmem:[%s1398 + $0x50] sm:$0xff]
  %v1405 = vld [vmem:[%s1398 + $0x60] sm:$0xff]
  %v1406 = vld [vmem:[%s1398 + $0x70] sm:$0xff]
  %v1407 = vld [vmem:[%s1398 + $0x280] sm:$0xff]
  %v1408 = vld [vmem:[%s1398 + $0x290] sm:$0xff]
  %v1409 = vld [vmem:[%s1398 + $0x2a0] sm:$0xff]
  %v1410 = vld [vmem:[%s1398 + $0x2b0] sm:$0xff]
  %v1411 = vld [vmem:[%s1398 + $0x2c0] sm:$0xff]
  %v1412 = vld [vmem:[%s1398 + $0x2d0] sm:$0xff]
  %v1413 = vld [vmem:[%s1398 + $0x2e0] sm:$0xff]
  %v1414 = vld [vmem:[%s1398 + $0x2f0] sm:$0xff]
  %v1415 = vpack.c.bf16 %v1400, %v1399
  %v1416 = vpack.c.bf16 %v1402, %v1401
  %v1417 = vpack.c.bf16 %v1404, %v1403
  %v1418 = vpack.c.bf16 %v1406, %v1405
  %v1419 = vpack.c.bf16 %v1408, %v1407
  %v1420 = vpack.c.bf16 %v1410, %v1409
  %v1421 = vpack.c.bf16 %v1412, %v1411
  %v1422 = vpack.c.bf16 %v1414, %v1413
  %v1423 = vld [vmem:[%s1 + $0x1c0] sm:$0xf]
  %v1424 = vld [vmem:[%s1 + $0x1c4] sm:$0xf]
  %v1425 = vld [vmem:[%s1 + $0x1c8] sm:$0xf]
  %v1426 = vld [vmem:[%s1 + $0x1cc] sm:$0xf]
  %v1427 = vld [vmem:[%s1 + $0x1d0] sm:$0xf]
  %v1428 = vld [vmem:[%s1 + $0x1d4] sm:$0xf]
  %v1429 = vld [vmem:[%s1 + $0x1d8] sm:$0xf]
  %v1430 = vld [vmem:[%s1 + $0x1dc] sm:$0xf]
  %v1431 = vld [vmem:[%s1 + $0x1e0] sm:$0xf]
  %v1432 = vld [vmem:[%s1 + $0x1e4] sm:$0xf]
  %v1433 = vld [vmem:[%s1 + $0x1e8] sm:$0xf]
  %v1434 = vld [vmem:[%s1 + $0x1ec] sm:$0xf]
  %v1435 = vld [vmem:[%s1 + $0x1f0] sm:$0xf]
  %v1436 = vld [vmem:[%s1 + $0x1f4] sm:$0xf]
  %v1437 = vld [vmem:[%s1 + $0x1f8] sm:$0xf]
  %v1438 = vld [vmem:[%s1 + $0x1fc] sm:$0xf]
  %v1455 = vunpack.c.l.b16 %v1423
  %v1456 = vunpack.c.l.b16 %v1424
  %v1457 = vunpack.c.l.b16 %v1425
  %v1458 = vunpack.c.l.b16 %v1426
  %v1459 = vunpack.c.l.b16 %v1427
  %v1460 = vunpack.c.l.b16 %v1428
  %v1461 = vunpack.c.l.b16 %v1429
  %v1462 = vunpack.c.l.b16 %v1430
  %v1463 = vunpack.c.l.b16 %v1431
  %v1464 = vunpack.c.l.b16 %v1432
  %v1465 = vunpack.c.l.b16 %v1433
  %v1466 = vunpack.c.l.b16 %v1434
  %v1467 = vunpack.c.l.b16 %v1435
  %v1468 = vunpack.c.l.b16 %v1436
  %v1469 = vunpack.c.l.b16 %v1437
  %v1470 = vunpack.c.l.b16 %v1438
  %v1471 = vpack.c.b16 %v1456, %v1455
  %v1472 = vpack.c.b16 %v1458, %v1457
  %v1473 = vpack.c.b16 %v1460, %v1459
  %v1474 = vpack.c.b16 %v1462, %v1461
  %v1475 = vpack.c.b16 %v1464, %v1463
  %v1476 = vpack.c.b16 %v1466, %v1465
  %v1477 = vpack.c.b16 %v1468, %v1467
  %v1478 = vpack.c.b16 %v1470, %v1469
  %1487 = vmatprep.subr.bf16.mxu0 0
  %1488 = vmatpush1.bf16.msra.mxu0 %v1478
  %1489 = vmatprep.subr.bf16.mxu0 0
  %1490 = vmatpush1.bf16.msra.mxu0 %v1477
  %1491 = vmatprep.subr.bf16.mxu0 0
  %1492 = vmatpush1.bf16.msra.mxu0 %v1476
  %1493 = vmatprep.subr.bf16.mxu0 0
  %1494 = vmatpush1.bf16.msra.mxu0 %v1475
  %1495 = vmatprep.subr.bf16.mxu0 0
  %1496 = vmatpush1.bf16.msra.mxu0 %v1474
  %1497 = vmatprep.subr.bf16.mxu0 0
  %1498 = vmatpush1.bf16.msra.mxu0 %v1473
  %1499 = vmatprep.subr.bf16.mxu0 0
  %1500 = vmatpush1.bf16.msra.mxu0 %v1472
  %1501 = vmatprep.subr.bf16.mxu0 0
  %1502 = vmatpush1.bf16.msra.mxu0 %v1471
  %1503 = vmatprep.subr.bf16.mxu0 0
  %1504 = vmatpush2.bf16.msra.mxu0 0
  %1505 = vmatprep.subr.bf16.mxu0 0
  %1506 = vmatpush2.bf16.msra.mxu0 0
  %1507 = vmatprep.subr.bf16.mxu0 0
  %1508 = vmatpush2.bf16.msra.mxu0 0
  %1509 = vmatprep.subr.bf16.mxu0 0
  %1510 = vmatpush2.bf16.msra.mxu0 0
  %1511 = vmatprep.subr.bf16.mxu0 0
  %1512 = vmatpush2.bf16.msra.mxu0 0
  %1513 = vmatprep.subr.bf16.mxu0 0
  %1514 = vmatpush2.bf16.msra.mxu0 0
  %1515 = vmatprep.subr.bf16.mxu0 0
  %1516 = vmatpush2.bf16.msra.mxu0 0
  %1517 = vmatprep.subr.bf16.mxu0 0
  %1518 = vmatpush2.bf16.msra.mxu0 0
  %1519 = vmatprep.mubr.bf16.mxu0 0
  %1520 = vmatmul.mubr.bf16.gmra.mxu0 %v1415
  %v1521 = vpop.f32.mrf.mxu0
  %v1522 = vadd.f32 0.0, %v1521
  %v1523 = vpop.f32.mrf.mxu0
  %v1524 = vpop.f32.mrf.mxu0
  %v1525 = vadd.f32 0.0, %v1524
  %v1526 = vpop.f32.mrf.mxu0
  %1527 = vmatprep.mubr.bf16.mxu0 0
  %1528 = vmatmul.mubr.bf16.gmra.mxu0 %v1416
  %v1529 = vpop.f32.mrf.mxu0
  %v1530 = vadd.f32 0.0, %v1529
  %v1531 = vpop.f32.mrf.mxu0
  %v1532 = vpop.f32.mrf.mxu0
  %v1533 = vadd.f32 0.0, %v1532
  %v1534 = vpop.f32.mrf.mxu0
  %1535 = vmatprep.mubr.bf16.mxu0 0
  %1536 = vmatmul.mubr.bf16.gmra.mxu0 %v1417
  %v1537 = vpop.f32.mrf.mxu0
  %v1538 = vadd.f32 0.0, %v1537
  %v1539 = vpop.f32.mrf.mxu0
  %v1540 = vpop.f32.mrf.mxu0
  %v1541 = vadd.f32 0.0, %v1540
  %v1542 = vpop.f32.mrf.mxu0
  %1543 = vmatprep.mubr.bf16.mxu0 0
  %1544 = vmatmul.mubr.bf16.gmra.mxu0 %v1418
  %v1545 = vpop.f32.mrf.mxu0
  %v1546 = vadd.f32 0.0, %v1545
  %v1547 = vpop.f32.mrf.mxu0
  %v1548 = vpop.f32.mrf.mxu0
  %v1549 = vadd.f32 0.0, %v1548
  %v1550 = vpop.f32.mrf.mxu0
  %1551 = vmatprep.mubr.bf16.mxu0 0
  %1552 = vmatmul.mubr.bf16.gmra.mxu0 %v1419
  %v1553 = vpop.f32.mrf.mxu0
  %v1554 = vadd.f32 0.0, %v1553
  %v1555 = vpop.f32.mrf.mxu0
  %v1556 = vpop.f32.mrf.mxu0
  %v1557 = vadd.f32 0.0, %v1556
  %v1558 = vpop.f32.mrf.mxu0
  %1559 = vmatprep.mubr.bf16.mxu0 0
  %1560 = vmatmul.mubr.bf16.gmra.mxu0 %v1420
  %v1561 = vpop.f32.mrf.mxu0
  %v1562 = vadd.f32 0.0, %v1561
  %v1563 = vpop.f32.mrf.mxu0
  %v1564 = vpop.f32.mrf.mxu0
  %v1565 = vadd.f32 0.0, %v1564
  %v1566 = vpop.f32.mrf.mxu0
  %1567 = vmatprep.mubr.bf16.mxu0 0
  %1568 = vmatmul.mubr.bf16.gmra.mxu0 %v1421
  %v1569 = vpop.f32.mrf.mxu0
  %v1570 = vadd.f32 0.0, %v1569
  %v1571 = vpop.f32.mrf.mxu0
  %v1572 = vpop.f32.mrf.mxu0
  %v1573 = vadd.f32 0.0, %v1572
  %v1574 = vpop.f32.mrf.mxu0
  %1575 = vmatprep.mubr.bf16.mxu0 0
  %1576 = vmatmul.mubr.bf16.gmra.mxu0 %v1422
  %v1577 = vpop.f32.mrf.mxu0
  %v1578 = vadd.f32 0.0, %v1577
  %v1579 = vpop.f32.mrf.mxu0
  %v1580 = vpop.f32.mrf.mxu0
  %v1581 = vadd.f32 0.0, %v1580
  %v1582 = vpop.f32.mrf.mxu0
  %1583 = vdwg.mxu0
  %v1584 = vadd.f32 %v1382, %v1522
  %v1585 = vadd.f32 %v1383, %v1525
  %v1586 = vadd.f32 %v1384, %v1530
  %v1587 = vadd.f32 %v1385, %v1533
  %v1588 = vadd.f32 %v1386, %v1538
  %v1589 = vadd.f32 %v1387, %v1541
  %v1590 = vadd.f32 %v1388, %v1546
  %v1591 = vadd.f32 %v1389, %v1549
  %v1592 = vadd.f32 %v1390, %v1554
  %v1593 = vadd.f32 %v1391, %v1557
  %v1594 = vadd.f32 %v1392, %v1562
  %v1595 = vadd.f32 %v1393, %v1565
  %v1596 = vadd.f32 %v1394, %v1570
  %v1597 = vadd.f32 %v1395, %v1573
  %v1598 = vadd.f32 %v1396, %v1578
  %v1599 = vadd.f32 %v1397, %v1581
  %v1600 = vld [vmem:[%s1196 + $0x1] sm:$0xff]
  %v1601 = vld [vmem:[%s1196 + $0x11] sm:$0xff]
  %v1602 = vld [vmem:[%s1196 + $0x21] sm:$0xff]
  %v1603 = vld [vmem:[%s1196 + $0x31] sm:$0xff]
  %v1604 = vld [vmem:[%s1196 + $0x41] sm:$0xff]
  %v1605 = vld [vmem:[%s1196 + $0x51] sm:$0xff]
  %v1606 = vld [vmem:[%s1196 + $0x61] sm:$0xff]
  %v1607 = vld [vmem:[%s1196 + $0x71] sm:$0xff]
  %v1608 = vld [vmem:[%s1196 + $0x281] sm:$0xff]
  %v1609 = vld [vmem:[%s1196 + $0x291] sm:$0xff]
  %v1610 = vld [vmem:[%s1196 + $0x2a1] sm:$0xff]
  %v1611 = vld [vmem:[%s1196 + $0x2b1] sm:$0xff]
  %v1612 = vld [vmem:[%s1196 + $0x2c1] sm:$0xff]
  %v1613 = vld [vmem:[%s1196 + $0x2d1] sm:$0xff]
  %v1614 = vld [vmem:[%s1196 + $0x2e1] sm:$0xff]
  %v1615 = vld [vmem:[%s1196 + $0x2f1] sm:$0xff]
  %v1616 = vpack.c.bf16 %v1601, %v1600
  %v1617 = vpack.c.bf16 %v1603, %v1602
  %v1618 = vpack.c.bf16 %v1605, %v1604
  %v1619 = vpack.c.bf16 %v1607, %v1606
  %v1620 = vpack.c.bf16 %v1609, %v1608
  %v1621 = vpack.c.bf16 %v1611, %v1610
  %v1622 = vpack.c.bf16 %v1613, %v1612
  %v1623 = vpack.c.bf16 %v1615, %v1614
  %v1624 = vld [vmem:[%s1 + $0x200] sm:$0xf]
  %v1625 = vld [vmem:[%s1 + $0x204] sm:$0xf]
  %v1626 = vld [vmem:[%s1 + $0x208] sm:$0xf]
  %v1627 = vld [vmem:[%s1 + $0x20c] sm:$0xf]
  %v1628 = vld [vmem:[%s1 + $0x210] sm:$0xf]
  %v1629 = vld [vmem:[%s1 + $0x214] sm:$0xf]
  %v1630 = vld [vmem:[%s1 + $0x218] sm:$0xf]
  %v1631 = vld [vmem:[%s1 + $0x21c] sm:$0xf]
  %v1632 = vld [vmem:[%s1 + $0x220] sm:$0xf]
  %v1633 = vld [vmem:[%s1 + $0x224] sm:$0xf]
  %v1634 = vld [vmem:[%s1 + $0x228] sm:$0xf]
  %v1635 = vld [vmem:[%s1 + $0x22c] sm:$0xf]
  %v1636 = vld [vmem:[%s1 + $0x230] sm:$0xf]
  %v1637 = vld [vmem:[%s1 + $0x234] sm:$0xf]
  %v1638 = vld [vmem:[%s1 + $0x238] sm:$0xf]
  %v1639 = vld [vmem:[%s1 + $0x23c] sm:$0xf]
  %v1656 = vunpack.c.l.b16 %v1624
  %v1657 = vunpack.c.l.b16 %v1625
  %v1658 = vunpack.c.l.b16 %v1626
  %v1659 = vunpack.c.l.b16 %v1627
  %v1660 = vunpack.c.l.b16 %v1628
  %v1661 = vunpack.c.l.b16 %v1629
  %v1662 = vunpack.c.l.b16 %v1630
  %v1663 = vunpack.c.l.b16 %v1631
  %v1664 = vunpack.c.l.b16 %v1632
  %v1665 = vunpack.c.l.b16 %v1633
  %v1666 = vunpack.c.l.b16 %v1634
  %v1667 = vunpack.c.l.b16 %v1635
  %v1668 = vunpack.c.l.b16 %v1636
  %v1669 = vunpack.c.l.b16 %v1637
  %v1670 = vunpack.c.l.b16 %v1638
  %v1671 = vunpack.c.l.b16 %v1639
  %v1672 = vpack.c.b16 %v1657, %v1656
  %v1673 = vpack.c.b16 %v1659, %v1658
  %v1674 = vpack.c.b16 %v1661, %v1660
  %v1675 = vpack.c.b16 %v1663, %v1662
  %v1676 = vpack.c.b16 %v1665, %v1664
  %v1677 = vpack.c.b16 %v1667, %v1666
  %v1678 = vpack.c.b16 %v1669, %v1668
  %v1679 = vpack.c.b16 %v1671, %v1670
  %1688 = vmatprep.subr.bf16.mxu0 0
  %1689 = vmatpush1.bf16.msra.mxu0 %v1679
  %1690 = vmatprep.subr.bf16.mxu0 0
  %1691 = vmatpush1.bf16.msra.mxu0 %v1678
  %1692 = vmatprep.subr.bf16.mxu0 0
  %1693 = vmatpush1.bf16.msra.mxu0 %v1677
  %1694 = vmatprep.subr.bf16.mxu0 0
  %1695 = vmatpush1.bf16.msra.mxu0 %v1676
  %1696 = vmatprep.subr.bf16.mxu0 0
  %1697 = vmatpush1.bf16.msra.mxu0 %v1675
  %1698 = vmatprep.subr.bf16.mxu0 0
  %1699 = vmatpush1.bf16.msra.mxu0 %v1674
  %1700 = vmatprep.subr.bf16.mxu0 0
  %1701 = vmatpush1.bf16.msra.mxu0 %v1673
  %1702 = vmatprep.subr.bf16.mxu0 0
  %1703 = vmatpush1.bf16.msra.mxu0 %v1672
  %1704 = vmatprep.subr.bf16.mxu0 0
  %1705 = vmatpush2.bf16.msra.mxu0 0
  %1706 = vmatprep.subr.bf16.mxu0 0
  %1707 = vmatpush2.bf16.msra.mxu0 0
  %1708 = vmatprep.subr.bf16.mxu0 0
  %1709 = vmatpush2.bf16.msra.mxu0 0
  %1710 = vmatprep.subr.bf16.mxu0 0
  %1711 = vmatpush2.bf16.msra.mxu0 0
  %1712 = vmatprep.subr.bf16.mxu0 0
  %1713 = vmatpush2.bf16.msra.mxu0 0
  %1714 = vmatprep.subr.bf16.mxu0 0
  %1715 = vmatpush2.bf16.msra.mxu0 0
  %1716 = vmatprep.subr.bf16.mxu0 0
  %1717 = vmatpush2.bf16.msra.mxu0 0
  %1718 = vmatprep.subr.bf16.mxu0 0
  %1719 = vmatpush2.bf16.msra.mxu0 0
  %1720 = vmatprep.mubr.bf16.mxu0 0
  %1721 = vmatmul.mubr.bf16.gmra.mxu0 %v1616
  %v1722 = vpop.f32.mrf.mxu0
  %v1723 = vadd.f32 0.0, %v1722
  %v1724 = vpop.f32.mrf.mxu0
  %v1725 = vpop.f32.mrf.mxu0
  %v1726 = vadd.f32 0.0, %v1725
  %v1727 = vpop.f32.mrf.mxu0
  %1728 = vmatprep.mubr.bf16.mxu0 0
  %1729 = vmatmul.mubr.bf16.gmra.mxu0 %v1617
  %v1730 = vpop.f32.mrf.mxu0
  %v1731 = vadd.f32 0.0, %v1730
  %v1732 = vpop.f32.mrf.mxu0
  %v1733 = vpop.f32.mrf.mxu0
  %v1734 = vadd.f32 0.0, %v1733
  %v1735 = vpop.f32.mrf.mxu0
  %1736 = vmatprep.mubr.bf16.mxu0 0
  %1737 = vmatmul.mubr.bf16.gmra.mxu0 %v1618
  %v1738 = vpop.f32.mrf.mxu0
  %v1739 = vadd.f32 0.0, %v1738
  %v1740 = vpop.f32.mrf.mxu0
  %v1741 = vpop.f32.mrf.mxu0
  %v1742 = vadd.f32 0.0, %v1741
  %v1743 = vpop.f32.mrf.mxu0
  %1744 = vmatprep.mubr.bf16.mxu0 0
  %1745 = vmatmul.mubr.bf16.gmra.mxu0 %v1619
  %v1746 = vpop.f32.mrf.mxu0
  %v1747 = vadd.f32 0.0, %v1746
  %v1748 = vpop.f32.mrf.mxu0
  %v1749 = vpop.f32.mrf.mxu0
  %v1750 = vadd.f32 0.0, %v1749
  %v1751 = vpop.f32.mrf.mxu0
  %1752 = vmatprep.mubr.bf16.mxu0 0
  %1753 = vmatmul.mubr.bf16.gmra.mxu0 %v1620
  %v1754 = vpop.f32.mrf.mxu0
  %v1755 = vadd.f32 0.0, %v1754
  %v1756 = vpop.f32.mrf.mxu0
  %v1757 = vpop.f32.mrf.mxu0
  %v1758 = vadd.f32 0.0, %v1757
  %v1759 = vpop.f32.mrf.mxu0
  %1760 = vmatprep.mubr.bf16.mxu0 0
  %1761 = vmatmul.mubr.bf16.gmra.mxu0 %v1621
  %v1762 = vpop.f32.mrf.mxu0
  %v1763 = vadd.f32 0.0, %v1762
  %v1764 = vpop.f32.mrf.mxu0
  %v1765 = vpop.f32.mrf.mxu0
  %v1766 = vadd.f32 0.0, %v1765
  %v1767 = vpop.f32.mrf.mxu0
  %1768 = vmatprep.mubr.bf16.mxu0 0
  %1769 = vmatmul.mubr.bf16.gmra.mxu0 %v1622
  %v1770 = vpop.f32.mrf.mxu0
  %v1771 = vadd.f32 0.0, %v1770
  %v1772 = vpop.f32.mrf.mxu0
  %v1773 = vpop.f32.mrf.mxu0
  %v1774 = vadd.f32 0.0, %v1773
  %v1775 = vpop.f32.mrf.mxu0
  %1776 = vmatprep.mubr.bf16.mxu0 0
  %1777 = vmatmul.mubr.bf16.gmra.mxu0 %v1623
  %v1778 = vpop.f32.mrf.mxu0
  %v1779 = vadd.f32 0.0, %v1778
  %v1780 = vpop.f32.mrf.mxu0
  %v1781 = vpop.f32.mrf.mxu0
  %v1782 = vadd.f32 0.0, %v1781
  %v1783 = vpop.f32.mrf.mxu0
  %1784 = vdwg.mxu0
  %v1785 = vadd.f32 %v1584, %v1723
  %v1786 = vadd.f32 %v1585, %v1726
  %v1787 = vadd.f32 %v1586, %v1731
  %v1788 = vadd.f32 %v1587, %v1734
  %v1789 = vadd.f32 %v1588, %v1739
  %v1790 = vadd.f32 %v1589, %v1742
  %v1791 = vadd.f32 %v1590, %v1747
  %v1792 = vadd.f32 %v1591, %v1750
  %v1793 = vadd.f32 %v1592, %v1755
  %v1794 = vadd.f32 %v1593, %v1758
  %v1795 = vadd.f32 %v1594, %v1763
  %v1796 = vadd.f32 %v1595, %v1766
  %v1797 = vadd.f32 %v1596, %v1771
  %v1798 = vadd.f32 %v1597, %v1774
  %v1799 = vadd.f32 %v1598, %v1779
  %v1800 = vadd.f32 %v1599, %v1782
  %v1801 = vpack.c.bf16 %v1786, %v1785
  %v1802 = vpack.c.bf16 %v1788, %v1787
  %v1803 = vpack.c.bf16 %v1790, %v1789
  %v1804 = vpack.c.bf16 %v1792, %v1791
  %v1805 = vpack.c.bf16 %v1794, %v1793
  %v1806 = vpack.c.bf16 %v1796, %v1795
  %v1807 = vpack.c.bf16 %v1798, %v1797
  %v1808 = vpack.c.bf16 %v1800, %v1799
  %v1817 = vunpack.c.l.b16 %v1801
  %v1818 = vunpack.c.h.b16 %v1801
  %v1819 = vunpack.c.l.b16 %v1802
  %v1820 = vunpack.c.h.b16 %v1802
  %v1821 = vunpack.c.l.b16 %v1803
  %v1822 = vunpack.c.h.b16 %v1803
  %v1823 = vunpack.c.l.b16 %v1804
  %v1824 = vunpack.c.h.b16 %v1804
  %v1825 = vunpack.c.l.b16 %v1805
  %v1826 = vunpack.c.h.b16 %v1805
  %v1827 = vunpack.c.l.b16 %v1806
  %v1828 = vunpack.c.h.b16 %v1806
  %v1829 = vunpack.c.l.b16 %v1807
  %v1830 = vunpack.c.h.b16 %v1807
  %v1831 = vunpack.c.l.b16 %v1808
  %v1832 = vunpack.c.h.b16 %v1808
  %v1833 = vpack.c.b16 %v1817, %v1817
  %v1834 = vpack.c.b16 %v1818, %v1818
  %v1835 = vpack.c.b16 %v1819, %v1819
  %v1836 = vpack.c.b16 %v1820, %v1820
  %v1837 = vpack.c.b16 %v1821, %v1821
  %v1838 = vpack.c.b16 %v1822, %v1822
  %v1839 = vpack.c.b16 %v1823, %v1823
  %v1840 = vpack.c.b16 %v1824, %v1824
  %v1841 = vpack.c.b16 %v1825, %v1825
  %v1842 = vpack.c.b16 %v1826, %v1826
  %v1843 = vpack.c.b16 %v1827, %v1827
  %v1844 = vpack.c.b16 %v1828, %v1828
  %v1845 = vpack.c.b16 %v1829, %v1829
  %v1846 = vpack.c.b16 %v1830, %v1830
  %v1847 = vpack.c.b16 %v1831, %v1831
  %v1848 = vpack.c.b16 %v1832, %v1832
  %1865 = vst [vmem:[%s3] sm:$0xf] %v1833
  %1866 = vst [vmem:[%s3 + $0x4] sm:$0xf] %v1834
  %1867 = vst [vmem:[%s3 + $0x8] sm:$0xf] %v1835
  %1868 = vst [vmem:[%s3 + $0xc] sm:$0xf] %v1836
  %1869 = vst [vmem:[%s3 + $0x10] sm:$0xf] %v1837
  %1870 = vst [vmem:[%s3 + $0x14] sm:$0xf] %v1838
  %1871 = vst [vmem:[%s3 + $0x18] sm:$0xf] %v1839
  %1872 = vst [vmem:[%s3 + $0x1c] sm:$0xf] %v1840
  %1873 = vst [vmem:[%s3 + $0x20] sm:$0xf] %v1841
  %1874 = vst [vmem:[%s3 + $0x24] sm:$0xf] %v1842
  %1875 = vst [vmem:[%s3 + $0x28] sm:$0xf] %v1843
  %1876 = vst [vmem:[%s3 + $0x2c] sm:$0xf] %v1844
  %1877 = vst [vmem:[%s3 + $0x30] sm:$0xf] %v1845
  %1878 = vst [vmem:[%s3 + $0x34] sm:$0xf] %v1846
  %1879 = vst [vmem:[%s3 + $0x38] sm:$0xf] %v1847
  %1880 = vst [vmem:[%s3 + $0x3c] sm:$0xf] %v1848
  %v1881 = vadd.f32 %v1785, %v1786
  %v1882 = vadd.f32 %v1881, %v1787
  %v1883 = vadd.f32 %v1882, %v1788
  %v1884 = vadd.f32 %v1883, %v1789
  %v1885 = vadd.f32 %v1884, %v1790
  %v1886 = vadd.f32 %v1885, %v1791
  %v1887 = vadd.f32 %v1886, %v1792
  %v1888 = vadd.f32 %v1887, %v1793
  %v1889 = vadd.f32 %v1888, %v1794
  %v1890 = vadd.f32 %v1889, %v1795
  %v1891 = vadd.f32 %v1890, %v1796
  %v1892 = vadd.f32 %v1891, %v1797
  %v1893 = vadd.f32 %v1892, %v1798
  %v1894 = vadd.f32 %v1893, %v1799
  %v1895 = vadd.f32 %v1894, %v1800
  %v1896 = vrot.slane %v1895, 4
  %v1897 = vadd.f32 %v1895, %v1896
  %v1898 = vrot.slane %v1897, 2
  %v1899 = vadd.f32 %v1897, %v1898
  %v1900 = vrot.slane %v1899, 1
  %v1901 = vadd.f32 %v1899, %v1900
  %v1902 = vmul.f32 %v1785, %v1785
  %v1903 = vmul.f32 %v1786, %v1786
  %v1904 = vmul.f32 %v1787, %v1787
  %v1905 = vmul.f32 %v1788, %v1788
  %v1906 = vmul.f32 %v1789, %v1789
  %v1907 = vmul.f32 %v1790, %v1790
  %v1908 = vmul.f32 %v1791, %v1791
  %v1909 = vmul.f32 %v1792, %v1792
  %v1910 = vmul.f32 %v1793, %v1793
  %v1911 = vmul.f32 %v1794, %v1794
  %v1912 = vmul.f32 %v1795, %v1795
  %v1913 = vmul.f32 %v1796, %v1796
  %v1914 = vmul.f32 %v1797, %v1797
  %v1915 = vmul.f32 %v1798, %v1798
  %v1916 = vmul.f32 %v1799, %v1799
  %v1917 = vmul.f32 %v1800, %v1800
  %v1918 = vadd.f32 %v1902, %v1903
  %v1919 = vadd.f32 %v1918, %v1904
  %v1920 = vadd.f32 %v1919, %v1905
  %v1921 = vadd.f32 %v1920, %v1906
  %v1922 = vadd.f32 %v1921, %v1907
  %v1923 = vadd.f32 %v1922, %v1908
  %v1924 = vadd.f32 %v1923, %v1909
  %v1925 = vadd.f32 %v1924, %v1910
  %v1926 = vadd.f32 %v1925, %v1911
  %v1927 = vadd.f32 %v1926, %v1912
  %v1928 = vadd.f32 %v1927, %v1913
  %v1929 = vadd.f32 %v1928, %v1914
  %v1930 = vadd.f32 %v1929, %v1915
  %v1931 = vadd.f32 %v1930, %v1916
  %v1932 = vadd.f32 %v1931, %v1917
  %v1933 = vrot.slane %v1932, 4
  %v1934 = vadd.f32 %v1932, %v1933
  %v1935 = vrot.slane %v1934, 2
  %v1936 = vadd.f32 %v1934, %v1935
  %v1937 = vrot.slane %v1936, 1
  %v1938 = vadd.f32 %v1936, %v1937
  %vm1939 = vcmask 1040384
  %v1940 = vsel %vm1939, %v1901, %v1938
  %1941 = vst [vmem:[%s4] sm:$0x3] %v1940
  %v1942 = vld [vmem:[%s793] sm:$0xff]
  %v1943 = vld [vmem:[%s793 + $0x10] sm:$0xff]
  %v1944 = vld [vmem:[%s793 + $0x20] sm:$0xff]
  %v1945 = vld [vmem:[%s793 + $0x30] sm:$0xff]
  %v1946 = vld [vmem:[%s793 + $0x40] sm:$0xff]
  %v1947 = vld [vmem:[%s793 + $0x50] sm:$0xff]
  %v1948 = vld [vmem:[%s793 + $0x60] sm:$0xff]
  %v1949 = vld [vmem:[%s793 + $0x70] sm:$0xff]
  %v1950 = vld [vmem:[%s793 + $0x280] sm:$0xff]
  %v1951 = vld [vmem:[%s793 + $0x290] sm:$0xff]
  %v1952 = vld [vmem:[%s793 + $0x2a0] sm:$0xff]
  %v1953 = vld [vmem:[%s793 + $0x2b0] sm:$0xff]
  %v1954 = vld [vmem:[%s793 + $0x2c0] sm:$0xff]
  %v1955 = vld [vmem:[%s793 + $0x2d0] sm:$0xff]
  %v1956 = vld [vmem:[%s793 + $0x2e0] sm:$0xff]
  %v1957 = vld [vmem:[%s793 + $0x2f0] sm:$0xff]
  %v1958 = vpack.c.bf16 %v1943, %v1942
  %v1959 = vpack.c.bf16 %v1945, %v1944
  %v1960 = vpack.c.bf16 %v1947, %v1946
  %v1961 = vpack.c.bf16 %v1949, %v1948
  %v1962 = vpack.c.bf16 %v1951, %v1950
  %v1963 = vpack.c.bf16 %v1953, %v1952
  %v1964 = vpack.c.bf16 %v1955, %v1954
  %v1965 = vpack.c.bf16 %v1957, %v1956
  %v1966 = vld [vmem:[%s2] sm:$0xf]
  %v1967 = vld [vmem:[%s2 + $0x4] sm:$0xf]
  %v1968 = vld [vmem:[%s2 + $0x8] sm:$0xf]
  %v1969 = vld [vmem:[%s2 + $0xc] sm:$0xf]
  %v1970 = vld [vmem:[%s2 + $0x10] sm:$0xf]
  %v1971 = vld [vmem:[%s2 + $0x14] sm:$0xf]
  %v1972 = vld [vmem:[%s2 + $0x18] sm:$0xf]
  %v1973 = vld [vmem:[%s2 + $0x1c] sm:$0xf]
  %v1974 = vld [vmem:[%s2 + $0x20] sm:$0xf]
  %v1975 = vld [vmem:[%s2 + $0x24] sm:$0xf]
  %v1976 = vld [vmem:[%s2 + $0x28] sm:$0xf]
  %v1977 = vld [vmem:[%s2 + $0x2c] sm:$0xf]
  %v1978 = vld [vmem:[%s2 + $0x30] sm:$0xf]
  %v1979 = vld [vmem:[%s2 + $0x34] sm:$0xf]
  %v1980 = vld [vmem:[%s2 + $0x38] sm:$0xf]
  %v1981 = vld [vmem:[%s2 + $0x3c] sm:$0xf]
  %v1998 = vunpack.c.l.b16 %v1966
  %v1999 = vunpack.c.l.b16 %v1967
  %v2000 = vunpack.c.l.b16 %v1968
  %v2001 = vunpack.c.l.b16 %v1969
  %v2002 = vunpack.c.l.b16 %v1970
  %v2003 = vunpack.c.l.b16 %v1971
  %v2004 = vunpack.c.l.b16 %v1972
  %v2005 = vunpack.c.l.b16 %v1973
  %v2006 = vunpack.c.l.b16 %v1974
  %v2007 = vunpack.c.l.b16 %v1975
  %v2008 = vunpack.c.l.b16 %v1976
  %v2009 = vunpack.c.l.b16 %v1977
  %v2010 = vunpack.c.l.b16 %v1978
  %v2011 = vunpack.c.l.b16 %v1979
  %v2012 = vunpack.c.l.b16 %v1980
  %v2013 = vunpack.c.l.b16 %v1981
  %v2014 = vpack.c.b16 %v1999, %v1998
  %v2015 = vpack.c.b16 %v2001, %v2000
  %v2016 = vpack.c.b16 %v2003, %v2002
  %v2017 = vpack.c.b16 %v2005, %v2004
  %v2018 = vpack.c.b16 %v2007, %v2006
  %v2019 = vpack.c.b16 %v2009, %v2008
  %v2020 = vpack.c.b16 %v2011, %v2010
  %v2021 = vpack.c.b16 %v2013, %v2012
  %2030 = vmatprep.subr.bf16.mxu0 0
  %2031 = vmatpush1.bf16.msra.mxu0 %v2021
  %2032 = vmatprep.subr.bf16.mxu0 0
  %2033 = vmatpush1.bf16.msra.mxu0 %v2020
  %2034 = vmatprep.subr.bf16.mxu0 0
  %2035 = vmatpush1.bf16.msra.mxu0 %v2019
  %2036 = vmatprep.subr.bf16.mxu0 0
  %2037 = vmatpush1.bf16.msra.mxu0 %v2018
  %2038 = vmatprep.subr.bf16.mxu0 0
  %2039 = vmatpush1.bf16.msra.mxu0 %v2017
  %2040 = vmatprep.subr.bf16.mxu0 0
  %2041 = vmatpush1.bf16.msra.mxu0 %v2016
  %2042 = vmatprep.subr.bf16.mxu0 0
  %2043 = vmatpush1.bf16.msra.mxu0 %v2015
  %2044 = vmatprep.subr.bf16.mxu0 0
  %2045 = vmatpush1.bf16.msra.mxu0 %v2014
  %2046 = vmatprep.subr.bf16.mxu0 0
  %2047 = vmatpush2.bf16.msra.mxu0 0
  %2048 = vmatprep.subr.bf16.mxu0 0
  %2049 = vmatpush2.bf16.msra.mxu0 0
  %2050 = vmatprep.subr.bf16.mxu0 0
  %2051 = vmatpush2.bf16.msra.mxu0 0
  %2052 = vmatprep.subr.bf16.mxu0 0
  %2053 = vmatpush2.bf16.msra.mxu0 0
  %2054 = vmatprep.subr.bf16.mxu0 0
  %2055 = vmatpush2.bf16.msra.mxu0 0
  %2056 = vmatprep.subr.bf16.mxu0 0
  %2057 = vmatpush2.bf16.msra.mxu0 0
  %2058 = vmatprep.subr.bf16.mxu0 0
  %2059 = vmatpush2.bf16.msra.mxu0 0
  %2060 = vmatprep.subr.bf16.mxu0 0
  %2061 = vmatpush2.bf16.msra.mxu0 0
  %2062 = vmatprep.mubr.bf16.mxu0 0
  %2063 = vmatmul.mubr.bf16.gmra.mxu0 %v1958
  %v2064 = vpop.f32.mrf.mxu0
  %v2065 = vadd.f32 0.0, %v2064
  %v2066 = vpop.f32.mrf.mxu0
  %v2067 = vpop.f32.mrf.mxu0
  %v2068 = vadd.f32 0.0, %v2067
  %v2069 = vpop.f32.mrf.mxu0
  %2070 = vmatprep.mubr.bf16.mxu0 0
  %2071 = vmatmul.mubr.bf16.gmra.mxu0 %v1959
  %v2072 = vpop.f32.mrf.mxu0
  %v2073 = vadd.f32 0.0, %v2072
  %v2074 = vpop.f32.mrf.mxu0
  %v2075 = vpop.f32.mrf.mxu0
  %v2076 = vadd.f32 0.0, %v2075
  %v2077 = vpop.f32.mrf.mxu0
  %2078 = vmatprep.mubr.bf16.mxu0 0
  %2079 = vmatmul.mubr.bf16.gmra.mxu0 %v1960
  %v2080 = vpop.f32.mrf.mxu0
  %v2081 = vadd.f32 0.0, %v2080
  %v2082 = vpop.f32.mrf.mxu0
  %v2083 = vpop.f32.mrf.mxu0
  %v2084 = vadd.f32 0.0, %v2083
  %v2085 = vpop.f32.mrf.mxu0
  %2086 = vmatprep.mubr.bf16.mxu0 0
  %2087 = vmatmul.mubr.bf16.gmra.mxu0 %v1961
  %v2088 = vpop.f32.mrf.mxu0
  %v2089 = vadd.f32 0.0, %v2088
  %v2090 = vpop.f32.mrf.mxu0
  %v2091 = vpop.f32.mrf.mxu0
  %v2092 = vadd.f32 0.0, %v2091
  %v2093 = vpop.f32.mrf.mxu0
  %2094 = vmatprep.mubr.bf16.mxu0 0
  %2095 = vmatmul.mubr.bf16.gmra.mxu0 %v1962
  %v2096 = vpop.f32.mrf.mxu0
  %v2097 = vadd.f32 0.0, %v2096
  %v2098 = vpop.f32.mrf.mxu0
  %v2099 = vpop.f32.mrf.mxu0
  %v2100 = vadd.f32 0.0, %v2099
  %v2101 = vpop.f32.mrf.mxu0
  %2102 = vmatprep.mubr.bf16.mxu0 0
  %2103 = vmatmul.mubr.bf16.gmra.mxu0 %v1963
  %v2104 = vpop.f32.mrf.mxu0
  %v2105 = vadd.f32 0.0, %v2104
  %v2106 = vpop.f32.mrf.mxu0
  %v2107 = vpop.f32.mrf.mxu0
  %v2108 = vadd.f32 0.0, %v2107
  %v2109 = vpop.f32.mrf.mxu0
  %2110 = vmatprep.mubr.bf16.mxu0 0
  %2111 = vmatmul.mubr.bf16.gmra.mxu0 %v1964
  %v2112 = vpop.f32.mrf.mxu0
  %v2113 = vadd.f32 0.0, %v2112
  %v2114 = vpop.f32.mrf.mxu0
  %v2115 = vpop.f32.mrf.mxu0
  %v2116 = vadd.f32 0.0, %v2115
  %v2117 = vpop.f32.mrf.mxu0
  %2118 = vmatprep.mubr.bf16.mxu0 0
  %2119 = vmatmul.mubr.bf16.gmra.mxu0 %v1965
  %v2120 = vpop.f32.mrf.mxu0
  %v2121 = vadd.f32 0.0, %v2120
  %v2122 = vpop.f32.mrf.mxu0
  %v2123 = vpop.f32.mrf.mxu0
  %v2124 = vadd.f32 0.0, %v2123
  %v2125 = vpop.f32.mrf.mxu0
  %2126 = vdwg.mxu0
  %v2127 = vpack.c.bf16 %v2068, %v2065
  %v2128 = vpack.c.bf16 %v2076, %v2073
  %v2129 = vpack.c.bf16 %v2084, %v2081
  %v2130 = vpack.c.bf16 %v2092, %v2089
  %v2131 = vpack.c.bf16 %v2100, %v2097
  %v2132 = vpack.c.bf16 %v2108, %v2105
  %v2133 = vpack.c.bf16 %v2116, %v2113
  %v2134 = vpack.c.bf16 %v2124, %v2121
  %v2143 = vunpack.c.l.b16 %v2127
  %v2144 = vunpack.c.h.b16 %v2127
  %v2145 = vunpack.c.l.b16 %v2128
  %v2146 = vunpack.c.h.b16 %v2128
  %v2147 = vunpack.c.l.b16 %v2129
  %v2148 = vunpack.c.h.b16 %v2129
  %v2149 = vunpack.c.l.b16 %v2130
  %v2150 = vunpack.c.h.b16 %v2130
  %v2151 = vunpack.c.l.b16 %v2131
  %v2152 = vunpack.c.h.b16 %v2131
  %v2153 = vunpack.c.l.b16 %v2132
  %v2154 = vunpack.c.h.b16 %v2132
  %v2155 = vunpack.c.l.b16 %v2133
  %v2156 = vunpack.c.h.b16 %v2133
  %v2157 = vunpack.c.l.b16 %v2134
  %v2158 = vunpack.c.h.b16 %v2134
  %v2159 = vpack.c.b16 %v2143, %v2143
  %v2160 = vpack.c.b16 %v2144, %v2144
  %v2161 = vpack.c.b16 %v2145, %v2145
  %v2162 = vpack.c.b16 %v2146, %v2146
  %v2163 = vpack.c.b16 %v2147, %v2147
  %v2164 = vpack.c.b16 %v2148, %v2148
  %v2165 = vpack.c.b16 %v2149, %v2149
  %v2166 = vpack.c.b16 %v2150, %v2150
  %v2167 = vpack.c.b16 %v2151, %v2151
  %v2168 = vpack.c.b16 %v2152, %v2152
  %v2169 = vpack.c.b16 %v2153, %v2153
  %v2170 = vpack.c.b16 %v2154, %v2154
  %v2171 = vpack.c.b16 %v2155, %v2155
  %v2172 = vpack.c.b16 %v2156, %v2156
  %v2173 = vpack.c.b16 %v2157, %v2157
  %v2174 = vpack.c.b16 %v2158, %v2158
  %2191 = vst [vmem:[%s5] sm:$0xf] %v2159
  %2192 = vst [vmem:[%s5 + $0x4] sm:$0xf] %v2160
  %2193 = vst [vmem:[%s5 + $0x8] sm:$0xf] %v2161
  %2194 = vst [vmem:[%s5 + $0xc] sm:$0xf] %v2162
  %2195 = vst [vmem:[%s5 + $0x10] sm:$0xf] %v2163
  %2196 = vst [vmem:[%s5 + $0x14] sm:$0xf] %v2164
  %2197 = vst [vmem:[%s5 + $0x18] sm:$0xf] %v2165
  %2198 = vst [vmem:[%s5 + $0x1c] sm:$0xf] %v2166
  %2199 = vst [vmem:[%s5 + $0x20] sm:$0xf] %v2167
  %2200 = vst [vmem:[%s5 + $0x24] sm:$0xf] %v2168
  %2201 = vst [vmem:[%s5 + $0x28] sm:$0xf] %v2169
  %2202 = vst [vmem:[%s5 + $0x2c] sm:$0xf] %v2170
  %2203 = vst [vmem:[%s5 + $0x30] sm:$0xf] %v2171
  %2204 = vst [vmem:[%s5 + $0x34] sm:$0xf] %v2172
  %2205 = vst [vmem:[%s5 + $0x38] sm:$0xf] %v2173
  %2206 = vst [vmem:[%s5 + $0x3c] sm:$0xf] %v2174
  %v2207 = vadd.f32 %v2065, %v2068
  %v2208 = vadd.f32 %v2207, %v2073
  %v2209 = vadd.f32 %v2208, %v2076
  %v2210 = vadd.f32 %v2209, %v2081
  %v2211 = vadd.f32 %v2210, %v2084
  %v2212 = vadd.f32 %v2211, %v2089
  %v2213 = vadd.f32 %v2212, %v2092
  %v2214 = vadd.f32 %v2213, %v2097
  %v2215 = vadd.f32 %v2214, %v2100
  %v2216 = vadd.f32 %v2215, %v2105
  %v2217 = vadd.f32 %v2216, %v2108
  %v2218 = vadd.f32 %v2217, %v2113
  %v2219 = vadd.f32 %v2218, %v2116
  %v2220 = vadd.f32 %v2219, %v2121
  %v2221 = vadd.f32 %v2220, %v2124
  %v2222 = vrot.slane %v2221, 4
  %v2223 = vadd.f32 %v2221, %v2222
  %v2224 = vrot.slane %v2223, 2
  %v2225 = vadd.f32 %v2223, %v2224
  %v2226 = vrot.slane %v2225, 1
  %v2227 = vadd.f32 %v2225, %v2226
  %v2228 = vmul.f32 %v2065, %v2065
  %v2229 = vmul.f32 %v2068, %v2068
  %v2230 = vmul.f32 %v2073, %v2073
  %v2231 = vmul.f32 %v2076, %v2076
  %v2232 = vmul.f32 %v2081, %v2081
  %v2233 = vmul.f32 %v2084, %v2084
  %v2234 = vmul.f32 %v2089, %v2089
  %v2235 = vmul.f32 %v2092, %v2092
  %v2236 = vmul.f32 %v2097, %v2097
  %v2237 = vmul.f32 %v2100, %v2100
  %v2238 = vmul.f32 %v2105, %v2105
  %v2239 = vmul.f32 %v2108, %v2108
  %v2240 = vmul.f32 %v2113, %v2113
  %v2241 = vmul.f32 %v2116, %v2116
  %v2242 = vmul.f32 %v2121, %v2121
  %v2243 = vmul.f32 %v2124, %v2124
  %v2244 = vadd.f32 %v2228, %v2229
  %v2245 = vadd.f32 %v2244, %v2230
  %v2246 = vadd.f32 %v2245, %v2231
  %v2247 = vadd.f32 %v2246, %v2232
  %v2248 = vadd.f32 %v2247, %v2233
  %v2249 = vadd.f32 %v2248, %v2234
  %v2250 = vadd.f32 %v2249, %v2235
  %v2251 = vadd.f32 %v2250, %v2236
  %v2252 = vadd.f32 %v2251, %v2237
  %v2253 = vadd.f32 %v2252, %v2238
  %v2254 = vadd.f32 %v2253, %v2239
  %v2255 = vadd.f32 %v2254, %v2240
  %v2256 = vadd.f32 %v2255, %v2241
  %v2257 = vadd.f32 %v2256, %v2242
  %v2258 = vadd.f32 %v2257, %v2243
  %v2259 = vrot.slane %v2258, 4
  %v2260 = vadd.f32 %v2258, %v2259
  %v2261 = vrot.slane %v2260, 2
  %v2262 = vadd.f32 %v2260, %v2261
  %v2263 = vrot.slane %v2262, 1
  %v2264 = vadd.f32 %v2262, %v2263
  %v2265 = vsel %vm1939, %v2227, %v2264
  %2266 = vst [vmem:[%s6] sm:$0x3] %v2265
  // Predicated region
  $region14: #{basic_block.3} parent=0 // pred_check
    _
  $region15: #{basic_block.3} parent=0 // pred_check_branch
    %2268 = sbr.rel (0) target = $region17
  $region16: #{basic_block.3} parent=0 // pred_region
    _
  $region17: #{basic_block.3} parent=0 // pred_fallthru
    _
  // Predicated region
  $region18: #{basic_block.3} parent=0 // pred_check
    _
  $region19: #{basic_block.3} parent=0 // pred_check_branch
    %2270 = sbr.rel (0) target = $region21
  $region20: #{basic_block.3} parent=0 // pred_region
    _
  $region21: #{basic_block.3} parent=0 // pred_fallthru
    _
  // Predicated region
  $region22: #{basic_block.3} parent=0 // pred_check
    _
  $region23: #{basic_block.3} parent=0 // pred_check_branch
    %2272 = sbr.rel (0) target = $region25
  $region24: #{basic_block.3} parent=0 // pred_region
    _
  $region25: #{basic_block.3} parent=0 // pred_fallthru
    _
  // Predicated region
  $region26: #{basic_block.3} parent=0 // pred_check
    _
  $region27: #{basic_block.3} parent=0 // pred_check_branch
    %2274 = sbr.rel (0) target = $region29
  $region28: #{basic_block.3} parent=0 // pred_region
    _
  $region29: #{basic_block.3} parent=0 // pred_fallthru
    _
  // Predicated region
  $region30: #{basic_block.3} parent=0 // pred_check
    _
  $region31: #{basic_block.3} parent=0 // pred_check_branch
    %2276 = sbr.rel (0) target = $region33
  $region32: #{basic_block.3} parent=0 // pred_region
    _
  $region33: #{basic_block.3} parent=0 // pred_fallthru
    _
  // Predicated region
  $region34: #{basic_block.3} parent=0 // pred_check
    _
  $region35: #{basic_block.3} parent=0 // pred_check_branch
    %2278 = sbr.rel (0) target = $region37
  $region36: #{basic_block.3} parent=0 // pred_region
    _
  $region37: #{basic_block.3} parent=0 // pred_fallthru
    _
  // Predicated region
  $region38: #{basic_block.3} parent=0 // pred_check
    _
  $region39: #{basic_block.3} parent=0 // pred_check_branch
    %2280 = sbr.rel (0) target = $region41
  $region40: #{basic_block.3} parent=0 // pred_region
    _
  $region41: #{basic_block.3} parent=0 // pred_fallthru
    _
  // Predicated region
  $region42: #{basic_block.3} parent=0 // pred_check
    _
  $region43: #{basic_block.3} parent=0 // pred_check_branch
    %2282 = sbr.rel (0) target = $region45
  $region44: #{basic_block.3} parent=0 // pred_region
    _
  $region45: #{basic_block.3} parent=0 // pred_fallthru
    _

// kernel: basic_block.4
$region0: #{basic_block.4}
  #allocation0 [shape = 'u32[]', space=smem, size = 0x4, offset = 0x4, fixed_abs, tag = 'smem constant byte address 0x4 - core index']
  #allocation1 [shape = 'u32[144,128]{1,0:T(1,128)}', space=vmem, size = 0x12000, scoped, tag = 'internal scratch']
  #allocation2 [shape = 'f32[2,10,10,128]{3,2,1,0:T(8,128)}', space=vmem, size = 0x28000, scoped, tag = 'scratch operand']
  %s0 = inlined_call_operand.vmem [shape: bf16[2,64,128], index: 0, kind: input, shape index: {}]
  %s1 = inlined_call_operand.vmem [shape: f32[1,128], index: 1, kind: input, shape index: {}]
  %s2 = inlined_call_operand.vmem [shape: f32[1,128], index: 2, kind: input, shape index: {}]
  %s3 = inlined_call_operand.vmem [shape: bf16[1152,128], index: 3, kind: input, shape index: {}]
  %s4 = inlined_call_operand.vmem [shape: bf16[2,64,128], index: 4, kind: output, shape index: {0}]
  %s5 = inlined_call_operand.vmem [shape: f32[1,2,128], index: 5, kind: output, shape index: {1}]
  %6 = xla_tuple %s4, %s5
  %s7 = sld [smem:[#allocation0]]
  $region34: #{basic_block.4} parent=0
    _
  %s9 = ssub.s32 1, %s7
  %s10 = scalar_select 0, %s9, %s7
  // Predicated region
  $region2: #{basic_block.4} parent=0 // pred_check
    _
  $region3: #{basic_block.4} parent=0 // pred_check_branch
    %12 = sbr.rel (0) target = $region5
  $region4: #{basic_block.4} parent=0 // pred_region
    _
  $region5: #{basic_block.4} parent=0 // pred_fallthru
    _
  // Predicated region
  $region6: #{basic_block.4} parent=0 // pred_check
    _
  $region7: #{basic_block.4} parent=0 // pred_check_branch
    %14 = sbr.rel (0) target = $region9
  $region8: #{basic_block.4} parent=0 // pred_region
    _
  $region9: #{basic_block.4} parent=0 // pred_fallthru
    _
  // Predicated region
  $region10: #{basic_block.4} parent=0 // pred_check
    _
  $region11: #{basic_block.4} parent=0 // pred_check_branch
    %16 = sbr.rel (0) target = $region13
  $region12: #{basic_block.4} parent=0 // pred_region
    _
  $region13: #{basic_block.4} parent=0 // pred_fallthru
    _
  // Predicated region
  $region14: #{basic_block.4} parent=0 // pred_check
    _
  $region15: #{basic_block.4} parent=0 // pred_check_branch
    %18 = sbr.rel (0) target = $region17
  $region16: #{basic_block.4} parent=0 // pred_region
    _
  $region17: #{basic_block.4} parent=0 // pred_fallthru
    _
  %20 = vst [vmem:[#allocation2] sm:$0xff] 0.0
  %21 = vst [vmem:[#allocation2 + $0x8] sm:$0x3] 0.0
  %22 = vst [vmem:[#allocation2 + $0xa0] sm:$0xff] 0.0
  %23 = vst [vmem:[#allocation2 + $0xa8] sm:$0x3] 0.0
  %s24 = scalar_lea.vmem [#allocation2], 144
  %25 = vst [vmem:[%s24] sm:$0xff] 0.0
  %26 = vst [vmem:[%s24 + $0x8] sm:$0x3] 0.0
  %27 = vst [vmem:[%s24 + $0xa0] sm:$0xff] 0.0
  %28 = vst [vmem:[%s24 + $0xa8] sm:$0x3] 0.0
  %29 = vst [vmem:[#allocation2] sm:$0x1] 0.0
  %30 = vst [vmem:[#allocation2 + $0x10] sm:$0x1] 0.0
  %31 = vst [vmem:[#allocation2 + $0x20] sm:$0x1] 0.0
  %32 = vst [vmem:[#allocation2 + $0x30] sm:$0x1] 0.0
  %33 = vst [vmem:[#allocation2 + $0x40] sm:$0x1] 0.0
  %34 = vst [vmem:[#allocation2 + $0x50] sm:$0x1] 0.0
  %35 = vst [vmem:[#allocation2 + $0x60] sm:$0x1] 0.0
  %36 = vst [vmem:[#allocation2 + $0x70] sm:$0x1] 0.0
  %37 = vst [vmem:[#allocation2 + $0x80] sm:$0x1] 0.0
  %38 = vst [vmem:[#allocation2 + $0x90] sm:$0x1] 0.0
  %39 = vst [vmem:[#allocation2 + $0xa0] sm:$0x1] 0.0
  %40 = vst [vmem:[#allocation2 + $0xb0] sm:$0x1] 0.0
  %41 = vst [vmem:[#allocation2 + $0xc0] sm:$0x1] 0.0
  %42 = vst [vmem:[#allocation2 + $0xd0] sm:$0x1] 0.0
  %43 = vst [vmem:[#allocation2 + $0xe0] sm:$0x1] 0.0
  %44 = vst [vmem:[#allocation2 + $0xf0] sm:$0x1] 0.0
  %45 = vst [vmem:[#allocation2 + $0x100] sm:$0x1] 0.0
  %46 = vst [vmem:[#allocation2 + $0x110] sm:$0x1] 0.0
  %47 = vst [vmem:[#allocation2 + $0x120] sm:$0x1] 0.0
  %48 = vst [vmem:[#allocation2 + $0x130] sm:$0x1] 0.0
  %49 = vst [vmem:[#allocation2 + $0x9] sm:$0x1] 0.0
  %50 = vst [vmem:[#allocation2 + $0x19] sm:$0x1] 0.0
  %51 = vst [vmem:[#allocation2 + $0x29] sm:$0x1] 0.0
  %52 = vst [vmem:[#allocation2 + $0x39] sm:$0x1] 0.0
  %53 = vst [vmem:[#allocation2 + $0x49] sm:$0x1] 0.0
  %54 = vst [vmem:[#allocation2 + $0x59] sm:$0x1] 0.0
  %55 = vst [vmem:[#allocation2 + $0x69] sm:$0x1] 0.0
  %56 = vst [vmem:[#allocation2 + $0x79] sm:$0x1] 0.0
  %57 = vst [vmem:[#allocation2 + $0x89] sm:$0x1] 0.0
  %58 = vst [vmem:[#allocation2 + $0x99] sm:$0x1] 0.0
  %59 = vst [vmem:[#allocation2 + $0xa9] sm:$0x1] 0.0
  %60 = vst [vmem:[#allocation2 + $0xb9] sm:$0x1] 0.0
  %61 = vst [vmem:[#allocation2 + $0xc9] sm:$0x1] 0.0
  %62 = vst [vmem:[#allocation2 + $0xd9] sm:$0x1] 0.0
  %63 = vst [vmem:[#allocation2 + $0xe9] sm:$0x1] 0.0
  %64 = vst [vmem:[#allocation2 + $0xf9] sm:$0x1] 0.0
  %65 = vst [vmem:[#allocation2 + $0x109] sm:$0x1] 0.0
  %66 = vst [vmem:[#allocation2 + $0x119] sm:$0x1] 0.0
  %67 = vst [vmem:[#allocation2 + $0x129] sm:$0x1] 0.0
  %68 = vst [vmem:[#allocation2 + $0x139] sm:$0x1] 0.0
  %v69 = vld [vmem:[%s0] sm:$0xf]
  %v70 = vld [vmem:[%s0 + $0x4] sm:$0xf]
  %v71 = vld [vmem:[%s0 + $0x8] sm:$0xf]
  %v72 = vld [vmem:[%s0 + $0xc] sm:$0xf]
  %v73 = vld [vmem:[%s0 + $0x10] sm:$0xf]
  %v74 = vld [vmem:[%s0 + $0x14] sm:$0xf]
  %v75 = vld [vmem:[%s0 + $0x18] sm:$0xf]
  %v76 = vld [vmem:[%s0 + $0x1c] sm:$0xf]
  %v77 = vld [vmem:[%s0 + $0x20] sm:$0xf]
  %v78 = vld [vmem:[%s0 + $0x24] sm:$0xf]
  %v79 = vld [vmem:[%s0 + $0x28] sm:$0xf]
  %v80 = vld [vmem:[%s0 + $0x2c] sm:$0xf]
  %v81 = vld [vmem:[%s0 + $0x30] sm:$0xf]
  %v82 = vld [vmem:[%s0 + $0x34] sm:$0xf]
  %v83 = vld [vmem:[%s0 + $0x38] sm:$0xf]
  %v84 = vld [vmem:[%s0 + $0x3c] sm:$0xf]
  %v85 = vunpack.c.l.bf16 %v69
  %v86 = vunpack.c.l.bf16 %v70
  %v87 = vunpack.c.l.bf16 %v71
  %v88 = vunpack.c.l.bf16 %v72
  %v89 = vunpack.c.l.bf16 %v73
  %v90 = vunpack.c.l.bf16 %v74
  %v91 = vunpack.c.l.bf16 %v75
  %v92 = vunpack.c.l.bf16 %v76
  %v93 = vunpack.c.l.bf16 %v77
  %v94 = vunpack.c.l.bf16 %v78
  %v95 = vunpack.c.l.bf16 %v79
  %v96 = vunpack.c.l.bf16 %v80
  %v97 = vunpack.c.l.bf16 %v81
  %v98 = vunpack.c.l.bf16 %v82
  %v99 = vunpack.c.l.bf16 %v83
  %v100 = vunpack.c.l.bf16 %v84
  %v101 = vld [vmem:[%s1] sm:$0x1]
  %v103 = vlaneseq
  %v104 = vshrl.u32 %v103, 7
  %v105 = vsub.s32 0, %v104
  %v106 = vrot.slane %v101, %v105
  %v108 = vmul.f32 %v85, %v106
  %v109 = vmul.f32 %v86, %v106
  %v110 = vmul.f32 %v87, %v106
  %v111 = vmul.f32 %v88, %v106
  %v112 = vmul.f32 %v89, %v106
  %v113 = vmul.f32 %v90, %v106
  %v114 = vmul.f32 %v91, %v106
  %v115 = vmul.f32 %v92, %v106
  %v116 = vmul.f32 %v93, %v106
  %v117 = vmul.f32 %v94, %v106
  %v118 = vmul.f32 %v95, %v106
  %v119 = vmul.f32 %v96, %v106
  %v120 = vmul.f32 %v97, %v106
  %v121 = vmul.f32 %v98, %v106
  %v122 = vmul.f32 %v99, %v106
  %v123 = vmul.f32 %v100, %v106
  %v124 = vld [vmem:[%s2] sm:$0x1]
  %v126 = vlaneseq
  %v127 = vshrl.u32 %v126, 7
  %v128 = vsub.s32 0, %v127
  %v129 = vrot.slane %v124, %v128
  %v131 = vadd.f32 %v108, %v129
  %v132 = vadd.f32 %v109, %v129
  %v133 = vadd.f32 %v110, %v129
  %v134 = vadd.f32 %v111, %v129
  %v135 = vadd.f32 %v112, %v129
  %v136 = vadd.f32 %v113, %v129
  %v137 = vadd.f32 %v114, %v129
  %v138 = vadd.f32 %v115, %v129
  %v139 = vadd.f32 %v116, %v129
  %v140 = vadd.f32 %v117, %v129
  %v141 = vadd.f32 %v118, %v129
  %v142 = vadd.f32 %v119, %v129
  %v143 = vadd.f32 %v120, %v129
  %v144 = vadd.f32 %v121, %v129
  %v145 = vadd.f32 %v122, %v129
  %v146 = vadd.f32 %v123, %v129
  %v147 = vmax.f32 %v131, 0.0
  %v148 = vmax.f32 %v132, 0.0
  %v149 = vmax.f32 %v133, 0.0
  %v150 = vmax.f32 %v134, 0.0
  %v151 = vmax.f32 %v135, 0.0
  %v152 = vmax.f32 %v136, 0.0
  %v153 = vmax.f32 %v137, 0.0
  %v154 = vmax.f32 %v138, 0.0
  %v155 = vmax.f32 %v139, 0.0
  %v156 = vmax.f32 %v140, 0.0
  %v157 = vmax.f32 %v141, 0.0
  %v158 = vmax.f32 %v142, 0.0
  %v159 = vmax.f32 %v143, 0.0
  %v160 = vmax.f32 %v144, 0.0
  %v161 = vmax.f32 %v145, 0.0
  %v162 = vmax.f32 %v146, 0.0
  %s163 = scalar_lea.vmem [#allocation2], 16
  %164 = vst [vmem:[%s163 + $0x1] sm:$0xff] %v147
  %165 = vst [vmem:[%s163 + $0x11] sm:$0xff] %v148
  %166 = vst [vmem:[%s163 + $0x21] sm:$0xff] %v149
  %167 = vst [vmem:[%s163 + $0x31] sm:$0xff] %v150
  %168 = vst [vmem:[%s163 + $0x41] sm:$0xff] %v151
  %169 = vst [vmem:[%s163 + $0x51] sm:$0xff] %v152
  %170 = vst [vmem:[%s163 + $0x61] sm:$0xff] %v153
  %171 = vst [vmem:[%s163 + $0x71] sm:$0xff] %v154
  %172 = vst [vmem:[%s163 + $0xa1] sm:$0xff] %v155
  %173 = vst [vmem:[%s163 + $0xb1] sm:$0xff] %v156
  %174 = vst [vmem:[%s163 + $0xc1] sm:$0xff] %v157
  %175 = vst [vmem:[%s163 + $0xd1] sm:$0xff] %v158
  %176 = vst [vmem:[%s163 + $0xe1] sm:$0xff] %v159
  %177 = vst [vmem:[%s163 + $0xf1] sm:$0xff] %v160
  %178 = vst [vmem:[%s163 + $0x101] sm:$0xff] %v161
  %179 = vst [vmem:[%s163 + $0x111] sm:$0xff] %v162
  %v180 = vld [vmem:[#allocation2] sm:$0xff]
  %v181 = vld [vmem:[#allocation2 + $0x10] sm:$0xff]
  %v182 = vld [vmem:[#allocation2 + $0x20] sm:$0xff]
  %v183 = vld [vmem:[#allocation2 + $0x30] sm:$0xff]
  %v184 = vld [vmem:[#allocation2 + $0x40] sm:$0xff]
  %v185 = vld [vmem:[#allocation2 + $0x50] sm:$0xff]
  %v186 = vld [vmem:[#allocation2 + $0x60] sm:$0xff]
  %v187 = vld [vmem:[#allocation2 + $0x70] sm:$0xff]
  %v188 = vld [vmem:[#allocation2 + $0xa0] sm:$0xff]
  %v189 = vld [vmem:[#allocation2 + $0xb0] sm:$0xff]
  %v190 = vld [vmem:[#allocation2 + $0xc0] sm:$0xff]
  %v191 = vld [vmem:[#allocation2 + $0xd0] sm:$0xff]
  %v192 = vld [vmem:[#allocation2 + $0xe0] sm:$0xff]
  %v193 = vld [vmem:[#allocation2 + $0xf0] sm:$0xff]
  %v194 = vld [vmem:[#allocation2 + $0x100] sm:$0xff]
  %v195 = vld [vmem:[#allocation2 + $0x110] sm:$0xff]
  %v196 = vpack.c.bf16 %v181, %v180
  %v197 = vpack.c.bf16 %v183, %v182
  %v198 = vpack.c.bf16 %v185, %v184
  %v199 = vpack.c.bf16 %v187, %v186
  %v200 = vpack.c.bf16 %v189, %v188
  %v201 = vpack.c.bf16 %v191, %v190
  %v202 = vpack.c.bf16 %v193, %v192
  %v203 = vpack.c.bf16 %v195, %v194
  %v204 = vld [vmem:[%s3] sm:$0xf]
  %v205 = vld [vmem:[%s3 + $0x4] sm:$0xf]
  %v206 = vld [vmem:[%s3 + $0x8] sm:$0xf]
  %v207 = vld [vmem:[%s3 + $0xc] sm:$0xf]
  %v208 = vld [vmem:[%s3 + $0x10] sm:$0xf]
  %v209 = vld [vmem:[%s3 + $0x14] sm:$0xf]
  %v210 = vld [vmem:[%s3 + $0x18] sm:$0xf]
  %v211 = vld [vmem:[%s3 + $0x1c] sm:$0xf]
  %v212 = vld [vmem:[%s3 + $0x20] sm:$0xf]
  %v213 = vld [vmem:[%s3 + $0x24] sm:$0xf]
  %v214 = vld [vmem:[%s3 + $0x28] sm:$0xf]
  %v215 = vld [vmem:[%s3 + $0x2c] sm:$0xf]
  %v216 = vld [vmem:[%s3 + $0x30] sm:$0xf]
  %v217 = vld [vmem:[%s3 + $0x34] sm:$0xf]
  %v218 = vld [vmem:[%s3 + $0x38] sm:$0xf]
  %v219 = vld [vmem:[%s3 + $0x3c] sm:$0xf]
  %v220 = vld [vmem:[#allocation2 + $0x1] sm:$0xff]
  %v221 = vld [vmem:[#allocation2 + $0x11] sm:$0xff]
  %v222 = vld [vmem:[#allocation2 + $0x21] sm:$0xff]
  %v223 = vld [vmem:[#allocation2 + $0x31] sm:$0xff]
  %v224 = vld [vmem:[#allocation2 + $0x41] sm:$0xff]
  %v225 = vld [vmem:[#allocation2 + $0x51] sm:$0xff]
  %v226 = vld [vmem:[#allocation2 + $0x61] sm:$0xff]
  %v227 = vld [vmem:[#allocation2 + $0x71] sm:$0xff]
  %v228 = vld [vmem:[#allocation2 + $0xa1] sm:$0xff]
  %v229 = vld [vmem:[#allocation2 + $0xb1] sm:$0xff]
  %v230 = vld [vmem:[#allocation2 + $0xc1] sm:$0xff]
  %v231 = vld [vmem:[#allocation2 + $0xd1] sm:$0xff]
  %v232 = vld [vmem:[#allocation2 + $0xe1] sm:$0xff]
  %v233 = vld [vmem:[#allocation2 + $0xf1] sm:$0xff]
  %v234 = vld [vmem:[#allocation2 + $0x101] sm:$0xff]
  %v235 = vld [vmem:[#allocation2 + $0x111] sm:$0xff]
  %v236 = vpack.c.bf16 %v221, %v220
  %v237 = vpack.c.bf16 %v223, %v222
  %v238 = vpack.c.bf16 %v225, %v224
  %v239 = vpack.c.bf16 %v227, %v226
  %v240 = vpack.c.bf16 %v229, %v228
  %v241 = vpack.c.bf16 %v231, %v230
  %v242 = vpack.c.bf16 %v233, %v232
  %v243 = vpack.c.bf16 %v235, %v234
  %v244 = vld [vmem:[%s3 + $0x40] sm:$0xf]
  %v245 = vld [vmem:[%s3 + $0x44] sm:$0xf]
  %v246 = vld [vmem:[%s3 + $0x48] sm:$0xf]
  %v247 = vld [vmem:[%s3 + $0x4c] sm:$0xf]
  %v248 = vld [vmem:[%s3 + $0x50] sm:$0xf]
  %v249 = vld [vmem:[%s3 + $0x54] sm:$0xf]
  %v250 = vld [vmem:[%s3 + $0x58] sm:$0xf]
  %v251 = vld [vmem:[%s3 + $0x5c] sm:$0xf]
  %v252 = vld [vmem:[%s3 + $0x60] sm:$0xf]
  %v253 = vld [vmem:[%s3 + $0x64] sm:$0xf]
  %v254 = vld [vmem:[%s3 + $0x68] sm:$0xf]
  %v255 = vld [vmem:[%s3 + $0x6c] sm:$0xf]
  %v256 = vld [vmem:[%s3 + $0x70] sm:$0xf]
  %v257 = vld [vmem:[%s3 + $0x74] sm:$0xf]
  %v258 = vld [vmem:[%s3 + $0x78] sm:$0xf]
  %v259 = vld [vmem:[%s3 + $0x7c] sm:$0xf]
  %v276 = vunpack.c.l.b16 %v244
  %v277 = vunpack.c.l.b16 %v245
  %v278 = vunpack.c.l.b16 %v246
  %v279 = vunpack.c.l.b16 %v247
  %v280 = vunpack.c.l.b16 %v248
  %v281 = vunpack.c.l.b16 %v249
  %v282 = vunpack.c.l.b16 %v250
  %v283 = vunpack.c.l.b16 %v251
  %v284 = vunpack.c.l.b16 %v252
  %v285 = vunpack.c.l.b16 %v253
  %v286 = vunpack.c.l.b16 %v254
  %v287 = vunpack.c.l.b16 %v255
  %v288 = vunpack.c.l.b16 %v256
  %v289 = vunpack.c.l.b16 %v257
  %v290 = vunpack.c.l.b16 %v258
  %v291 = vunpack.c.l.b16 %v259
  %v292 = vpack.c.b16 %v277, %v276
  %v293 = vpack.c.b16 %v279, %v278
  %v294 = vpack.c.b16 %v281, %v280
  %v295 = vpack.c.b16 %v283, %v282
  %v296 = vpack.c.b16 %v285, %v284
  %v297 = vpack.c.b16 %v287, %v286
  %v298 = vpack.c.b16 %v289, %v288
  %v299 = vpack.c.b16 %v291, %v290
  %308 = vmatprep.subr.bf16.mxu0 0
  %309 = vmatpush1.bf16.msra.mxu0 %v299
  %310 = vmatprep.subr.bf16.mxu0 0
  %311 = vmatpush1.bf16.msra.mxu0 %v298
  %312 = vmatprep.subr.bf16.mxu0 0
  %313 = vmatpush1.bf16.msra.mxu0 %v297
  %314 = vmatprep.subr.bf16.mxu0 0
  %315 = vmatpush1.bf16.msra.mxu0 %v296
  %316 = vmatprep.subr.bf16.mxu0 0
  %317 = vmatpush1.bf16.msra.mxu0 %v295
  %318 = vmatprep.subr.bf16.mxu0 0
  %319 = vmatpush1.bf16.msra.mxu0 %v294
  %320 = vmatprep.subr.bf16.mxu0 0
  %321 = vmatpush1.bf16.msra.mxu0 %v293
  %322 = vmatprep.subr.bf16.mxu0 0
  %323 = vmatpush1.bf16.msra.mxu0 %v292
  %324 = vmatprep.subr.bf16.mxu0 0
  %325 = vmatpush2.bf16.msra.mxu0 0
  %326 = vmatprep.subr.bf16.mxu0 0
  %327 = vmatpush2.bf16.msra.mxu0 0
  %328 = vmatprep.subr.bf16.mxu0 0
  %329 = vmatpush2.bf16.msra.mxu0 0
  %330 = vmatprep.subr.bf16.mxu0 0
  %331 = vmatpush2.bf16.msra.mxu0 0
  %332 = vmatprep.subr.bf16.mxu0 0
  %333 = vmatpush2.bf16.msra.mxu0 0
  %334 = vmatprep.subr.bf16.mxu0 0
  %335 = vmatpush2.bf16.msra.mxu0 0
  %336 = vmatprep.subr.bf16.mxu0 0
  %337 = vmatpush2.bf16.msra.mxu0 0
  %338 = vmatprep.subr.bf16.mxu0 0
  %339 = vmatpush2.bf16.msra.mxu0 0
  %340 = vmatprep.mubr.bf16.mxu0 0
  %341 = vmatmul.mubr.bf16.gmra.mxu0 %v236
  %v342 = vpop.f32.mrf.mxu0
  %v343 = vadd.f32 0.0, %v342
  %v344 = vpop.f32.mrf.mxu0
  %v345 = vpop.f32.mrf.mxu0
  %v346 = vadd.f32 0.0, %v345
  %v347 = vpop.f32.mrf.mxu0
  %348 = vmatprep.mubr.bf16.mxu0 0
  %349 = vmatmul.mubr.bf16.gmra.mxu0 %v237
  %v350 = vpop.f32.mrf.mxu0
  %v351 = vadd.f32 0.0, %v350
  %v352 = vpop.f32.mrf.mxu0
  %v353 = vpop.f32.mrf.mxu0
  %v354 = vadd.f32 0.0, %v353
  %v355 = vpop.f32.mrf.mxu0
  %356 = vmatprep.mubr.bf16.mxu0 0
  %357 = vmatmul.mubr.bf16.gmra.mxu0 %v238
  %v358 = vpop.f32.mrf.mxu0
  %v359 = vadd.f32 0.0, %v358
  %v360 = vpop.f32.mrf.mxu0
  %v361 = vpop.f32.mrf.mxu0
  %v362 = vadd.f32 0.0, %v361
  %v363 = vpop.f32.mrf.mxu0
  %364 = vmatprep.mubr.bf16.mxu0 0
  %365 = vmatmul.mubr.bf16.gmra.mxu0 %v239
  %v366 = vpop.f32.mrf.mxu0
  %v367 = vadd.f32 0.0, %v366
  %v368 = vpop.f32.mrf.mxu0
  %v369 = vpop.f32.mrf.mxu0
  %v370 = vadd.f32 0.0, %v369
  %v371 = vpop.f32.mrf.mxu0
  %372 = vmatprep.mubr.bf16.mxu0 0
  %373 = vmatmul.mubr.bf16.gmra.mxu0 %v240
  %v374 = vpop.f32.mrf.mxu0
  %v375 = vadd.f32 0.0, %v374
  %v376 = vpop.f32.mrf.mxu0
  %v377 = vpop.f32.mrf.mxu0
  %v378 = vadd.f32 0.0, %v377
  %v379 = vpop.f32.mrf.mxu0
  %380 = vmatprep.mubr.bf16.mxu0 0
  %381 = vmatmul.mubr.bf16.gmra.mxu0 %v241
  %v382 = vpop.f32.mrf.mxu0
  %v383 = vadd.f32 0.0, %v382
  %v384 = vpop.f32.mrf.mxu0
  %v385 = vpop.f32.mrf.mxu0
  %v386 = vadd.f32 0.0, %v385
  %v387 = vpop.f32.mrf.mxu0
  %388 = vmatprep.mubr.bf16.mxu0 0
  %389 = vmatmul.mubr.bf16.gmra.mxu0 %v242
  %v390 = vpop.f32.mrf.mxu0
  %v391 = vadd.f32 0.0, %v390
  %v392 = vpop.f32.mrf.mxu0
  %v393 = vpop.f32.mrf.mxu0
  %v394 = vadd.f32 0.0, %v393
  %v395 = vpop.f32.mrf.mxu0
  %396 = vmatprep.mubr.bf16.mxu0 0
  %397 = vmatmul.mubr.bf16.gmra.mxu0 %v243
  %v398 = vpop.f32.mrf.mxu0
  %v399 = vadd.f32 0.0, %v398
  %v400 = vpop.f32.mrf.mxu0
  %v401 = vpop.f32.mrf.mxu0
  %v402 = vadd.f32 0.0, %v401
  %v403 = vpop.f32.mrf.mxu0
  %404 = vdwg.mxu0
  %v421 = vunpack.c.l.b16 %v204
  %v422 = vunpack.c.l.b16 %v205
  %v423 = vunpack.c.l.b16 %v206
  %v424 = vunpack.c.l.b16 %v207
  %v425 = vunpack.c.l.b16 %v208
  %v426 = vunpack.c.l.b16 %v209
  %v427 = vunpack.c.l.b16 %v210
  %v428 = vunpack.c.l.b16 %v211
  %v429 = vunpack.c.l.b16 %v212
  %v430 = vunpack.c.l.b16 %v213
  %v431 = vunpack.c.l.b16 %v214
  %v432 = vunpack.c.l.b16 %v215
  %v433 = vunpack.c.l.b16 %v216
  %v434 = vunpack.c.l.b16 %v217
  %v435 = vunpack.c.l.b16 %v218
  %v436 = vunpack.c.l.b16 %v219
  %v437 = vpack.c.b16 %v422, %v421
  %v438 = vpack.c.b16 %v424, %v423
  %v439 = vpack.c.b16 %v426, %v425
  %v440 = vpack.c.b16 %v428, %v427
  %v441 = vpack.c.b16 %v430, %v429
  %v442 = vpack.c.b16 %v432, %v431
  %v443 = vpack.c.b16 %v434, %v433
  %v444 = vpack.c.b16 %v436, %v435
  %453 = vmatprep.subr.bf16.mxu0 0
  %454 = vmatpush1.bf16.msra.mxu0 %v444
  %455 = vmatprep.subr.bf16.mxu0 0
  %456 = vmatpush1.bf16.msra.mxu0 %v443
  %457 = vmatprep.subr.bf16.mxu0 0
  %458 = vmatpush1.bf16.msra.mxu0 %v442
  %459 = vmatprep.subr.bf16.mxu0 0
  %460 = vmatpush1.bf16.msra.mxu0 %v441
  %461 = vmatprep.subr.bf16.mxu0 0
  %462 = vmatpush1.bf16.msra.mxu0 %v440
  %463 = vmatprep.subr.bf16.mxu0 0
  %464 = vmatpush1.bf16.msra.mxu0 %v439
  %465 = vmatprep.subr.bf16.mxu0 0
  %466 = vmatpush1.bf16.msra.mxu0 %v438
  %467 = vmatprep.subr.bf16.mxu0 0
  %468 = vmatpush1.bf16.msra.mxu0 %v437
  %469 = vmatprep.subr.bf16.mxu0 0
  %470 = vmatpush2.bf16.msra.mxu0 0
  %471 = vmatprep.subr.bf16.mxu0 0
  %472 = vmatpush2.bf16.msra.mxu0 0
  %473 = vmatprep.subr.bf16.mxu0 0
  %474 = vmatpush2.bf16.msra.mxu0 0
  %475 = vmatprep.subr.bf16.mxu0 0
  %476 = vmatpush2.bf16.msra.mxu0 0
  %477 = vmatprep.subr.bf16.mxu0 0
  %478 = vmatpush2.bf16.msra.mxu0 0
  %479 = vmatprep.subr.bf16.mxu0 0
  %480 = vmatpush2.bf16.msra.mxu0 0
  %481 = vmatprep.subr.bf16.mxu0 0
  %482 = vmatpush2.bf16.msra.mxu0 0
  %483 = vmatprep.subr.bf16.mxu0 0
  %484 = vmatpush2.bf16.msra.mxu0 0
  %485 = vmatprep.mubr.bf16.mxu0 0
  %486 = vmatmul.mubr.bf16.gmra.mxu0 %v196
  %v487 = vpop.f32.mrf.mxu0
  %v488 = vadd.f32 %v343, %v487
  %v489 = vpop.f32.mrf.mxu0
  %v490 = vpop.f32.mrf.mxu0
  %v491 = vadd.f32 %v346, %v490
  %v492 = vpop.f32.mrf.mxu0
  %493 = vmatprep.mubr.bf16.mxu0 0
  %494 = vmatmul.mubr.bf16.gmra.mxu0 %v197
  %v495 = vpop.f32.mrf.mxu0
  %v496 = vadd.f32 %v351, %v495
  %v497 = vpop.f32.mrf.mxu0
  %v498 = vpop.f32.mrf.mxu0
  %v499 = vadd.f32 %v354, %v498
  %v500 = vpop.f32.mrf.mxu0
  %501 = vmatprep.mubr.bf16.mxu0 0
  %502 = vmatmul.mubr.bf16.gmra.mxu0 %v198
  %v503 = vpop.f32.mrf.mxu0
  %v504 = vadd.f32 %v359, %v503
  %v505 = vpop.f32.mrf.mxu0
  %v506 = vpop.f32.mrf.mxu0
  %v507 = vadd.f32 %v362, %v506
  %v508 = vpop.f32.mrf.mxu0
  %509 = vmatprep.mubr.bf16.mxu0 0
  %510 = vmatmul.mubr.bf16.gmra.mxu0 %v199
  %v511 = vpop.f32.mrf.mxu0
  %v512 = vadd.f32 %v367, %v511
  %v513 = vpop.f32.mrf.mxu0
  %v514 = vpop.f32.mrf.mxu0
  %v515 = vadd.f32 %v370, %v514
  %v516 = vpop.f32.mrf.mxu0
  %517 = vmatprep.mubr.bf16.mxu0 0
  %518 = vmatmul.mubr.bf16.gmra.mxu0 %v200
  %v519 = vpop.f32.mrf.mxu0
  %v520 = vadd.f32 %v375, %v519
  %v521 = vpop.f32.mrf.mxu0
  %v522 = vpop.f32.mrf.mxu0
  %v523 = vadd.f32 %v378, %v522
  %v524 = vpop.f32.mrf.mxu0
  %525 = vmatprep.mubr.bf16.mxu0 0
  %526 = vmatmul.mubr.bf16.gmra.mxu0 %v201
  %v527 = vpop.f32.mrf.mxu0
  %v528 = vadd.f32 %v383, %v527
  %v529 = vpop.f32.mrf.mxu0
  %v530 = vpop.f32.mrf.mxu0
  %v531 = vadd.f32 %v386, %v530
  %v532 = vpop.f32.mrf.mxu0
  %533 = vmatprep.mubr.bf16.mxu0 0
  %534 = vmatmul.mubr.bf16.gmra.mxu0 %v202
  %v535 = vpop.f32.mrf.mxu0
  %v536 = vadd.f32 %v391, %v535
  %v537 = vpop.f32.mrf.mxu0
  %v538 = vpop.f32.mrf.mxu0
  %v539 = vadd.f32 %v394, %v538
  %v540 = vpop.f32.mrf.mxu0
  %541 = vmatprep.mubr.bf16.mxu0 0
  %542 = vmatmul.mubr.bf16.gmra.mxu0 %v203
  %v543 = vpop.f32.mrf.mxu0
  %v544 = vadd.f32 %v399, %v543
  %v545 = vpop.f32.mrf.mxu0
  %v546 = vpop.f32.mrf.mxu0
  %v547 = vadd.f32 %v402, %v546
  %v548 = vpop.f32.mrf.mxu0
  %549 = vdwg.mxu0
  %v550 = vld [vmem:[#allocation2 + $0x2] sm:$0xff]
  %v551 = vld [vmem:[#allocation2 + $0x12] sm:$0xff]
  %v552 = vld [vmem:[#allocation2 + $0x22] sm:$0xff]
  %v553 = vld [vmem:[#allocation2 + $0x32] sm:$0xff]
  %v554 = vld [vmem:[#allocation2 + $0x42] sm:$0xff]
  %v555 = vld [vmem:[#allocation2 + $0x52] sm:$0xff]
  %v556 = vld [vmem:[#allocation2 + $0x62] sm:$0xff]
  %v557 = vld [vmem:[#allocation2 + $0x72] sm:$0xff]
  %v558 = vld [vmem:[#allocation2 + $0xa2] sm:$0xff]
  %v559 = vld [vmem:[#allocation2 + $0xb2] sm:$0xff]
  %v560 = vld [vmem:[#allocation2 + $0xc2] sm:$0xff]
  %v561 = vld [vmem:[#allocation2 + $0xd2] sm:$0xff]
  %v562 = vld [vmem:[#allocation2 + $0xe2] sm:$0xff]
  %v563 = vld [vmem:[#allocation2 + $0xf2] sm:$0xff]
  %v564 = vld [vmem:[#allocation2 + $0x102] sm:$0xff]
  %v565 = vld [vmem:[#allocation2 + $0x112] sm:$0xff]
  %v566 = vpack.c.bf16 %v551, %v550
  %v567 = vpack.c.bf16 %v553, %v552
  %v568 = vpack.c.bf16 %v555, %v554
  %v569 = vpack.c.bf16 %v557, %v556
  %v570 = vpack.c.bf16 %v559, %v558
  %v571 = vpack.c.bf16 %v561, %v560
  %v572 = vpack.c.bf16 %v563, %v562
  %v573 = vpack.c.bf16 %v565, %v564
  %v574 = vld [vmem:[%s3 + $0x80] sm:$0xf]
  %v575 = vld [vmem:[%s3 + $0x84] sm:$0xf]
  %v576 = vld [vmem:[%s3 + $0x88] sm:$0xf]
  %v577 = vld [vmem:[%s3 + $0x8c] sm:$0xf]
  %v578 = vld [vmem:[%s3 + $0x90] sm:$0xf]
  %v579 = vld [vmem:[%s3 + $0x94] sm:$0xf]
  %v580 = vld [vmem:[%s3 + $0x98] sm:$0xf]
  %v581 = vld [vmem:[%s3 + $0x9c] sm:$0xf]
  %v582 = vld [vmem:[%s3 + $0xa0] sm:$0xf]
  %v583 = vld [vmem:[%s3 + $0xa4] sm:$0xf]
  %v584 = vld [vmem:[%s3 + $0xa8] sm:$0xf]
  %v585 = vld [vmem:[%s3 + $0xac] sm:$0xf]
  %v586 = vld [vmem:[%s3 + $0xb0] sm:$0xf]
  %v587 = vld [vmem:[%s3 + $0xb4] sm:$0xf]
  %v588 = vld [vmem:[%s3 + $0xb8] sm:$0xf]
  %v589 = vld [vmem:[%s3 + $0xbc] sm:$0xf]
  %v606 = vunpack.c.l.b16 %v574
  %v607 = vunpack.c.l.b16 %v575
  %v608 = vunpack.c.l.b16 %v576
  %v609 = vunpack.c.l.b16 %v577
  %v610 = vunpack.c.l.b16 %v578
  %v611 = vunpack.c.l.b16 %v579
  %v612 = vunpack.c.l.b16 %v580
  %v613 = vunpack.c.l.b16 %v581
  %v614 = vunpack.c.l.b16 %v582
  %v615 = vunpack.c.l.b16 %v583
  %v616 = vunpack.c.l.b16 %v584
  %v617 = vunpack.c.l.b16 %v585
  %v618 = vunpack.c.l.b16 %v586
  %v619 = vunpack.c.l.b16 %v587
  %v620 = vunpack.c.l.b16 %v588
  %v621 = vunpack.c.l.b16 %v589
  %v622 = vpack.c.b16 %v607, %v606
  %v623 = vpack.c.b16 %v609, %v608
  %v624 = vpack.c.b16 %v611, %v610
  %v625 = vpack.c.b16 %v613, %v612
  %v626 = vpack.c.b16 %v615, %v614
  %v627 = vpack.c.b16 %v617, %v616
  %v628 = vpack.c.b16 %v619, %v618
  %v629 = vpack.c.b16 %v621, %v620
  %638 = vmatprep.subr.bf16.mxu0 0
  %639 = vmatpush1.bf16.msra.mxu0 %v629
  %640 = vmatprep.subr.bf16.mxu0 0
  %641 = vmatpush1.bf16.msra.mxu0 %v628
  %642 = vmatprep.subr.bf16.mxu0 0
  %643 = vmatpush1.bf16.msra.mxu0 %v627
  %644 = vmatprep.subr.bf16.mxu0 0
  %645 = vmatpush1.bf16.msra.mxu0 %v626
  %646 = vmatprep.subr.bf16.mxu0 0
  %647 = vmatpush1.bf16.msra.mxu0 %v625
  %648 = vmatprep.subr.bf16.mxu0 0
  %649 = vmatpush1.bf16.msra.mxu0 %v624
  %650 = vmatprep.subr.bf16.mxu0 0
  %651 = vmatpush1.bf16.msra.mxu0 %v623
  %652 = vmatprep.subr.bf16.mxu0 0
  %653 = vmatpush1.bf16.msra.mxu0 %v622
  %654 = vmatprep.subr.bf16.mxu0 0
  %655 = vmatpush2.bf16.msra.mxu0 0
  %656 = vmatprep.subr.bf16.mxu0 0
  %657 = vmatpush2.bf16.msra.mxu0 0
  %658 = vmatprep.subr.bf16.mxu0 0
  %659 = vmatpush2.bf16.msra.mxu0 0
  %660 = vmatprep.subr.bf16.mxu0 0
  %661 = vmatpush2.bf16.msra.mxu0 0
  %662 = vmatprep.subr.bf16.mxu0 0
  %663 = vmatpush2.bf16.msra.mxu0 0
  %664 = vmatprep.subr.bf16.mxu0 0
  %665 = vmatpush2.bf16.msra.mxu0 0
  %666 = vmatprep.subr.bf16.mxu0 0
  %667 = vmatpush2.bf16.msra.mxu0 0
  %668 = vmatprep.subr.bf16.mxu0 0
  %669 = vmatpush2.bf16.msra.mxu0 0
  %670 = vmatprep.mubr.bf16.mxu0 0
  %671 = vmatmul.mubr.bf16.gmra.mxu0 %v566
  %v672 = vpop.f32.mrf.mxu0
  %v673 = vadd.f32 0.0, %v672
  %v674 = vpop.f32.mrf.mxu0
  %v675 = vpop.f32.mrf.mxu0
  %v676 = vadd.f32 0.0, %v675
  %v677 = vpop.f32.mrf.mxu0
  %678 = vmatprep.mubr.bf16.mxu0 0
  %679 = vmatmul.mubr.bf16.gmra.mxu0 %v567
  %v680 = vpop.f32.mrf.mxu0
  %v681 = vadd.f32 0.0, %v680
  %v682 = vpop.f32.mrf.mxu0
  %v683 = vpop.f32.mrf.mxu0
  %v684 = vadd.f32 0.0, %v683
  %v685 = vpop.f32.mrf.mxu0
  %686 = vmatprep.mubr.bf16.mxu0 0
  %687 = vmatmul.mubr.bf16.gmra.mxu0 %v568
  %v688 = vpop.f32.mrf.mxu0
  %v689 = vadd.f32 0.0, %v688
  %v690 = vpop.f32.mrf.mxu0
  %v691 = vpop.f32.mrf.mxu0
  %v692 = vadd.f32 0.0, %v691
  %v693 = vpop.f32.mrf.mxu0
  %694 = vmatprep.mubr.bf16.mxu0 0
  %695 = vmatmul.mubr.bf16.gmra.mxu0 %v569
  %v696 = vpop.f32.mrf.mxu0
  %v697 = vadd.f32 0.0, %v696
  %v698 = vpop.f32.mrf.mxu0
  %v699 = vpop.f32.mrf.mxu0
  %v700 = vadd.f32 0.0, %v699
  %v701 = vpop.f32.mrf.mxu0
  %702 = vmatprep.mubr.bf16.mxu0 0
  %703 = vmatmul.mubr.bf16.gmra.mxu0 %v570
  %v704 = vpop.f32.mrf.mxu0
  %v705 = vadd.f32 0.0, %v704
  %v706 = vpop.f32.mrf.mxu0
  %v707 = vpop.f32.mrf.mxu0
  %v708 = vadd.f32 0.0, %v707
  %v709 = vpop.f32.mrf.mxu0
  %710 = vmatprep.mubr.bf16.mxu0 0
  %711 = vmatmul.mubr.bf16.gmra.mxu0 %v571
  %v712 = vpop.f32.mrf.mxu0
  %v713 = vadd.f32 0.0, %v712
  %v714 = vpop.f32.mrf.mxu0
  %v715 = vpop.f32.mrf.mxu0
  %v716 = vadd.f32 0.0, %v715
  %v717 = vpop.f32.mrf.mxu0
  %718 = vmatprep.mubr.bf16.mxu0 0
  %719 = vmatmul.mubr.bf16.gmra.mxu0 %v572
  %v720 = vpop.f32.mrf.mxu0
  %v721 = vadd.f32 0.0, %v720
  %v722 = vpop.f32.mrf.mxu0
  %v723 = vpop.f32.mrf.mxu0
  %v724 = vadd.f32 0.0, %v723
  %v725 = vpop.f32.mrf.mxu0
  %726 = vmatprep.mubr.bf16.mxu0 0
  %727 = vmatmul.mubr.bf16.gmra.mxu0 %v573
  %v728 = vpop.f32.mrf.mxu0
  %v729 = vadd.f32 0.0, %v728
  %v730 = vpop.f32.mrf.mxu0
  %v731 = vpop.f32.mrf.mxu0
  %v732 = vadd.f32 0.0, %v731
  %v733 = vpop.f32.mrf.mxu0
  %734 = vdwg.mxu0
  %v735 = vadd.f32 %v488, %v673
  %v736 = vadd.f32 %v491, %v676
  %v737 = vadd.f32 %v496, %v681
  %v738 = vadd.f32 %v499, %v684
  %v739 = vadd.f32 %v504, %v689
  %v740 = vadd.f32 %v507, %v692
  %v741 = vadd.f32 %v512, %v697
  %v742 = vadd.f32 %v515, %v700
  %v743 = vadd.f32 %v520, %v705
  %v744 = vadd.f32 %v523, %v708
  %v745 = vadd.f32 %v528, %v713
  %v746 = vadd.f32 %v531, %v716
  %v747 = vadd.f32 %v536, %v721
  %v748 = vadd.f32 %v539, %v724
  %v749 = vadd.f32 %v544, %v729
  %v750 = vadd.f32 %v547, %v732
  %v751 = vld [vmem:[%s163] sm:$0xff]
  %v752 = vld [vmem:[%s163 + $0x10] sm:$0xff]
  %v753 = vld [vmem:[%s163 + $0x20] sm:$0xff]
  %v754 = vld [vmem:[%s163 + $0x30] sm:$0xff]
  %v755 = vld [vmem:[%s163 + $0x40] sm:$0xff]
  %v756 = vld [vmem:[%s163 + $0x50] sm:$0xff]
  %v757 = vld [vmem:[%s163 + $0x60] sm:$0xff]
  %v758 = vld [vmem:[%s163 + $0x70] sm:$0xff]
  %v759 = vld [vmem:[%s163 + $0xa0] sm:$0xff]
  %v760 = vld [vmem:[%s163 + $0xb0] sm:$0xff]
  %v761 = vld [vmem:[%s163 + $0xc0] sm:$0xff]
  %v762 = vld [vmem:[%s163 + $0xd0] sm:$0xff]
  %v763 = vld [vmem:[%s163 + $0xe0] sm:$0xff]
  %v764 = vld [vmem:[%s163 + $0xf0] sm:$0xff]
  %v765 = vld [vmem:[%s163 + $0x100] sm:$0xff]
  %v766 = vld [vmem:[%s163 + $0x110] sm:$0xff]
  %v767 = vpack.c.bf16 %v752, %v751
  %v768 = vpack.c.bf16 %v754, %v753
  %v769 = vpack.c.bf16 %v756, %v755
  %v770 = vpack.c.bf16 %v758, %v757
  %v771 = vpack.c.bf16 %v760, %v759
  %v772 = vpack.c.bf16 %v762, %v761
  %v773 = vpack.c.bf16 %v764, %v763
  %v774 = vpack.c.bf16 %v766, %v765
  %v775 = vld [vmem:[%s3 + $0xc0] sm:$0xf]
  %v776 = vld [vmem:[%s3 + $0xc4] sm:$0xf]
  %v777 = vld [vmem:[%s3 + $0xc8] sm:$0xf]
  %v778 = vld [vmem:[%s3 + $0xcc] sm:$0xf]
  %v779 = vld [vmem:[%s3 + $0xd0] sm:$0xf]
  %v780 = vld [vmem:[%s3 + $0xd4] sm:$0xf]
  %v781 = vld [vmem:[%s3 + $0xd8] sm:$0xf]
  %v782 = vld [vmem:[%s3 + $0xdc] sm:$0xf]
  %v783 = vld [vmem:[%s3 + $0xe0] sm:$0xf]
  %v784 = vld [vmem:[%s3 + $0xe4] sm:$0xf]
  %v785 = vld [vmem:[%s3 + $0xe8] sm:$0xf]
  %v786 = vld [vmem:[%s3 + $0xec] sm:$0xf]
  %v787 = vld [vmem:[%s3 + $0xf0] sm:$0xf]
  %v788 = vld [vmem:[%s3 + $0xf4] sm:$0xf]
  %v789 = vld [vmem:[%s3 + $0xf8] sm:$0xf]
  %v790 = vld [vmem:[%s3 + $0xfc] sm:$0xf]
  %v807 = vunpack.c.l.b16 %v775
  %v808 = vunpack.c.l.b16 %v776
  %v809 = vunpack.c.l.b16 %v777
  %v810 = vunpack.c.l.b16 %v778
  %v811 = vunpack.c.l.b16 %v779
  %v812 = vunpack.c.l.b16 %v780
  %v813 = vunpack.c.l.b16 %v781
  %v814 = vunpack.c.l.b16 %v782
  %v815 = vunpack.c.l.b16 %v783
  %v816 = vunpack.c.l.b16 %v784
  %v817 = vunpack.c.l.b16 %v785
  %v818 = vunpack.c.l.b16 %v786
  %v819 = vunpack.c.l.b16 %v787
  %v820 = vunpack.c.l.b16 %v788
  %v821 = vunpack.c.l.b16 %v789
  %v822 = vunpack.c.l.b16 %v790
  %v823 = vpack.c.b16 %v808, %v807
  %v824 = vpack.c.b16 %v810, %v809
  %v825 = vpack.c.b16 %v812, %v811
  %v826 = vpack.c.b16 %v814, %v813
  %v827 = vpack.c.b16 %v816, %v815
  %v828 = vpack.c.b16 %v818, %v817
  %v829 = vpack.c.b16 %v820, %v819
  %v830 = vpack.c.b16 %v822, %v821
  %839 = vmatprep.subr.bf16.mxu0 0
  %840 = vmatpush1.bf16.msra.mxu0 %v830
  %841 = vmatprep.subr.bf16.mxu0 0
  %842 = vmatpush1.bf16.msra.mxu0 %v829
  %843 = vmatprep.subr.bf16.mxu0 0
  %844 = vmatpush1.bf16.msra.mxu0 %v828
  %845 = vmatprep.subr.bf16.mxu0 0
  %846 = vmatpush1.bf16.msra.mxu0 %v827
  %847 = vmatprep.subr.bf16.mxu0 0
  %848 = vmatpush1.bf16.msra.mxu0 %v826
  %849 = vmatprep.subr.bf16.mxu0 0
  %850 = vmatpush1.bf16.msra.mxu0 %v825
  %851 = vmatprep.subr.bf16.mxu0 0
  %852 = vmatpush1.bf16.msra.mxu0 %v824
  %853 = vmatprep.subr.bf16.mxu0 0
  %854 = vmatpush1.bf16.msra.mxu0 %v823
  %855 = vmatprep.subr.bf16.mxu0 0
  %856 = vmatpush2.bf16.msra.mxu0 0
  %857 = vmatprep.subr.bf16.mxu0 0
  %858 = vmatpush2.bf16.msra.mxu0 0
  %859 = vmatprep.subr.bf16.mxu0 0
  %860 = vmatpush2.bf16.msra.mxu0 0
  %861 = vmatprep.subr.bf16.mxu0 0
  %862 = vmatpush2.bf16.msra.mxu0 0
  %863 = vmatprep.subr.bf16.mxu0 0
  %864 = vmatpush2.bf16.msra.mxu0 0
  %865 = vmatprep.subr.bf16.mxu0 0
  %866 = vmatpush2.bf16.msra.mxu0 0
  %867 = vmatprep.subr.bf16.mxu0 0
  %868 = vmatpush2.bf16.msra.mxu0 0
  %869 = vmatprep.subr.bf16.mxu0 0
  %870 = vmatpush2.bf16.msra.mxu0 0
  %871 = vmatprep.mubr.bf16.mxu0 0
  %872 = vmatmul.mubr.bf16.gmra.mxu0 %v767
  %v873 = vpop.f32.mrf.mxu0
  %v874 = vadd.f32 0.0, %v873
  %v875 = vpop.f32.mrf.mxu0
  %v876 = vpop.f32.mrf.mxu0
  %v877 = vadd.f32 0.0, %v876
  %v878 = vpop.f32.mrf.mxu0
  %879 = vmatprep.mubr.bf16.mxu0 0
  %880 = vmatmul.mubr.bf16.gmra.mxu0 %v768
  %v881 = vpop.f32.mrf.mxu0
  %v882 = vadd.f32 0.0, %v881
  %v883 = vpop.f32.mrf.mxu0
  %v884 = vpop.f32.mrf.mxu0
  %v885 = vadd.f32 0.0, %v884
  %v886 = vpop.f32.mrf.mxu0
  %887 = vmatprep.mubr.bf16.mxu0 0
  %888 = vmatmul.mubr.bf16.gmra.mxu0 %v769
  %v889 = vpop.f32.mrf.mxu0
  %v890 = vadd.f32 0.0, %v889
  %v891 = vpop.f32.mrf.mxu0
  %v892 = vpop.f32.mrf.mxu0
  %v893 = vadd.f32 0.0, %v892
  %v894 = vpop.f32.mrf.mxu0
  %895 = vmatprep.mubr.bf16.mxu0 0
  %896 = vmatmul.mubr.bf16.gmra.mxu0 %v770
  %v897 = vpop.f32.mrf.mxu0
  %v898 = vadd.f32 0.0, %v897
  %v899 = vpop.f32.mrf.mxu0
  %v900 = vpop.f32.mrf.mxu0
  %v901 = vadd.f32 0.0, %v900
  %v902 = vpop.f32.mrf.mxu0
  %903 = vmatprep.mubr.bf16.mxu0 0
  %904 = vmatmul.mubr.bf16.gmra.mxu0 %v771
  %v905 = vpop.f32.mrf.mxu0
  %v906 = vadd.f32 0.0, %v905
  %v907 = vpop.f32.mrf.mxu0
  %v908 = vpop.f32.mrf.mxu0
  %v909 = vadd.f32 0.0, %v908
  %v910 = vpop.f32.mrf.mxu0
  %911 = vmatprep.mubr.bf16.mxu0 0
  %912 = vmatmul.mubr.bf16.gmra.mxu0 %v772
  %v913 = vpop.f32.mrf.mxu0
  %v914 = vadd.f32 0.0, %v913
  %v915 = vpop.f32.mrf.mxu0
  %v916 = vpop.f32.mrf.mxu0
  %v917 = vadd.f32 0.0, %v916
  %v918 = vpop.f32.mrf.mxu0
  %919 = vmatprep.mubr.bf16.mxu0 0
  %920 = vmatmul.mubr.bf16.gmra.mxu0 %v773
  %v921 = vpop.f32.mrf.mxu0
  %v922 = vadd.f32 0.0, %v921
  %v923 = vpop.f32.mrf.mxu0
  %v924 = vpop.f32.mrf.mxu0
  %v925 = vadd.f32 0.0, %v924
  %v926 = vpop.f32.mrf.mxu0
  %927 = vmatprep.mubr.bf16.mxu0 0
  %928 = vmatmul.mubr.bf16.gmra.mxu0 %v774
  %v929 = vpop.f32.mrf.mxu0
  %v930 = vadd.f32 0.0, %v929
  %v931 = vpop.f32.mrf.mxu0
  %v932 = vpop.f32.mrf.mxu0
  %v933 = vadd.f32 0.0, %v932
  %v934 = vpop.f32.mrf.mxu0
  %935 = vdwg.mxu0
  %v936 = vadd.f32 %v735, %v874
  %v937 = vadd.f32 %v736, %v877
  %v938 = vadd.f32 %v737, %v882
  %v939 = vadd.f32 %v738, %v885
  %v940 = vadd.f32 %v739, %v890
  %v941 = vadd.f32 %v740, %v893
  %v942 = vadd.f32 %v741, %v898
  %v943 = vadd.f32 %v742, %v901
  %v944 = vadd.f32 %v743, %v906
  %v945 = vadd.f32 %v744, %v909
  %v946 = vadd.f32 %v745, %v914
  %v947 = vadd.f32 %v746, %v917
  %v948 = vadd.f32 %v747, %v922
  %v949 = vadd.f32 %v748, %v925
  %v950 = vadd.f32 %v749, %v930
  %v951 = vadd.f32 %v750, %v933
  %v952 = vld [vmem:[%s163 + $0x1] sm:$0xff]
  %v953 = vld [vmem:[%s163 + $0x11] sm:$0xff]
  %v954 = vld [vmem:[%s163 + $0x21] sm:$0xff]
  %v955 = vld [vmem:[%s163 + $0x31] sm:$0xff]
  %v956 = vld [vmem:[%s163 + $0x41] sm:$0xff]
  %v957 = vld [vmem:[%s163 + $0x51] sm:$0xff]
  %v958 = vld [vmem:[%s163 + $0x61] sm:$0xff]
  %v959 = vld [vmem:[%s163 + $0x71] sm:$0xff]
  %v960 = vld [vmem:[%s163 + $0xa1] sm:$0xff]
  %v961 = vld [vmem:[%s163 + $0xb1] sm:$0xff]
  %v962 = vld [vmem:[%s163 + $0xc1] sm:$0xff]
  %v963 = vld [vmem:[%s163 + $0xd1] sm:$0xff]
  %v964 = vld [vmem:[%s163 + $0xe1] sm:$0xff]
  %v965 = vld [vmem:[%s163 + $0xf1] sm:$0xff]
  %v966 = vld [vmem:[%s163 + $0x101] sm:$0xff]
  %v967 = vld [vmem:[%s163 + $0x111] sm:$0xff]
  %v968 = vpack.c.bf16 %v953, %v952
  %v969 = vpack.c.bf16 %v955, %v954
  %v970 = vpack.c.bf16 %v957, %v956
  %v971 = vpack.c.bf16 %v959, %v958
  %v972 = vpack.c.bf16 %v961, %v960
  %v973 = vpack.c.bf16 %v963, %v962
  %v974 = vpack.c.bf16 %v965, %v964
  %v975 = vpack.c.bf16 %v967, %v966
  %v976 = vld [vmem:[%s3 + $0x100] sm:$0xf]
  %v977 = vld [vmem:[%s3 + $0x104] sm:$0xf]
  %v978 = vld [vmem:[%s3 + $0x108] sm:$0xf]
  %v979 = vld [vmem:[%s3 + $0x10c] sm:$0xf]
  %v980 = vld [vmem:[%s3 + $0x110] sm:$0xf]
  %v981 = vld [vmem:[%s3 + $0x114] sm:$0xf]
  %v982 = vld [vmem:[%s3 + $0x118] sm:$0xf]
  %v983 = vld [vmem:[%s3 + $0x11c] sm:$0xf]
  %v984 = vld [vmem:[%s3 + $0x120] sm:$0xf]
  %v985 = vld [vmem:[%s3 + $0x124] sm:$0xf]
  %v986 = vld [vmem:[%s3 + $0x128] sm:$0xf]
  %v987 = vld [vmem:[%s3 + $0x12c] sm:$0xf]
  %v988 = vld [vmem:[%s3 + $0x130] sm:$0xf]
  %v989 = vld [vmem:[%s3 + $0x134] sm:$0xf]
  %v990 = vld [vmem:[%s3 + $0x138] sm:$0xf]
  %v991 = vld [vmem:[%s3 + $0x13c] sm:$0xf]
  %v1008 = vunpack.c.l.b16 %v976
  %v1009 = vunpack.c.l.b16 %v977
  %v1010 = vunpack.c.l.b16 %v978
  %v1011 = vunpack.c.l.b16 %v979
  %v1012 = vunpack.c.l.b16 %v980
  %v1013 = vunpack.c.l.b16 %v981
  %v1014 = vunpack.c.l.b16 %v982
  %v1015 = vunpack.c.l.b16 %v983
  %v1016 = vunpack.c.l.b16 %v984
  %v1017 = vunpack.c.l.b16 %v985
  %v1018 = vunpack.c.l.b16 %v986
  %v1019 = vunpack.c.l.b16 %v987
  %v1020 = vunpack.c.l.b16 %v988
  %v1021 = vunpack.c.l.b16 %v989
  %v1022 = vunpack.c.l.b16 %v990
  %v1023 = vunpack.c.l.b16 %v991
  %v1024 = vpack.c.b16 %v1009, %v1008
  %v1025 = vpack.c.b16 %v1011, %v1010
  %v1026 = vpack.c.b16 %v1013, %v1012
  %v1027 = vpack.c.b16 %v1015, %v1014
  %v1028 = vpack.c.b16 %v1017, %v1016
  %v1029 = vpack.c.b16 %v1019, %v1018
  %v1030 = vpack.c.b16 %v1021, %v1020
  %v1031 = vpack.c.b16 %v1023, %v1022
  %1040 = vmatprep.subr.bf16.mxu0 0
  %1041 = vmatpush1.bf16.msra.mxu0 %v1031
  %1042 = vmatprep.subr.bf16.mxu0 0
  %1043 = vmatpush1.bf16.msra.mxu0 %v1030
  %1044 = vmatprep.subr.bf16.mxu0 0
  %1045 = vmatpush1.bf16.msra.mxu0 %v1029
  %1046 = vmatprep.subr.bf16.mxu0 0
  %1047 = vmatpush1.bf16.msra.mxu0 %v1028
  %1048 = vmatprep.subr.bf16.mxu0 0
  %1049 = vmatpush1.bf16.msra.mxu0 %v1027
  %1050 = vmatprep.subr.bf16.mxu0 0
  %1051 = vmatpush1.bf16.msra.mxu0 %v1026
  %1052 = vmatprep.subr.bf16.mxu0 0
  %1053 = vmatpush1.bf16.msra.mxu0 %v1025
  %1054 = vmatprep.subr.bf16.mxu0 0
  %1055 = vmatpush1.bf16.msra.mxu0 %v1024
  %1056 = vmatprep.subr.bf16.mxu0 0
  %1057 = vmatpush2.bf16.msra.mxu0 0
  %1058 = vmatprep.subr.bf16.mxu0 0
  %1059 = vmatpush2.bf16.msra.mxu0 0
  %1060 = vmatprep.subr.bf16.mxu0 0
  %1061 = vmatpush2.bf16.msra.mxu0 0
  %1062 = vmatprep.subr.bf16.mxu0 0
  %1063 = vmatpush2.bf16.msra.mxu0 0
  %1064 = vmatprep.subr.bf16.mxu0 0
  %1065 = vmatpush2.bf16.msra.mxu0 0
  %1066 = vmatprep.subr.bf16.mxu0 0
  %1067 = vmatpush2.bf16.msra.mxu0 0
  %1068 = vmatprep.subr.bf16.mxu0 0
  %1069 = vmatpush2.bf16.msra.mxu0 0
  %1070 = vmatprep.subr.bf16.mxu0 0
  %1071 = vmatpush2.bf16.msra.mxu0 0
  %1072 = vmatprep.mubr.bf16.mxu0 0
  %1073 = vmatmul.mubr.bf16.gmra.mxu0 %v968
  %v1074 = vpop.f32.mrf.mxu0
  %v1075 = vadd.f32 0.0, %v1074
  %v1076 = vpop.f32.mrf.mxu0
  %v1077 = vpop.f32.mrf.mxu0
  %v1078 = vadd.f32 0.0, %v1077
  %v1079 = vpop.f32.mrf.mxu0
  %1080 = vmatprep.mubr.bf16.mxu0 0
  %1081 = vmatmul.mubr.bf16.gmra.mxu0 %v969
  %v1082 = vpop.f32.mrf.mxu0
  %v1083 = vadd.f32 0.0, %v1082
  %v1084 = vpop.f32.mrf.mxu0
  %v1085 = vpop.f32.mrf.mxu0
  %v1086 = vadd.f32 0.0, %v1085
  %v1087 = vpop.f32.mrf.mxu0
  %1088 = vmatprep.mubr.bf16.mxu0 0
  %1089 = vmatmul.mubr.bf16.gmra.mxu0 %v970
  %v1090 = vpop.f32.mrf.mxu0
  %v1091 = vadd.f32 0.0, %v1090
  %v1092 = vpop.f32.mrf.mxu0
  %v1093 = vpop.f32.mrf.mxu0
  %v1094 = vadd.f32 0.0, %v1093
  %v1095 = vpop.f32.mrf.mxu0
  %1096 = vmatprep.mubr.bf16.mxu0 0
  %1097 = vmatmul.mubr.bf16.gmra.mxu0 %v971
  %v1098 = vpop.f32.mrf.mxu0
  %v1099 = vadd.f32 0.0, %v1098
  %v1100 = vpop.f32.mrf.mxu0
  %v1101 = vpop.f32.mrf.mxu0
  %v1102 = vadd.f32 0.0, %v1101
  %v1103 = vpop.f32.mrf.mxu0
  %1104 = vmatprep.mubr.bf16.mxu0 0
  %1105 = vmatmul.mubr.bf16.gmra.mxu0 %v972
  %v1106 = vpop.f32.mrf.mxu0
  %v1107 = vadd.f32 0.0, %v1106
  %v1108 = vpop.f32.mrf.mxu0
  %v1109 = vpop.f32.mrf.mxu0
  %v1110 = vadd.f32 0.0, %v1109
  %v1111 = vpop.f32.mrf.mxu0
  %1112 = vmatprep.mubr.bf16.mxu0 0
  %1113 = vmatmul.mubr.bf16.gmra.mxu0 %v973
  %v1114 = vpop.f32.mrf.mxu0
  %v1115 = vadd.f32 0.0, %v1114
  %v1116 = vpop.f32.mrf.mxu0
  %v1117 = vpop.f32.mrf.mxu0
  %v1118 = vadd.f32 0.0, %v1117
  %v1119 = vpop.f32.mrf.mxu0
  %1120 = vmatprep.mubr.bf16.mxu0 0
  %1121 = vmatmul.mubr.bf16.gmra.mxu0 %v974
  %v1122 = vpop.f32.mrf.mxu0
  %v1123 = vadd.f32 0.0, %v1122
  %v1124 = vpop.f32.mrf.mxu0
  %v1125 = vpop.f32.mrf.mxu0
  %v1126 = vadd.f32 0.0, %v1125
  %v1127 = vpop.f32.mrf.mxu0
  %1128 = vmatprep.mubr.bf16.mxu0 0
  %1129 = vmatmul.mubr.bf16.gmra.mxu0 %v975
  %v1130 = vpop.f32.mrf.mxu0
  %v1131 = vadd.f32 0.0, %v1130
  %v1132 = vpop.f32.mrf.mxu0
  %v1133 = vpop.f32.mrf.mxu0
  %v1134 = vadd.f32 0.0, %v1133
  %v1135 = vpop.f32.mrf.mxu0
  %1136 = vdwg.mxu0
  %v1137 = vadd.f32 %v936, %v1075
  %v1138 = vadd.f32 %v937, %v1078
  %v1139 = vadd.f32 %v938, %v1083
  %v1140 = vadd.f32 %v939, %v1086
  %v1141 = vadd.f32 %v940, %v1091
  %v1142 = vadd.f32 %v941, %v1094
  %v1143 = vadd.f32 %v942, %v1099
  %v1144 = vadd.f32 %v943, %v1102
  %v1145 = vadd.f32 %v944, %v1107
  %v1146 = vadd.f32 %v945, %v1110
  %v1147 = vadd.f32 %v946, %v1115
  %v1148 = vadd.f32 %v947, %v1118
  %v1149 = vadd.f32 %v948, %v1123
  %v1150 = vadd.f32 %v949, %v1126
  %v1151 = vadd.f32 %v950, %v1131
  %v1152 = vadd.f32 %v951, %v1134
  %v1153 = vld [vmem:[%s163 + $0x2] sm:$0xff]
  %v1154 = vld [vmem:[%s163 + $0x12] sm:$0xff]
  %v1155 = vld [vmem:[%s163 + $0x22] sm:$0xff]
  %v1156 = vld [vmem:[%s163 + $0x32] sm:$0xff]
  %v1157 = vld [vmem:[%s163 + $0x42] sm:$0xff]
  %v1158 = vld [vmem:[%s163 + $0x52] sm:$0xff]
  %v1159 = vld [vmem:[%s163 + $0x62] sm:$0xff]
  %v1160 = vld [vmem:[%s163 + $0x72] sm:$0xff]
  %v1161 = vld [vmem:[%s163 + $0xa2] sm:$0xff]
  %v1162 = vld [vmem:[%s163 + $0xb2] sm:$0xff]
  %v1163 = vld [vmem:[%s163 + $0xc2] sm:$0xff]
  %v1164 = vld [vmem:[%s163 + $0xd2] sm:$0xff]
  %v1165 = vld [vmem:[%s163 + $0xe2] sm:$0xff]
  %v1166 = vld [vmem:[%s163 + $0xf2] sm:$0xff]
  %v1167 = vld [vmem:[%s163 + $0x102] sm:$0xff]
  %v1168 = vld [vmem:[%s163 + $0x112] sm:$0xff]
  %v1169 = vpack.c.bf16 %v1154, %v1153
  %v1170 = vpack.c.bf16 %v1156, %v1155
  %v1171 = vpack.c.bf16 %v1158, %v1157
  %v1172 = vpack.c.bf16 %v1160, %v1159
  %v1173 = vpack.c.bf16 %v1162, %v1161
  %v1174 = vpack.c.bf16 %v1164, %v1163
  %v1175 = vpack.c.bf16 %v1166, %v1165
  %v1176 = vpack.c.bf16 %v1168, %v1167
  %v1177 = vld [vmem:[%s3 + $0x140] sm:$0xf]
  %v1178 = vld [vmem:[%s3 + $0x144] sm:$0xf]
  %v1179 = vld [vmem:[%s3 + $0x148] sm:$0xf]
  %v1180 = vld [vmem:[%s3 + $0x14c] sm:$0xf]
  %v1181 = vld [vmem:[%s3 + $0x150] sm:$0xf]
  %v1182 = vld [vmem:[%s3 + $0x154] sm:$0xf]
  %v1183 = vld [vmem:[%s3 + $0x158] sm:$0xf]
  %v1184 = vld [vmem:[%s3 + $0x15c] sm:$0xf]
  %v1185 = vld [vmem:[%s3 + $0x160] sm:$0xf]
  %v1186 = vld [vmem:[%s3 + $0x164] sm:$0xf]
  %v1187 = vld [vmem:[%s3 + $0x168] sm:$0xf]
  %v1188 = vld [vmem:[%s3 + $0x16c] sm:$0xf]
  %v1189 = vld [vmem:[%s3 + $0x170] sm:$0xf]
  %v1190 = vld [vmem:[%s3 + $0x174] sm:$0xf]
  %v1191 = vld [vmem:[%s3 + $0x178] sm:$0xf]
  %v1192 = vld [vmem:[%s3 + $0x17c] sm:$0xf]
  %v1209 = vunpack.c.l.b16 %v1177
  %v1210 = vunpack.c.l.b16 %v1178
  %v1211 = vunpack.c.l.b16 %v1179
  %v1212 = vunpack.c.l.b16 %v1180
  %v1213 = vunpack.c.l.b16 %v1181
  %v1214 = vunpack.c.l.b16 %v1182
  %v1215 = vunpack.c.l.b16 %v1183
  %v1216 = vunpack.c.l.b16 %v1184
  %v1217 = vunpack.c.l.b16 %v1185
  %v1218 = vunpack.c.l.b16 %v1186
  %v1219 = vunpack.c.l.b16 %v1187
  %v1220 = vunpack.c.l.b16 %v1188
  %v1221 = vunpack.c.l.b16 %v1189
  %v1222 = vunpack.c.l.b16 %v1190
  %v1223 = vunpack.c.l.b16 %v1191
  %v1224 = vunpack.c.l.b16 %v1192
  %v1225 = vpack.c.b16 %v1210, %v1209
  %v1226 = vpack.c.b16 %v1212, %v1211
  %v1227 = vpack.c.b16 %v1214, %v1213
  %v1228 = vpack.c.b16 %v1216, %v1215
  %v1229 = vpack.c.b16 %v1218, %v1217
  %v1230 = vpack.c.b16 %v1220, %v1219
  %v1231 = vpack.c.b16 %v1222, %v1221
  %v1232 = vpack.c.b16 %v1224, %v1223
  %1241 = vmatprep.subr.bf16.mxu0 0
  %1242 = vmatpush1.bf16.msra.mxu0 %v1232
  %1243 = vmatprep.subr.bf16.mxu0 0
  %1244 = vmatpush1.bf16.msra.mxu0 %v1231
  %1245 = vmatprep.subr.bf16.mxu0 0
  %1246 = vmatpush1.bf16.msra.mxu0 %v1230
  %1247 = vmatprep.subr.bf16.mxu0 0
  %1248 = vmatpush1.bf16.msra.mxu0 %v1229
  %1249 = vmatprep.subr.bf16.mxu0 0
  %1250 = vmatpush1.bf16.msra.mxu0 %v1228
  %1251 = vmatprep.subr.bf16.mxu0 0
  %1252 = vmatpush1.bf16.msra.mxu0 %v1227
  %1253 = vmatprep.subr.bf16.mxu0 0
  %1254 = vmatpush1.bf16.msra.mxu0 %v1226
  %1255 = vmatprep.subr.bf16.mxu0 0
  %1256 = vmatpush1.bf16.msra.mxu0 %v1225
  %1257 = vmatprep.subr.bf16.mxu0 0
  %1258 = vmatpush2.bf16.msra.mxu0 0
  %1259 = vmatprep.subr.bf16.mxu0 0
  %1260 = vmatpush2.bf16.msra.mxu0 0
  %1261 = vmatprep.subr.bf16.mxu0 0
  %1262 = vmatpush2.bf16.msra.mxu0 0
  %1263 = vmatprep.subr.bf16.mxu0 0
  %1264 = vmatpush2.bf16.msra.mxu0 0
  %1265 = vmatprep.subr.bf16.mxu0 0
  %1266 = vmatpush2.bf16.msra.mxu0 0
  %1267 = vmatprep.subr.bf16.mxu0 0
  %1268 = vmatpush2.bf16.msra.mxu0 0
  %1269 = vmatprep.subr.bf16.mxu0 0
  %1270 = vmatpush2.bf16.msra.mxu0 0
  %1271 = vmatprep.subr.bf16.mxu0 0
  %1272 = vmatpush2.bf16.msra.mxu0 0
  %1273 = vmatprep.mubr.bf16.mxu0 0
  %1274 = vmatmul.mubr.bf16.gmra.mxu0 %v1169
  %v1275 = vpop.f32.mrf.mxu0
  %v1276 = vadd.f32 0.0, %v1275
  %v1277 = vpop.f32.mrf.mxu0
  %v1278 = vpop.f32.mrf.mxu0
  %v1279 = vadd.f32 0.0, %v1278
  %v1280 = vpop.f32.mrf.mxu0
  %1281 = vmatprep.mubr.bf16.mxu0 0
  %1282 = vmatmul.mubr.bf16.gmra.mxu0 %v1170
  %v1283 = vpop.f32.mrf.mxu0
  %v1284 = vadd.f32 0.0, %v1283
  %v1285 = vpop.f32.mrf.mxu0
  %v1286 = vpop.f32.mrf.mxu0
  %v1287 = vadd.f32 0.0, %v1286
  %v1288 = vpop.f32.mrf.mxu0
  %1289 = vmatprep.mubr.bf16.mxu0 0
  %1290 = vmatmul.mubr.bf16.gmra.mxu0 %v1171
  %v1291 = vpop.f32.mrf.mxu0
  %v1292 = vadd.f32 0.0, %v1291
  %v1293 = vpop.f32.mrf.mxu0
  %v1294 = vpop.f32.mrf.mxu0
  %v1295 = vadd.f32 0.0, %v1294
  %v1296 = vpop.f32.mrf.mxu0
  %1297 = vmatprep.mubr.bf16.mxu0 0
  %1298 = vmatmul.mubr.bf16.gmra.mxu0 %v1172
  %v1299 = vpop.f32.mrf.mxu0
  %v1300 = vadd.f32 0.0, %v1299
  %v1301 = vpop.f32.mrf.mxu0
  %v1302 = vpop.f32.mrf.mxu0
  %v1303 = vadd.f32 0.0, %v1302
  %v1304 = vpop.f32.mrf.mxu0
  %1305 = vmatprep.mubr.bf16.mxu0 0
  %1306 = vmatmul.mubr.bf16.gmra.mxu0 %v1173
  %v1307 = vpop.f32.mrf.mxu0
  %v1308 = vadd.f32 0.0, %v1307
  %v1309 = vpop.f32.mrf.mxu0
  %v1310 = vpop.f32.mrf.mxu0
  %v1311 = vadd.f32 0.0, %v1310
  %v1312 = vpop.f32.mrf.mxu0
  %1313 = vmatprep.mubr.bf16.mxu0 0
  %1314 = vmatmul.mubr.bf16.gmra.mxu0 %v1174
  %v1315 = vpop.f32.mrf.mxu0
  %v1316 = vadd.f32 0.0, %v1315
  %v1317 = vpop.f32.mrf.mxu0
  %v1318 = vpop.f32.mrf.mxu0
  %v1319 = vadd.f32 0.0, %v1318
  %v1320 = vpop.f32.mrf.mxu0
  %1321 = vmatprep.mubr.bf16.mxu0 0
  %1322 = vmatmul.mubr.bf16.gmra.mxu0 %v1175
  %v1323 = vpop.f32.mrf.mxu0
  %v1324 = vadd.f32 0.0, %v1323
  %v1325 = vpop.f32.mrf.mxu0
  %v1326 = vpop.f32.mrf.mxu0
  %v1327 = vadd.f32 0.0, %v1326
  %v1328 = vpop.f32.mrf.mxu0
  %1329 = vmatprep.mubr.bf16.mxu0 0
  %1330 = vmatmul.mubr.bf16.gmra.mxu0 %v1176
  %v1331 = vpop.f32.mrf.mxu0
  %v1332 = vadd.f32 0.0, %v1331
  %v1333 = vpop.f32.mrf.mxu0
  %v1334 = vpop.f32.mrf.mxu0
  %v1335 = vadd.f32 0.0, %v1334
  %v1336 = vpop.f32.mrf.mxu0
  %1337 = vdwg.mxu0
  %v1338 = vadd.f32 %v1137, %v1276
  %v1339 = vadd.f32 %v1138, %v1279
  %v1340 = vadd.f32 %v1139, %v1284
  %v1341 = vadd.f32 %v1140, %v1287
  %v1342 = vadd.f32 %v1141, %v1292
  %v1343 = vadd.f32 %v1142, %v1295
  %v1344 = vadd.f32 %v1143, %v1300
  %v1345 = vadd.f32 %v1144, %v1303
  %v1346 = vadd.f32 %v1145, %v1308
  %v1347 = vadd.f32 %v1146, %v1311
  %v1348 = vadd.f32 %v1147, %v1316
  %v1349 = vadd.f32 %v1148, %v1319
  %v1350 = vadd.f32 %v1149, %v1324
  %v1351 = vadd.f32 %v1150, %v1327
  %v1352 = vadd.f32 %v1151, %v1332
  %v1353 = vadd.f32 %v1152, %v1335
  %s1354 = scalar_lea.vmem [#allocation2], 32
  %v1355 = vld [vmem:[%s1354] sm:$0xff]
  %v1356 = vld [vmem:[%s1354 + $0x10] sm:$0xff]
  %v1357 = vld [vmem:[%s1354 + $0x20] sm:$0xff]
  %v1358 = vld [vmem:[%s1354 + $0x30] sm:$0xff]
  %v1359 = vld [vmem:[%s1354 + $0x40] sm:$0xff]
  %v1360 = vld [vmem:[%s1354 + $0x50] sm:$0xff]
  %v1361 = vld [vmem:[%s1354 + $0x60] sm:$0xff]
  %v1362 = vld [vmem:[%s1354 + $0x70] sm:$0xff]
  %v1363 = vld [vmem:[%s1354 + $0xa0] sm:$0xff]
  %v1364 = vld [vmem:[%s1354 + $0xb0] sm:$0xff]
  %v1365 = vld [vmem:[%s1354 + $0xc0] sm:$0xff]
  %v1366 = vld [vmem:[%s1354 + $0xd0] sm:$0xff]
  %v1367 = vld [vmem:[%s1354 + $0xe0] sm:$0xff]
  %v1368 = vld [vmem:[%s1354 + $0xf0] sm:$0xff]
  %v1369 = vld [vmem:[%s1354 + $0x100] sm:$0xff]
  %v1370 = vld [vmem:[%s1354 + $0x110] sm:$0xff]
  %v1371 = vpack.c.bf16 %v1356, %v1355
  %v1372 = vpack.c.bf16 %v1358, %v1357
  %v1373 = vpack.c.bf16 %v1360, %v1359
  %v1374 = vpack.c.bf16 %v1362, %v1361
  %v1375 = vpack.c.bf16 %v1364, %v1363
  %v1376 = vpack.c.bf16 %v1366, %v1365
  %v1377 = vpack.c.bf16 %v1368, %v1367
  %v1378 = vpack.c.bf16 %v1370, %v1369
  %v1379 = vld [vmem:[%s3 + $0x180] sm:$0xf]
  %v1380 = vld [vmem:[%s3 + $0x184] sm:$0xf]
  %v1381 = vld [vmem:[%s3 + $0x188] sm:$0xf]
  %v1382 = vld [vmem:[%s3 + $0x18c] sm:$0xf]
  %v1383 = vld [vmem:[%s3 + $0x190] sm:$0xf]
  %v1384 = vld [vmem:[%s3 + $0x194] sm:$0xf]
  %v1385 = vld [vmem:[%s3 + $0x198] sm:$0xf]
  %v1386 = vld [vmem:[%s3 + $0x19c] sm:$0xf]
  %v1387 = vld [vmem:[%s3 + $0x1a0] sm:$0xf]
  %v1388 = vld [vmem:[%s3 + $0x1a4] sm:$0xf]
  %v1389 = vld [vmem:[%s3 + $0x1a8] sm:$0xf]
  %v1390 = vld [vmem:[%s3 + $0x1ac] sm:$0xf]
  %v1391 = vld [vmem:[%s3 + $0x1b0] sm:$0xf]
  %v1392 = vld [vmem:[%s3 + $0x1b4] sm:$0xf]
  %v1393 = vld [vmem:[%s3 + $0x1b8] sm:$0xf]
  %v1394 = vld [vmem:[%s3 + $0x1bc] sm:$0xf]
  %v1411 = vunpack.c.l.b16 %v1379
  %v1412 = vunpack.c.l.b16 %v1380
  %v1413 = vunpack.c.l.b16 %v1381
  %v1414 = vunpack.c.l.b16 %v1382
  %v1415 = vunpack.c.l.b16 %v1383
  %v1416 = vunpack.c.l.b16 %v1384
  %v1417 = vunpack.c.l.b16 %v1385
  %v1418 = vunpack.c.l.b16 %v1386
  %v1419 = vunpack.c.l.b16 %v1387
  %v1420 = vunpack.c.l.b16 %v1388
  %v1421 = vunpack.c.l.b16 %v1389
  %v1422 = vunpack.c.l.b16 %v1390
  %v1423 = vunpack.c.l.b16 %v1391
  %v1424 = vunpack.c.l.b16 %v1392
  %v1425 = vunpack.c.l.b16 %v1393
  %v1426 = vunpack.c.l.b16 %v1394
  %v1427 = vpack.c.b16 %v1412, %v1411
  %v1428 = vpack.c.b16 %v1414, %v1413
  %v1429 = vpack.c.b16 %v1416, %v1415
  %v1430 = vpack.c.b16 %v1418, %v1417
  %v1431 = vpack.c.b16 %v1420, %v1419
  %v1432 = vpack.c.b16 %v1422, %v1421
  %v1433 = vpack.c.b16 %v1424, %v1423
  %v1434 = vpack.c.b16 %v1426, %v1425
  %1443 = vmatprep.subr.bf16.mxu0 0
  %1444 = vmatpush1.bf16.msra.mxu0 %v1434
  %1445 = vmatprep.subr.bf16.mxu0 0
  %1446 = vmatpush1.bf16.msra.mxu0 %v1433
  %1447 = vmatprep.subr.bf16.mxu0 0
  %1448 = vmatpush1.bf16.msra.mxu0 %v1432
  %1449 = vmatprep.subr.bf16.mxu0 0
  %1450 = vmatpush1.bf16.msra.mxu0 %v1431
  %1451 = vmatprep.subr.bf16.mxu0 0
  %1452 = vmatpush1.bf16.msra.mxu0 %v1430
  %1453 = vmatprep.subr.bf16.mxu0 0
  %1454 = vmatpush1.bf16.msra.mxu0 %v1429
  %1455 = vmatprep.subr.bf16.mxu0 0
  %1456 = vmatpush1.bf16.msra.mxu0 %v1428
  %1457 = vmatprep.subr.bf16.mxu0 0
  %1458 = vmatpush1.bf16.msra.mxu0 %v1427
  %1459 = vmatprep.subr.bf16.mxu0 0
  %1460 = vmatpush2.bf16.msra.mxu0 0
  %1461 = vmatprep.subr.bf16.mxu0 0
  %1462 = vmatpush2.bf16.msra.mxu0 0
  %1463 = vmatprep.subr.bf16.mxu0 0
  %1464 = vmatpush2.bf16.msra.mxu0 0
  %1465 = vmatprep.subr.bf16.mxu0 0
  %1466 = vmatpush2.bf16.msra.mxu0 0
  %1467 = vmatprep.subr.bf16.mxu0 0
  %1468 = vmatpush2.bf16.msra.mxu0 0
  %1469 = vmatprep.subr.bf16.mxu0 0
  %1470 = vmatpush2.bf16.msra.mxu0 0
  %1471 = vmatprep.subr.bf16.mxu0 0
  %1472 = vmatpush2.bf16.msra.mxu0 0
  %1473 = vmatprep.subr.bf16.mxu0 0
  %1474 = vmatpush2.bf16.msra.mxu0 0
  %1475 = vmatprep.mubr.bf16.mxu0 0
  %1476 = vmatmul.mubr.bf16.gmra.mxu0 %v1371
  %v1477 = vpop.f32.mrf.mxu0
  %v1478 = vadd.f32 0.0, %v1477
  %v1479 = vpop.f32.mrf.mxu0
  %v1480 = vpop.f32.mrf.mxu0
  %v1481 = vadd.f32 0.0, %v1480
  %v1482 = vpop.f32.mrf.mxu0
  %1483 = vmatprep.mubr.bf16.mxu0 0
  %1484 = vmatmul.mubr.bf16.gmra.mxu0 %v1372
  %v1485 = vpop.f32.mrf.mxu0
  %v1486 = vadd.f32 0.0, %v1485
  %v1487 = vpop.f32.mrf.mxu0
  %v1488 = vpop.f32.mrf.mxu0
  %v1489 = vadd.f32 0.0, %v1488
  %v1490 = vpop.f32.mrf.mxu0
  %1491 = vmatprep.mubr.bf16.mxu0 0
  %1492 = vmatmul.mubr.bf16.gmra.mxu0 %v1373
  %v1493 = vpop.f32.mrf.mxu0
  %v1494 = vadd.f32 0.0, %v1493
  %v1495 = vpop.f32.mrf.mxu0
  %v1496 = vpop.f32.mrf.mxu0
  %v1497 = vadd.f32 0.0, %v1496
  %v1498 = vpop.f32.mrf.mxu0
  %1499 = vmatprep.mubr.bf16.mxu0 0
  %1500 = vmatmul.mubr.bf16.gmra.mxu0 %v1374
  %v1501 = vpop.f32.mrf.mxu0
  %v1502 = vadd.f32 0.0, %v1501
  %v1503 = vpop.f32.mrf.mxu0
  %v1504 = vpop.f32.mrf.mxu0
  %v1505 = vadd.f32 0.0, %v1504
  %v1506 = vpop.f32.mrf.mxu0
  %1507 = vmatprep.mubr.bf16.mxu0 0
  %1508 = vmatmul.mubr.bf16.gmra.mxu0 %v1375
  %v1509 = vpop.f32.mrf.mxu0
  %v1510 = vadd.f32 0.0, %v1509
  %v1511 = vpop.f32.mrf.mxu0
  %v1512 = vpop.f32.mrf.mxu0
  %v1513 = vadd.f32 0.0, %v1512
  %v1514 = vpop.f32.mrf.mxu0
  %1515 = vmatprep.mubr.bf16.mxu0 0
  %1516 = vmatmul.mubr.bf16.gmra.mxu0 %v1376
  %v1517 = vpop.f32.mrf.mxu0
  %v1518 = vadd.f32 0.0, %v1517
  %v1519 = vpop.f32.mrf.mxu0
  %v1520 = vpop.f32.mrf.mxu0
  %v1521 = vadd.f32 0.0, %v1520
  %v1522 = vpop.f32.mrf.mxu0
  %1523 = vmatprep.mubr.bf16.mxu0 0
  %1524 = vmatmul.mubr.bf16.gmra.mxu0 %v1377
  %v1525 = vpop.f32.mrf.mxu0
  %v1526 = vadd.f32 0.0, %v1525
  %v1527 = vpop.f32.mrf.mxu0
  %v1528 = vpop.f32.mrf.mxu0
  %v1529 = vadd.f32 0.0, %v1528
  %v1530 = vpop.f32.mrf.mxu0
  %1531 = vmatprep.mubr.bf16.mxu0 0
  %1532 = vmatmul.mubr.bf16.gmra.mxu0 %v1378
  %v1533 = vpop.f32.mrf.mxu0
  %v1534 = vadd.f32 0.0, %v1533
  %v1535 = vpop.f32.mrf.mxu0
  %v1536 = vpop.f32.mrf.mxu0
  %v1537 = vadd.f32 0.0, %v1536
  %v1538 = vpop.f32.mrf.mxu0
  %1539 = vdwg.mxu0
  %v1540 = vadd.f32 %v1338, %v1478
  %v1541 = vadd.f32 %v1339, %v1481
  %v1542 = vadd.f32 %v1340, %v1486
  %v1543 = vadd.f32 %v1341, %v1489
  %v1544 = vadd.f32 %v1342, %v1494
  %v1545 = vadd.f32 %v1343, %v1497
  %v1546 = vadd.f32 %v1344, %v1502
  %v1547 = vadd.f32 %v1345, %v1505
  %v1548 = vadd.f32 %v1346, %v1510
  %v1549 = vadd.f32 %v1347, %v1513
  %v1550 = vadd.f32 %v1348, %v1518
  %v1551 = vadd.f32 %v1349, %v1521
  %v1552 = vadd.f32 %v1350, %v1526
  %v1553 = vadd.f32 %v1351, %v1529
  %v1554 = vadd.f32 %v1352, %v1534
  %v1555 = vadd.f32 %v1353, %v1537
  %v1556 = vld [vmem:[%s1354 + $0x1] sm:$0xff]
  %v1557 = vld [vmem:[%s1354 + $0x11] sm:$0xff]
  %v1558 = vld [vmem:[%s1354 + $0x21] sm:$0xff]
  %v1559 = vld [vmem:[%s1354 + $0x31] sm:$0xff]
  %v1560 = vld [vmem:[%s1354 + $0x41] sm:$0xff]
  %v1561 = vld [vmem:[%s1354 + $0x51] sm:$0xff]
  %v1562 = vld [vmem:[%s1354 + $0x61] sm:$0xff]
  %v1563 = vld [vmem:[%s1354 + $0x71] sm:$0xff]
  %v1564 = vld [vmem:[%s1354 + $0xa1] sm:$0xff]
  %v1565 = vld [vmem:[%s1354 + $0xb1] sm:$0xff]
  %v1566 = vld [vmem:[%s1354 + $0xc1] sm:$0xff]
  %v1567 = vld [vmem:[%s1354 + $0xd1] sm:$0xff]
  %v1568 = vld [vmem:[%s1354 + $0xe1] sm:$0xff]
  %v1569 = vld [vmem:[%s1354 + $0xf1] sm:$0xff]
  %v1570 = vld [vmem:[%s1354 + $0x101] sm:$0xff]
  %v1571 = vld [vmem:[%s1354 + $0x111] sm:$0xff]
  %v1572 = vpack.c.bf16 %v1557, %v1556
  %v1573 = vpack.c.bf16 %v1559, %v1558
  %v1574 = vpack.c.bf16 %v1561, %v1560
  %v1575 = vpack.c.bf16 %v1563, %v1562
  %v1576 = vpack.c.bf16 %v1565, %v1564
  %v1577 = vpack.c.bf16 %v1567, %v1566
  %v1578 = vpack.c.bf16 %v1569, %v1568
  %v1579 = vpack.c.bf16 %v1571, %v1570
  %v1580 = vld [vmem:[%s3 + $0x1c0] sm:$0xf]
  %v1581 = vld [vmem:[%s3 + $0x1c4] sm:$0xf]
  %v1582 = vld [vmem:[%s3 + $0x1c8] sm:$0xf]
  %v1583 = vld [vmem:[%s3 + $0x1cc] sm:$0xf]
  %v1584 = vld [vmem:[%s3 + $0x1d0] sm:$0xf]
  %v1585 = vld [vmem:[%s3 + $0x1d4] sm:$0xf]
  %v1586 = vld [vmem:[%s3 + $0x1d8] sm:$0xf]
  %v1587 = vld [vmem:[%s3 + $0x1dc] sm:$0xf]
  %v1588 = vld [vmem:[%s3 + $0x1e0] sm:$0xf]
  %v1589 = vld [vmem:[%s3 + $0x1e4] sm:$0xf]
  %v1590 = vld [vmem:[%s3 + $0x1e8] sm:$0xf]
  %v1591 = vld [vmem:[%s3 + $0x1ec] sm:$0xf]
  %v1592 = vld [vmem:[%s3 + $0x1f0] sm:$0xf]
  %v1593 = vld [vmem:[%s3 + $0x1f4] sm:$0xf]
  %v1594 = vld [vmem:[%s3 + $0x1f8] sm:$0xf]
  %v1595 = vld [vmem:[%s3 + $0x1fc] sm:$0xf]
  %v1612 = vunpack.c.l.b16 %v1580
  %v1613 = vunpack.c.l.b16 %v1581
  %v1614 = vunpack.c.l.b16 %v1582
  %v1615 = vunpack.c.l.b16 %v1583
  %v1616 = vunpack.c.l.b16 %v1584
  %v1617 = vunpack.c.l.b16 %v1585
  %v1618 = vunpack.c.l.b16 %v1586
  %v1619 = vunpack.c.l.b16 %v1587
  %v1620 = vunpack.c.l.b16 %v1588
  %v1621 = vunpack.c.l.b16 %v1589
  %v1622 = vunpack.c.l.b16 %v1590
  %v1623 = vunpack.c.l.b16 %v1591
  %v1624 = vunpack.c.l.b16 %v1592
  %v1625 = vunpack.c.l.b16 %v1593
  %v1626 = vunpack.c.l.b16 %v1594
  %v1627 = vunpack.c.l.b16 %v1595
  %v1628 = vpack.c.b16 %v1613, %v1612
  %v1629 = vpack.c.b16 %v1615, %v1614
  %v1630 = vpack.c.b16 %v1617, %v1616
  %v1631 = vpack.c.b16 %v1619, %v1618
  %v1632 = vpack.c.b16 %v1621, %v1620
  %v1633 = vpack.c.b16 %v1623, %v1622
  %v1634 = vpack.c.b16 %v1625, %v1624
  %v1635 = vpack.c.b16 %v1627, %v1626
  %1644 = vmatprep.subr.bf16.mxu0 0
  %1645 = vmatpush1.bf16.msra.mxu0 %v1635
  %1646 = vmatprep.subr.bf16.mxu0 0
  %1647 = vmatpush1.bf16.msra.mxu0 %v1634
  %1648 = vmatprep.subr.bf16.mxu0 0
  %1649 = vmatpush1.bf16.msra.mxu0 %v1633
  %1650 = vmatprep.subr.bf16.mxu0 0
  %1651 = vmatpush1.bf16.msra.mxu0 %v1632
  %1652 = vmatprep.subr.bf16.mxu0 0
  %1653 = vmatpush1.bf16.msra.mxu0 %v1631
  %1654 = vmatprep.subr.bf16.mxu0 0
  %1655 = vmatpush1.bf16.msra.mxu0 %v1630
  %1656 = vmatprep.subr.bf16.mxu0 0
  %1657 = vmatpush1.bf16.msra.mxu0 %v1629
  %1658 = vmatprep.subr.bf16.mxu0 0
  %1659 = vmatpush1.bf16.msra.mxu0 %v1628
  %1660 = vmatprep.subr.bf16.mxu0 0
  %1661 = vmatpush2.bf16.msra.mxu0 0
  %1662 = vmatprep.subr.bf16.mxu0 0
  %1663 = vmatpush2.bf16.msra.mxu0 0
  %1664 = vmatprep.subr.bf16.mxu0 0
  %1665 = vmatpush2.bf16.msra.mxu0 0
  %1666 = vmatprep.subr.bf16.mxu0 0
  %1667 = vmatpush2.bf16.msra.mxu0 0
  %1668 = vmatprep.subr.bf16.mxu0 0
  %1669 = vmatpush2.bf16.msra.mxu0 0
  %1670 = vmatprep.subr.bf16.mxu0 0
  %1671 = vmatpush2.bf16.msra.mxu0 0
  %1672 = vmatprep.subr.bf16.mxu0 0
  %1673 = vmatpush2.bf16.msra.mxu0 0
  %1674 = vmatprep.subr.bf16.mxu0 0
  %1675 = vmatpush2.bf16.msra.mxu0 0
  %1676 = vmatprep.mubr.bf16.mxu0 0
  %1677 = vmatmul.mubr.bf16.gmra.mxu0 %v1572
  %v1678 = vpop.f32.mrf.mxu0
  %v1679 = vadd.f32 0.0, %v1678
  %v1680 = vpop.f32.mrf.mxu0
  %v1681 = vpop.f32.mrf.mxu0
  %v1682 = vadd.f32 0.0, %v1681
  %v1683 = vpop.f32.mrf.mxu0
  %1684 = vmatprep.mubr.bf16.mxu0 0
  %1685 = vmatmul.mubr.bf16.gmra.mxu0 %v1573
  %v1686 = vpop.f32.mrf.mxu0
  %v1687 = vadd.f32 0.0, %v1686
  %v1688 = vpop.f32.mrf.mxu0
  %v1689 = vpop.f32.mrf.mxu0
  %v1690 = vadd.f32 0.0, %v1689
  %v1691 = vpop.f32.mrf.mxu0
  %1692 = vmatprep.mubr.bf16.mxu0 0
  %1693 = vmatmul.mubr.bf16.gmra.mxu0 %v1574
  %v1694 = vpop.f32.mrf.mxu0
  %v1695 = vadd.f32 0.0, %v1694
  %v1696 = vpop.f32.mrf.mxu0
  %v1697 = vpop.f32.mrf.mxu0
  %v1698 = vadd.f32 0.0, %v1697
  %v1699 = vpop.f32.mrf.mxu0
  %1700 = vmatprep.mubr.bf16.mxu0 0
  %1701 = vmatmul.mubr.bf16.gmra.mxu0 %v1575
  %v1702 = vpop.f32.mrf.mxu0
  %v1703 = vadd.f32 0.0, %v1702
  %v1704 = vpop.f32.mrf.mxu0
  %v1705 = vpop.f32.mrf.mxu0
  %v1706 = vadd.f32 0.0, %v1705
  %v1707 = vpop.f32.mrf.mxu0
  %1708 = vmatprep.mubr.bf16.mxu0 0
  %1709 = vmatmul.mubr.bf16.gmra.mxu0 %v1576
  %v1710 = vpop.f32.mrf.mxu0
  %v1711 = vadd.f32 0.0, %v1710
  %v1712 = vpop.f32.mrf.mxu0
  %v1713 = vpop.f32.mrf.mxu0
  %v1714 = vadd.f32 0.0, %v1713
  %v1715 = vpop.f32.mrf.mxu0
  %1716 = vmatprep.mubr.bf16.mxu0 0
  %1717 = vmatmul.mubr.bf16.gmra.mxu0 %v1577
  %v1718 = vpop.f32.mrf.mxu0
  %v1719 = vadd.f32 0.0, %v1718
  %v1720 = vpop.f32.mrf.mxu0
  %v1721 = vpop.f32.mrf.mxu0
  %v1722 = vadd.f32 0.0, %v1721
  %v1723 = vpop.f32.mrf.mxu0
  %1724 = vmatprep.mubr.bf16.mxu0 0
  %1725 = vmatmul.mubr.bf16.gmra.mxu0 %v1578
  %v1726 = vpop.f32.mrf.mxu0
  %v1727 = vadd.f32 0.0, %v1726
  %v1728 = vpop.f32.mrf.mxu0
  %v1729 = vpop.f32.mrf.mxu0
  %v1730 = vadd.f32 0.0, %v1729
  %v1731 = vpop.f32.mrf.mxu0
  %1732 = vmatprep.mubr.bf16.mxu0 0
  %1733 = vmatmul.mubr.bf16.gmra.mxu0 %v1579
  %v1734 = vpop.f32.mrf.mxu0
  %v1735 = vadd.f32 0.0, %v1734
  %v1736 = vpop.f32.mrf.mxu0
  %v1737 = vpop.f32.mrf.mxu0
  %v1738 = vadd.f32 0.0, %v1737
  %v1739 = vpop.f32.mrf.mxu0
  %1740 = vdwg.mxu0
  %v1741 = vadd.f32 %v1540, %v1679
  %v1742 = vadd.f32 %v1541, %v1682
  %v1743 = vadd.f32 %v1542, %v1687
  %v1744 = vadd.f32 %v1543, %v1690
  %v1745 = vadd.f32 %v1544, %v1695
  %v1746 = vadd.f32 %v1545, %v1698
  %v1747 = vadd.f32 %v1546, %v1703
  %v1748 = vadd.f32 %v1547, %v1706
  %v1749 = vadd.f32 %v1548, %v1711
  %v1750 = vadd.f32 %v1549, %v1714
  %v1751 = vadd.f32 %v1550, %v1719
  %v1752 = vadd.f32 %v1551, %v1722
  %v1753 = vadd.f32 %v1552, %v1727
  %v1754 = vadd.f32 %v1553, %v1730
  %v1755 = vadd.f32 %v1554, %v1735
  %v1756 = vadd.f32 %v1555, %v1738
  %v1757 = vld [vmem:[%s1354 + $0x2] sm:$0xff]
  %v1758 = vld [vmem:[%s1354 + $0x12] sm:$0xff]
  %v1759 = vld [vmem:[%s1354 + $0x22] sm:$0xff]
  %v1760 = vld [vmem:[%s1354 + $0x32] sm:$0xff]
  %v1761 = vld [vmem:[%s1354 + $0x42] sm:$0xff]
  %v1762 = vld [vmem:[%s1354 + $0x52] sm:$0xff]
  %v1763 = vld [vmem:[%s1354 + $0x62] sm:$0xff]
  %v1764 = vld [vmem:[%s1354 + $0x72] sm:$0xff]
  %v1765 = vld [vmem:[%s1354 + $0xa2] sm:$0xff]
  %v1766 = vld [vmem:[%s1354 + $0xb2] sm:$0xff]
  %v1767 = vld [vmem:[%s1354 + $0xc2] sm:$0xff]
  %v1768 = vld [vmem:[%s1354 + $0xd2] sm:$0xff]
  %v1769 = vld [vmem:[%s1354 + $0xe2] sm:$0xff]
  %v1770 = vld [vmem:[%s1354 + $0xf2] sm:$0xff]
  %v1771 = vld [vmem:[%s1354 + $0x102] sm:$0xff]
  %v1772 = vld [vmem:[%s1354 + $0x112] sm:$0xff]
  %v1773 = vpack.c.bf16 %v1758, %v1757
  %v1774 = vpack.c.bf16 %v1760, %v1759
  %v1775 = vpack.c.bf16 %v1762, %v1761
  %v1776 = vpack.c.bf16 %v1764, %v1763
  %v1777 = vpack.c.bf16 %v1766, %v1765
  %v1778 = vpack.c.bf16 %v1768, %v1767
  %v1779 = vpack.c.bf16 %v1770, %v1769
  %v1780 = vpack.c.bf16 %v1772, %v1771
  %v1781 = vld [vmem:[%s3 + $0x200] sm:$0xf]
  %v1782 = vld [vmem:[%s3 + $0x204] sm:$0xf]
  %v1783 = vld [vmem:[%s3 + $0x208] sm:$0xf]
  %v1784 = vld [vmem:[%s3 + $0x20c] sm:$0xf]
  %v1785 = vld [vmem:[%s3 + $0x210] sm:$0xf]
  %v1786 = vld [vmem:[%s3 + $0x214] sm:$0xf]
  %v1787 = vld [vmem:[%s3 + $0x218] sm:$0xf]
  %v1788 = vld [vmem:[%s3 + $0x21c] sm:$0xf]
  %v1789 = vld [vmem:[%s3 + $0x220] sm:$0xf]
  %v1790 = vld [vmem:[%s3 + $0x224] sm:$0xf]
  %v1791 = vld [vmem:[%s3 + $0x228] sm:$0xf]
  %v1792 = vld [vmem:[%s3 + $0x22c] sm:$0xf]
  %v1793 = vld [vmem:[%s3 + $0x230] sm:$0xf]
  %v1794 = vld [vmem:[%s3 + $0x234] sm:$0xf]
  %v1795 = vld [vmem:[%s3 + $0x238] sm:$0xf]
  %v1796 = vld [vmem:[%s3 + $0x23c] sm:$0xf]
  %v1813 = vunpack.c.l.b16 %v1781
  %v1814 = vunpack.c.l.b16 %v1782
  %v1815 = vunpack.c.l.b16 %v1783
  %v1816 = vunpack.c.l.b16 %v1784
  %v1817 = vunpack.c.l.b16 %v1785
  %v1818 = vunpack.c.l.b16 %v1786
  %v1819 = vunpack.c.l.b16 %v1787
  %v1820 = vunpack.c.l.b16 %v1788
  %v1821 = vunpack.c.l.b16 %v1789
  %v1822 = vunpack.c.l.b16 %v1790
  %v1823 = vunpack.c.l.b16 %v1791
  %v1824 = vunpack.c.l.b16 %v1792
  %v1825 = vunpack.c.l.b16 %v1793
  %v1826 = vunpack.c.l.b16 %v1794
  %v1827 = vunpack.c.l.b16 %v1795
  %v1828 = vunpack.c.l.b16 %v1796
  %v1829 = vpack.c.b16 %v1814, %v1813
  %v1830 = vpack.c.b16 %v1816, %v1815
  %v1831 = vpack.c.b16 %v1818, %v1817
  %v1832 = vpack.c.b16 %v1820, %v1819
  %v1833 = vpack.c.b16 %v1822, %v1821
  %v1834 = vpack.c.b16 %v1824, %v1823
  %v1835 = vpack.c.b16 %v1826, %v1825
  %v1836 = vpack.c.b16 %v1828, %v1827
  %1845 = vmatprep.subr.bf16.mxu0 0
  %1846 = vmatpush1.bf16.msra.mxu0 %v1836
  %1847 = vmatprep.subr.bf16.mxu0 0
  %1848 = vmatpush1.bf16.msra.mxu0 %v1835
  %1849 = vmatprep.subr.bf16.mxu0 0
  %1850 = vmatpush1.bf16.msra.mxu0 %v1834
  %1851 = vmatprep.subr.bf16.mxu0 0
  %1852 = vmatpush1.bf16.msra.mxu0 %v1833
  %1853 = vmatprep.subr.bf16.mxu0 0
  %1854 = vmatpush1.bf16.msra.mxu0 %v1832
  %1855 = vmatprep.subr.bf16.mxu0 0
  %1856 = vmatpush1.bf16.msra.mxu0 %v1831
  %1857 = vmatprep.subr.bf16.mxu0 0
  %1858 = vmatpush1.bf16.msra.mxu0 %v1830
  %1859 = vmatprep.subr.bf16.mxu0 0
  %1860 = vmatpush1.bf16.msra.mxu0 %v1829
  %1861 = vmatprep.subr.bf16.mxu0 0
  %1862 = vmatpush2.bf16.msra.mxu0 0
  %1863 = vmatprep.subr.bf16.mxu0 0
  %1864 = vmatpush2.bf16.msra.mxu0 0
  %1865 = vmatprep.subr.bf16.mxu0 0
  %1866 = vmatpush2.bf16.msra.mxu0 0
  %1867 = vmatprep.subr.bf16.mxu0 0
  %1868 = vmatpush2.bf16.msra.mxu0 0
  %1869 = vmatprep.subr.bf16.mxu0 0
  %1870 = vmatpush2.bf16.msra.mxu0 0
  %1871 = vmatprep.subr.bf16.mxu0 0
  %1872 = vmatpush2.bf16.msra.mxu0 0
  %1873 = vmatprep.subr.bf16.mxu0 0
  %1874 = vmatpush2.bf16.msra.mxu0 0
  %1875 = vmatprep.subr.bf16.mxu0 0
  %1876 = vmatpush2.bf16.msra.mxu0 0
  %1877 = vmatprep.mubr.bf16.mxu0 0
  %1878 = vmatmul.mubr.bf16.gmra.mxu0 %v1773
  %v1879 = vpop.f32.mrf.mxu0
  %v1880 = vadd.f32 0.0, %v1879
  %v1881 = vpop.f32.mrf.mxu0
  %v1882 = vpop.f32.mrf.mxu0
  %v1883 = vadd.f32 0.0, %v1882
  %v1884 = vpop.f32.mrf.mxu0
  %1885 = vmatprep.mubr.bf16.mxu0 0
  %1886 = vmatmul.mubr.bf16.gmra.mxu0 %v1774
  %v1887 = vpop.f32.mrf.mxu0
  %v1888 = vadd.f32 0.0, %v1887
  %v1889 = vpop.f32.mrf.mxu0
  %v1890 = vpop.f32.mrf.mxu0
  %v1891 = vadd.f32 0.0, %v1890
  %v1892 = vpop.f32.mrf.mxu0
  %1893 = vmatprep.mubr.bf16.mxu0 0
  %1894 = vmatmul.mubr.bf16.gmra.mxu0 %v1775
  %v1895 = vpop.f32.mrf.mxu0
  %v1896 = vadd.f32 0.0, %v1895
  %v1897 = vpop.f32.mrf.mxu0
  %v1898 = vpop.f32.mrf.mxu0
  %v1899 = vadd.f32 0.0, %v1898
  %v1900 = vpop.f32.mrf.mxu0
  %1901 = vmatprep.mubr.bf16.mxu0 0
  %1902 = vmatmul.mubr.bf16.gmra.mxu0 %v1776
  %v1903 = vpop.f32.mrf.mxu0
  %v1904 = vadd.f32 0.0, %v1903
  %v1905 = vpop.f32.mrf.mxu0
  %v1906 = vpop.f32.mrf.mxu0
  %v1907 = vadd.f32 0.0, %v1906
  %v1908 = vpop.f32.mrf.mxu0
  %1909 = vmatprep.mubr.bf16.mxu0 0
  %1910 = vmatmul.mubr.bf16.gmra.mxu0 %v1777
  %v1911 = vpop.f32.mrf.mxu0
  %v1912 = vadd.f32 0.0, %v1911
  %v1913 = vpop.f32.mrf.mxu0
  %v1914 = vpop.f32.mrf.mxu0
  %v1915 = vadd.f32 0.0, %v1914
  %v1916 = vpop.f32.mrf.mxu0
  %1917 = vmatprep.mubr.bf16.mxu0 0
  %1918 = vmatmul.mubr.bf16.gmra.mxu0 %v1778
  %v1919 = vpop.f32.mrf.mxu0
  %v1920 = vadd.f32 0.0, %v1919
  %v1921 = vpop.f32.mrf.mxu0
  %v1922 = vpop.f32.mrf.mxu0
  %v1923 = vadd.f32 0.0, %v1922
  %v1924 = vpop.f32.mrf.mxu0
  %1925 = vmatprep.mubr.bf16.mxu0 0
  %1926 = vmatmul.mubr.bf16.gmra.mxu0 %v1779
  %v1927 = vpop.f32.mrf.mxu0
  %v1928 = vadd.f32 0.0, %v1927
  %v1929 = vpop.f32.mrf.mxu0
  %v1930 = vpop.f32.mrf.mxu0
  %v1931 = vadd.f32 0.0, %v1930
  %v1932 = vpop.f32.mrf.mxu0
  %1933 = vmatprep.mubr.bf16.mxu0 0
  %1934 = vmatmul.mubr.bf16.gmra.mxu0 %v1780
  %v1935 = vpop.f32.mrf.mxu0
  %v1936 = vadd.f32 0.0, %v1935
  %v1937 = vpop.f32.mrf.mxu0
  %v1938 = vpop.f32.mrf.mxu0
  %v1939 = vadd.f32 0.0, %v1938
  %v1940 = vpop.f32.mrf.mxu0
  %1941 = vdwg.mxu0
  %v1942 = vadd.f32 %v1741, %v1880
  %v1943 = vadd.f32 %v1742, %v1883
  %v1944 = vadd.f32 %v1743, %v1888
  %v1945 = vadd.f32 %v1744, %v1891
  %v1946 = vadd.f32 %v1745, %v1896
  %v1947 = vadd.f32 %v1746, %v1899
  %v1948 = vadd.f32 %v1747, %v1904
  %v1949 = vadd.f32 %v1748, %v1907
  %v1950 = vadd.f32 %v1749, %v1912
  %v1951 = vadd.f32 %v1750, %v1915
  %v1952 = vadd.f32 %v1751, %v1920
  %v1953 = vadd.f32 %v1752, %v1923
  %v1954 = vadd.f32 %v1753, %v1928
  %v1955 = vadd.f32 %v1754, %v1931
  %v1956 = vadd.f32 %v1755, %v1936
  %v1957 = vadd.f32 %v1756, %v1939
  %v1958 = vpack.c.bf16 %v1943, %v1942
  %v1959 = vpack.c.bf16 %v1945, %v1944
  %v1960 = vpack.c.bf16 %v1947, %v1946
  %v1961 = vpack.c.bf16 %v1949, %v1948
  %v1962 = vpack.c.bf16 %v1951, %v1950
  %v1963 = vpack.c.bf16 %v1953, %v1952
  %v1964 = vpack.c.bf16 %v1955, %v1954
  %v1965 = vpack.c.bf16 %v1957, %v1956
  %v1974 = vunpack.c.l.b16 %v1958
  %v1975 = vunpack.c.h.b16 %v1958
  %v1976 = vunpack.c.l.b16 %v1959
  %v1977 = vunpack.c.h.b16 %v1959
  %v1978 = vunpack.c.l.b16 %v1960
  %v1979 = vunpack.c.h.b16 %v1960
  %v1980 = vunpack.c.l.b16 %v1961
  %v1981 = vunpack.c.h.b16 %v1961
  %v1982 = vunpack.c.l.b16 %v1962
  %v1983 = vunpack.c.h.b16 %v1962
  %v1984 = vunpack.c.l.b16 %v1963
  %v1985 = vunpack.c.h.b16 %v1963
  %v1986 = vunpack.c.l.b16 %v1964
  %v1987 = vunpack.c.h.b16 %v1964
  %v1988 = vunpack.c.l.b16 %v1965
  %v1989 = vunpack.c.h.b16 %v1965
  %v1990 = vpack.c.b16 %v1974, %v1974
  %v1991 = vpack.c.b16 %v1975, %v1975
  %v1992 = vpack.c.b16 %v1976, %v1976
  %v1993 = vpack.c.b16 %v1977, %v1977
  %v1994 = vpack.c.b16 %v1978, %v1978
  %v1995 = vpack.c.b16 %v1979, %v1979
  %v1996 = vpack.c.b16 %v1980, %v1980
  %v1997 = vpack.c.b16 %v1981, %v1981
  %v1998 = vpack.c.b16 %v1982, %v1982
  %v1999 = vpack.c.b16 %v1983, %v1983
  %v2000 = vpack.c.b16 %v1984, %v1984
  %v2001 = vpack.c.b16 %v1985, %v1985
  %v2002 = vpack.c.b16 %v1986, %v1986
  %v2003 = vpack.c.b16 %v1987, %v1987
  %v2004 = vpack.c.b16 %v1988, %v1988
  %v2005 = vpack.c.b16 %v1989, %v1989
  %2022 = vst [vmem:[%s4] sm:$0xf] %v1990
  %2023 = vst [vmem:[%s4 + $0x4] sm:$0xf] %v1991
  %2024 = vst [vmem:[%s4 + $0x8] sm:$0xf] %v1992
  %2025 = vst [vmem:[%s4 + $0xc] sm:$0xf] %v1993
  %2026 = vst [vmem:[%s4 + $0x10] sm:$0xf] %v1994
  %2027 = vst [vmem:[%s4 + $0x14] sm:$0xf] %v1995
  %2028 = vst [vmem:[%s4 + $0x18] sm:$0xf] %v1996
  %2029 = vst [vmem:[%s4 + $0x1c] sm:$0xf] %v1997
  %2030 = vst [vmem:[%s4 + $0x20] sm:$0xf] %v1998
  %2031 = vst [vmem:[%s4 + $0x24] sm:$0xf] %v1999
  %2032 = vst [vmem:[%s4 + $0x28] sm:$0xf] %v2000
  %2033 = vst [vmem:[%s4 + $0x2c] sm:$0xf] %v2001
  %2034 = vst [vmem:[%s4 + $0x30] sm:$0xf] %v2002
  %2035 = vst [vmem:[%s4 + $0x34] sm:$0xf] %v2003
  %2036 = vst [vmem:[%s4 + $0x38] sm:$0xf] %v2004
  %2037 = vst [vmem:[%s4 + $0x3c] sm:$0xf] %v2005
  %v2038 = vadd.f32 %v1942, %v1943
  %v2039 = vadd.f32 %v2038, %v1944
  %v2040 = vadd.f32 %v2039, %v1945
  %v2041 = vadd.f32 %v2040, %v1946
  %v2042 = vadd.f32 %v2041, %v1947
  %v2043 = vadd.f32 %v2042, %v1948
  %v2044 = vadd.f32 %v2043, %v1949
  %v2045 = vadd.f32 %v2044, %v1950
  %v2046 = vadd.f32 %v2045, %v1951
  %v2047 = vadd.f32 %v2046, %v1952
  %v2048 = vadd.f32 %v2047, %v1953
  %v2049 = vadd.f32 %v2048, %v1954
  %v2050 = vadd.f32 %v2049, %v1955
  %v2051 = vadd.f32 %v2050, %v1956
  %v2052 = vadd.f32 %v2051, %v1957
  %v2053 = vrot.slane %v2052, 4
  %v2054 = vadd.f32 %v2052, %v2053
  %v2055 = vrot.slane %v2054, 2
  %v2056 = vadd.f32 %v2054, %v2055
  %v2057 = vrot.slane %v2056, 1
  %v2058 = vadd.f32 %v2056, %v2057
  %v2059 = vmul.f32 %v1942, %v1942
  %v2060 = vmul.f32 %v1943, %v1943
  %v2061 = vmul.f32 %v1944, %v1944
  %v2062 = vmul.f32 %v1945, %v1945
  %v2063 = vmul.f32 %v1946, %v1946
  %v2064 = vmul.f32 %v1947, %v1947
  %v2065 = vmul.f32 %v1948, %v1948
  %v2066 = vmul.f32 %v1949, %v1949
  %v2067 = vmul.f32 %v1950, %v1950
  %v2068 = vmul.f32 %v1951, %v1951
  %v2069 = vmul.f32 %v1952, %v1952
  %v2070 = vmul.f32 %v1953, %v1953
  %v2071 = vmul.f32 %v1954, %v1954
  %v2072 = vmul.f32 %v1955, %v1955
  %v2073 = vmul.f32 %v1956, %v1956
  %v2074 = vmul.f32 %v1957, %v1957
  %v2075 = vadd.f32 %v2059, %v2060
  %v2076 = vadd.f32 %v2075, %v2061
  %v2077 = vadd.f32 %v2076, %v2062
  %v2078 = vadd.f32 %v2077, %v2063
  %v2079 = vadd.f32 %v2078, %v2064
  %v2080 = vadd.f32 %v2079, %v2065
  %v2081 = vadd.f32 %v2080, %v2066
  %v2082 = vadd.f32 %v2081, %v2067
  %v2083 = vadd.f32 %v2082, %v2068
  %v2084 = vadd.f32 %v2083, %v2069
  %v2085 = vadd.f32 %v2084, %v2070
  %v2086 = vadd.f32 %v2085, %v2071
  %v2087 = vadd.f32 %v2086, %v2072
  %v2088 = vadd.f32 %v2087, %v2073
  %v2089 = vadd.f32 %v2088, %v2074
  %v2090 = vrot.slane %v2089, 4
  %v2091 = vadd.f32 %v2089, %v2090
  %v2092 = vrot.slane %v2091, 2
  %v2093 = vadd.f32 %v2091, %v2092
  %v2094 = vrot.slane %v2093, 1
  %v2095 = vadd.f32 %v2093, %v2094
  %vm2096 = vcmask 1040384
  %v2097 = vsel %vm2096, %v2058, %v2095
  %2098 = vst [vmem:[%s5] sm:$0x3] %v2097
  // Predicated region
  $region18: #{basic_block.4} parent=0 // pred_check
    _
  $region19: #{basic_block.4} parent=0 // pred_check_branch
    %2100 = sbr.rel (0) target = $region21
  $region20: #{basic_block.4} parent=0 // pred_region
    _
  $region21: #{basic_block.4} parent=0 // pred_fallthru
    _
  // Predicated region
  $region22: #{basic_block.4} parent=0 // pred_check
    _
  $region23: #{basic_block.4} parent=0 // pred_check_branch
    %2102 = sbr.rel (0) target = $region25
  $region24: #{basic_block.4} parent=0 // pred_region
    _
  $region25: #{basic_block.4} parent=0 // pred_fallthru
    _
  // Predicated region
  $region26: #{basic_block.4} parent=0 // pred_check
    _
  $region27: #{basic_block.4} parent=0 // pred_check_branch
    %2104 = sbr.rel (0) target = $region29
  $region28: #{basic_block.4} parent=0 // pred_region
    _
  $region29: #{basic_block.4} parent=0 // pred_fallthru
    _
  // Predicated region
  $region30: #{basic_block.4} parent=0 // pred_check
    _
  $region31: #{basic_block.4} parent=0 // pred_check_branch
    %2106 = sbr.rel (0) target = $region33
  $region32: #{basic_block.4} parent=0 // pred_region
    _
  $region33: #{basic_block.4} parent=0 // pred_fallthru
    _

</llo_original>
